<compile_context>
chip_gen: v5e
topology: v5e:2x2
jax: 0.10.0
libtpu: 0.0.40
codegen_flags: <defaults>
</compile_context>

<pallas_src>
import functools

import jax
import jax.numpy as jnp
from jax.experimental import pallas as pl
from jax.experimental.pallas import tpu as pltpu


# ----------------------------------------------------------------------------
# Kernels
# ----------------------------------------------------------------------------
def _conv_vpu_kernel(x_ref, w_ref, b_ref, o_ref, *, K, stride, TH, Wo, Cin, Cout):
    """Direct (im2col-free) convolution on the VPU for small channel counts.

    x_ref: (Cin, Hp, Wp)    padded image of this batch element; its block index
                            is constant along the row-tile axis, so it is DMA'd
                            into VMEM once per batch element.  W is the lane dim
                            (dense lanes — no Cin->128 padding).
    w_ref: (Cout*Cin*K*K,)  f32 weights in SMEM (scalar broadcast-FMA operands).
    b_ref: (Cout,)          f32 bias in SMEM.
    o_ref: (Cout, TH, Wo)   NCHW output row tile (written directly, no Cout pad).
    """
    i = pl.program_id(1)
    row0 = pl.multiple_of(i * (TH * stride), TH * stride)

    accs = [jnp.full((TH, Wo), b_ref[co], dtype=jnp.float32) for co in range(Cout)]
    for ci in range(Cin):
        for kh in range(K):
            for kw in range(K):
                if stride == 1:
                    tap = x_ref[ci, pl.ds(row0 + kh, TH), pl.ds(kw, Wo)]
                else:
                    # Rows strided on the ref (strided vector loads).
                    # TODO(synk): move the lane-dim (width) striding onto the ref
                    # as well once lane-strided loads are available.
                    tap = x_ref[ci, pl.ds(row0 + kh, TH, stride=stride),
                                pl.ds(kw, (Wo - 1) * stride + 1)]
                    tap = tap[:, ::stride]
                tap = tap.astype(jnp.float32)
                base = (ci * K + kh) * K + kw
                for co in range(Cout):
                    accs[co] = accs[co] + w_ref[co * Cin * K * K + base] * tap
    for co in range(Cout):
        o_ref[co] = accs[co].astype(o_ref.dtype)


def _conv_mxu_kernel(x_ref, w_ref, b_ref, o_ref, *, K, stride, TH, Wo, Cin):
    """MXU convolution for larger channel counts (no im2col concat/reshape).

    x_ref: (Hp, Wp, Cin)    padded NHWC image, VMEM resident across row tiles.
    w_ref: (K*K*Cin, Cpad)  weight matrix, output channels lane-padded to Cpad.
    b_ref: (1, Cpad)        f32 bias.
    o_ref: (TH, Wo, Cpad)   output row tile.
    """
    i = pl.program_id(1)
    row0 = pl.multiple_of(i * (TH * stride), TH * stride)
    row_span = (TH - 1) * stride + 1
    col_span = (Wo - 1) * stride + 1
    Cpad = o_ref.shape[-1]

    acc = jnp.broadcast_to(b_ref[...], (TH * Wo, Cpad))
    for kh in range(K):
        for kw in range(K):
            win = x_ref[pl.ds(row0 + kh, row_span), kw:kw + col_span, :]
            if stride > 1:
                # TODO(synk): move the striding onto the ref (strided loads).
                win = win[::stride, ::stride, :]
            tap = win.reshape(TH * Wo, Cin)
            w_tap = w_ref[pl.ds((kh * K + kw) * Cin, Cin), :]
            # TODO(synk): pad the contraction depth toward 256 (128 on v5e) once
            # Cin grows, to fill the MXU systolic depth per push.
            acc = acc + jnp.dot(tap, w_tap, preferred_element_type=jnp.float32)
    o_ref[...] = acc.reshape(TH, Wo, Cpad).astype(o_ref.dtype)


# ----------------------------------------------------------------------------
# Wrapper
# ----------------------------------------------------------------------------
def _ceil_to(a, m):
    return (a + m - 1) // m * m


def _pick_row_tile(Ho, Wo, target_elems=2048):
    """Pick TH (a multiple of 8, or all of Ho) so a tile has ~target_elems pixels.

    Returns (TH, Ho_pad) with Ho_pad % TH == 0 (tail handled by padding, not by
    forcing TH | Ho)."""
    th = max(1, target_elems // max(Wo, 1))
    if th >= Ho:
        return Ho, Ho
    th = max(8, (th // 8) * 8)
    if th >= Ho:
        return Ho, Ho
    ho_pad = _ceil_to(Ho, th)
    return th, ho_pad


def _vmem_cap_bytes():
    # Leave ~1/8 of physical VMEM for compiler scratch / pipelining buffers
    # (critical on v7x where per-TensorCore VMEM is only 64 MiB).
    try:
        phys = int(pltpu.get_tpu_info().vmem_capacity_bytes)
    except Exception:
        phys = 64 << 20  # conservative fallback = v7x per-TC VMEM
    return (phys * 7) // 8


def conv_layer_forward(x, weight, bias, stride, *, compute_dtype=None):
    """Forward pass of ConvLayer: ReflectionPad2d(kernel_size//2) then Conv2d."""
    N, Cin, H, W = x.shape
    Cout, Cin_w, K, K2 = weight.shape
    assert Cin == Cin_w and K == K2
    pad = K // 2
    if pad > 0:
        assert pad < H and pad < W, "ReflectionPad2d requires pad < spatial dims"

    if compute_dtype is None:
        compute_dtype = x.dtype
    out_dtype = x.dtype

    # Reflection padding (wrapper glue; matches nn.ReflectionPad2d semantics).
    # TODO(synk): fold the reflection padding into the kernel (reflected row/col
    # index table via scalar prefetch) to remove this extra HBM pass.
    if pad > 0:
        x_pad = jnp.pad(x, ((0, 0), (0, 0), (pad, pad), (pad, pad)), mode="reflect")
    else:
        x_pad = x
    Hp, Wp = H + 2 * pad, W + 2 * pad
    Ho = (Hp - K) // stride + 1
    Wo = (Wp - K) // stride + 1

    # Row tiling (tail handled by padding the output rows + the needed input rows).
    TH, Ho_pad = _pick_row_tile(Ho, Wo)
    n_row_tiles = Ho_pad // TH
    Hp_k = max(Hp, (Ho_pad - 1) * stride + K)
    if Hp_k > Hp:
        x_pad = jnp.pad(x_pad, ((0, 0), (0, 0), (0, Hp_k - Hp), (0, 0)))

    # Megacore: prefer splitting the batch axis (one image fetch per element per
    # core); split row tiles only when there is a single batch element.
    if N >= 2:
        dims = ("parallel", "arbitrary")
    else:
        dims = ("arbitrary", "parallel")

    vmem_cap = _vmem_cap_bytes()
    c_item = jnp.dtype(compute_dtype).itemsize
    o_item = jnp.dtype(out_dtype).itemsize

    # Dispatch: direct VPU conv when the fully unrolled FMA count is small
    # (the regime this module is used in), MXU matmuls otherwise.
    use_vpu = (Cin * Cout * K * K) <= 4096

    if use_vpu:
        # ------------------------- VPU direct-conv path -------------------------
        x_in = x_pad.astype(compute_dtype)                  # (N, Cin, Hp_k, Wp) NCHW
        w_flat = weight.reshape(-1).astype(jnp.float32)     # SMEM scalar table
        b_flat = bias.astype(jnp.float32)

        # VMEM estimate includes (8,128) padding of every resident buffer.
        img_b = Cin * _ceil_to(Hp_k, 8) * _ceil_to(Wp, 128) * c_item
        out_b = Cout * _ceil_to(TH, 8) * _ceil_to(Wo, 128) * o_item
        acc_b = Cout * _ceil_to(TH, 8) * _ceil_to(Wo, 128) * 4
        est = 2 * img_b + 2 * out_b + acc_b + (2 << 20)
        vmem_limit = int(min(max(est, 32 << 20), vmem_cap))
        # TODO(synk): if est > vmem_cap (very large images), switch to a halo-row
        # DMA pipeline (pl.ANY + make_async_copy) instead of whole-image residency.
        # TODO(synk): pl.Buffered(1) (or manual DMA) on the resident-image spec
        # would halve its footprint on v7x.

        kernel = functools.partial(_conv_vpu_kernel, K=K, stride=stride,
                                   TH=TH, Wo=Wo, Cin=Cin, Cout=Cout)
        out = pl.pallas_call(
            kernel,
            out_shape=jax.ShapeDtypeStruct((N, Cout, Ho_pad, Wo), out_dtype),
            grid_spec=pltpu.PrefetchScalarGridSpec(
                num_scalar_prefetch=0,
                grid=(N, n_row_tiles),
                in_specs=[
                    # Whole padded image of batch element n (block index constant
                    # along the row-tile axis -> fetched once per batch element).
                    pl.BlockSpec((None, Cin, Hp_k, Wp), lambda n, i: (n, 0, 0, 0)),
                    pl.BlockSpec(memory_space=pltpu.MemorySpace.SMEM),
                    pl.BlockSpec(memory_space=pltpu.MemorySpace.SMEM),
                ],
                out_specs=pl.BlockSpec((None, Cout, TH, Wo),
                                       lambda n, i: (n, 0, i, 0)),
            ),
            compiler_params=pltpu.CompilerParams(
                dimension_semantics=dims, vmem_limit_bytes=vmem_limit),
        )(x_in, w_flat, b_flat)

        if Ho_pad != Ho:
            out = out[:, :, :Ho, :]
        return out  # already NCHW — no wrapper transpose / channel slice

    # --------------------------- MXU matmul path -----------------------------
    # Only used for larger channel counts, where NHWC lane padding (128/Cin) and
    # Cout lane padding are small.  TODO(synk): fold Cin into the lane dim
    # ((N, Hp, Wp*Cin)) and emit NCHW output directly for mid-size channels.
    x_nhwc = jnp.transpose(x_pad, (0, 2, 3, 1)).astype(compute_dtype)  # (N,Hp_k,Wp,Cin)
    Kdim = K * K * Cin
    Cpad = _ceil_to(Cout, 128)
    w_mat = jnp.transpose(weight, (2, 3, 1, 0)).reshape(Kdim, Cout)
    w_mat = jnp.pad(w_mat, ((0, 0), (0, Cpad - Cout))).astype(compute_dtype)
    b_mat = jnp.pad(bias.astype(jnp.float32), (0, Cpad - Cout)).reshape(1, Cpad)

    img_b = Hp_k * _ceil_to(Wp, 8) * _ceil_to(Cin, 128) * c_item
    w_b = _ceil_to(Kdim, 8) * Cpad * c_item
    out_b = TH * _ceil_to(Wo, 8) * Cpad * o_item
    inter_b = _ceil_to(TH * Wo, 8) * (_ceil_to(Cin, 128) * c_item + Cpad * 4)
    est = 2 * img_b + 2 * w_b + 2 * out_b + inter_b + (2 << 20)
    vmem_limit = int(min(max(est, 32 << 20), vmem_cap))
    # TODO(synk): halo-row DMA pipeline when the image slab exceeds vmem_cap.

    kernel = functools.partial(_conv_mxu_kernel, K=K, stride=stride,
                               TH=TH, Wo=Wo, Cin=Cin)
    out = pl.pallas_call(
        kernel,
        out_shape=jax.ShapeDtypeStruct((N, Ho_pad, Wo, Cpad), out_dtype),
        grid_spec=pltpu.PrefetchScalarGridSpec(
            num_scalar_prefetch=0,
            grid=(N, n_row_tiles),
            in_specs=[
                pl.BlockSpec((None, Hp_k, Wp, Cin), lambda n, i: (n, 0, 0, 0)),
                pl.BlockSpec((Kdim, Cpad), lambda n, i: (0, 0)),
                pl.BlockSpec((1, Cpad), lambda n, i: (0, 0)),
            ],
            out_specs=pl.BlockSpec((None, TH, Wo, Cpad), lambda n, i: (n, i, 0, 0)),
        ),
        compiler_params=pltpu.CompilerParams(
            dimension_semantics=dims, vmem_limit_bytes=vmem_limit),
    )(x_nhwc, w_mat, b_mat)

    if Ho_pad != Ho:
        out = out[:, :Ho]
    if Cpad != Cout:
        out = out[..., :Cout]
    return jnp.transpose(out, (0, 3, 1, 2))  # NHWC -> NCHW


# ----------------------------------------------------------------------------
# Reference + self-test
# ----------------------------------------------------------------------------
def _conv_layer_reference(x, weight, bias, stride):
    K = weight.shape[-1]
    pad = K // 2
    if pad > 0:
        x = jnp.pad(x, ((0, 0), (0, 0), (pad, pad), (pad, pad)), mode="reflect")
    out = jax.lax.conv_general_dilated(
        x, weight, window_strides=(stride, stride), padding="VALID",
        dimension_numbers=("NCHW", "OIHW", "NCHW"))
    return out + bias[None, :, None, None]


if __name__ == "__main__":
    key = jax.random.PRNGKey(0)
    kx, kw, kb, kx2, kw2, kb2 = jax.random.split(key, 6)

    # --- ConvLayer(in=4, out=8, kernel_size=3, stride=1): tiny-channel VPU path ---
    N, Cin, H, W = 2, 4, 16, 16
    Cout, K, stride = 8, 3, 1
    x = jax.random.normal(kx, (N, Cin, H, W), dtype=jnp.float32)
    bound = 1.0 / ((Cin * K * K) ** 0.5)
    weight = jax.random.uniform(kw, (Cout, Cin, K, K), jnp.float32, -bound, bound)
    bias = jax.random.uniform(kb, (Cout,), jnp.float32, -bound, bound)

    out = jax.block_until_ready(conv_layer_forward(x, weight, bias, stride))
    ref = jax.block_until_ready(_conv_layer_reference(x, weight, bias, stride))
    assert out.shape == (N, Cout, H, W), out.shape
    assert jnp.allclose(out, ref, rtol=1e-4, atol=1e-4), \
        float(jnp.max(jnp.abs(out - ref)))

    # bf16 compute path (beneficial on v5e/v6e/v7x alike: halves image HBM/VMEM
    # traffic; weights stay f32 in SMEM and accumulation stays f32).
    out_bf16 = jax.block_until_ready(
        conv_layer_forward(x, weight, bias, stride, compute_dtype=jnp.bfloat16))
    assert jnp.allclose(out_bf16, ref, rtol=5e-2, atol=5e-2), \
        float(jnp.max(jnp.abs(out_bf16 - ref)))

    # --- Larger-channel configuration exercising the MXU (per-tap matmul) path ---
    N2, Cin2, Cout2 = 1, 32, 64
    x2 = jax.random.normal(kx2, (N2, Cin2, H, W), dtype=jnp.float32)
    bound2 = 1.0 / ((Cin2 * K * K) ** 0.5)
    weight2 = jax.random.uniform(kw2, (Cout2, Cin2, K, K), jnp.float32, -bound2, bound2)
    bias2 = jax.random.uniform(kb2, (Cout2,), jnp.float32, -bound2, bound2)

    out2 = jax.block_until_ready(conv_layer_forward(x2, weight2, bias2, stride))
    ref2 = jax.block_until_ready(_conv_layer_reference(x2, weight2, bias2, stride))
    assert out2.shape == (N2, Cout2, H, W), out2.shape
    assert jnp.allclose(out2, ref2, rtol=2e-4, atol=2e-4), \
        float(jnp.max(jnp.abs(out2 - ref2)))

    print("KERNEL_OK")
</pallas_src>

<mosaic_0001>
module attributes {stable_mosaic.version = 11 : i64} {
  func.func @_conv_vpu_kernel(%arg0: i32, %arg1: i32, %arg2: memref<1x4x18x18xf32, #tpu.memory_space<vmem>>, %arg3: memref<288xf32, #tpu.memory_space<smem>>, %arg4: memref<8xf32, #tpu.memory_space<smem>>, %arg5: memref<1x8x16x16xf32, #tpu.memory_space<vmem>>) attributes {dimension_semantics = [#tpu.dimension_semantics<parallel>, #tpu.dimension_semantics<arbitrary>], iteration_bounds = array<i64: 2, 1>, scalar_prefetch = 0 : i64, scratch_operands = 0 : i64, tpu.core_type = #tpu.core_type<tc>, window_params = [{transform_indices = @transform_0, window_bounds = array<i64: 1, 4, 18, 18>}, {transform_indices = @transform_1, window_bounds = array<i64: 288>}, {transform_indices = @transform_2, window_bounds = array<i64: 8>}, {transform_indices = @transform_3, window_bounds = array<i64: 1, 8, 16, 16>}]} {
    %c16_i32 = arith.constant 16 : i32
    %0 = arith.muli %arg1, %c16_i32 : i32
    %1 = tpu.assume_multiple %0, 16 : i32
    %c0 = arith.constant 0 : index
    %2 = memref.load %arg4[%c0] : memref<8xf32, #tpu.memory_space<smem>>
    %3 = vector.broadcast %2 : f32 to vector<16x16xf32>
    %c1 = arith.constant 1 : index
    %4 = memref.load %arg4[%c1] : memref<8xf32, #tpu.memory_space<smem>>
    %5 = vector.broadcast %4 : f32 to vector<16x16xf32>
    %c2 = arith.constant 2 : index
    %6 = memref.load %arg4[%c2] : memref<8xf32, #tpu.memory_space<smem>>
    %7 = vector.broadcast %6 : f32 to vector<16x16xf32>
    %c3 = arith.constant 3 : index
    %8 = memref.load %arg4[%c3] : memref<8xf32, #tpu.memory_space<smem>>
    %9 = vector.broadcast %8 : f32 to vector<16x16xf32>
    %c4 = arith.constant 4 : index
    %10 = memref.load %arg4[%c4] : memref<8xf32, #tpu.memory_space<smem>>
    %11 = vector.broadcast %10 : f32 to vector<16x16xf32>
    %c5 = arith.constant 5 : index
    %12 = memref.load %arg4[%c5] : memref<8xf32, #tpu.memory_space<smem>>
    %13 = vector.broadcast %12 : f32 to vector<16x16xf32>
    %c6 = arith.constant 6 : index
    %14 = memref.load %arg4[%c6] : memref<8xf32, #tpu.memory_space<smem>>
    %15 = vector.broadcast %14 : f32 to vector<16x16xf32>
    %c7 = arith.constant 7 : index
    %16 = memref.load %arg4[%c7] : memref<8xf32, #tpu.memory_space<smem>>
    %17 = vector.broadcast %16 : f32 to vector<16x16xf32>
    %c0_i32 = arith.constant 0 : i32
    %18 = arith.addi %1, %c0_i32 : i32
    %c0_0 = arith.constant 0 : index
    %c0_1 = arith.constant 0 : index
    %19 = arith.index_cast %18 : i32 to index
    %c0_2 = arith.constant 0 : index
    %20 = vector.load %arg2[%c0_0, %c0_1, %19, %c0_2] : memref<1x4x18x18xf32, #tpu.memory_space<vmem>>, vector<1x1x16x16xf32>
    %21 = vector.shape_cast %20 : vector<1x1x16x16xf32> to vector<16x16xf32>
    %c0_3 = arith.constant 0 : index
    %22 = memref.load %arg3[%c0_3] : memref<288xf32, #tpu.memory_space<smem>>
    %23 = vector.broadcast %22 : f32 to vector<16x16xf32>
    %24 = arith.mulf %23, %21 : vector<16x16xf32>
    %25 = arith.addf %3, %24 : vector<16x16xf32>
    %c36 = arith.constant 36 : index
    %26 = memref.load %arg3[%c36] : memref<288xf32, #tpu.memory_space<smem>>
    %27 = vector.broadcast %26 : f32 to vector<16x16xf32>
    %28 = arith.mulf %27, %21 : vector<16x16xf32>
    %29 = arith.addf %5, %28 : vector<16x16xf32>
    %c72 = arith.constant 72 : index
    %30 = memref.load %arg3[%c72] : memref<288xf32, #tpu.memory_space<smem>>
    %31 = vector.broadcast %30 : f32 to vector<16x16xf32>
    %32 = arith.mulf %31, %21 : vector<16x16xf32>
    %33 = arith.addf %7, %32 : vector<16x16xf32>
    %c108 = arith.constant 108 : index
    %34 = memref.load %arg3[%c108] : memref<288xf32, #tpu.memory_space<smem>>
    %35 = vector.broadcast %34 : f32 to vector<16x16xf32>
    %36 = arith.mulf %35, %21 : vector<16x16xf32>
    %37 = arith.addf %9, %36 : vector<16x16xf32>
    %c144 = arith.constant 144 : index
    %38 = memref.load %arg3[%c144] : memref<288xf32, #tpu.memory_space<smem>>
    %39 = vector.broadcast %38 : f32 to vector<16x16xf32>
    %40 = arith.mulf %39, %21 : vector<16x16xf32>
    %41 = arith.addf %11, %40 : vector<16x16xf32>
    %c180 = arith.constant 180 : index
    %42 = memref.load %arg3[%c180] : memref<288xf32, #tpu.memory_space<smem>>
    %43 = vector.broadcast %42 : f32 to vector<16x16xf32>
    %44 = arith.mulf %43, %21 : vector<16x16xf32>
    %45 = arith.addf %13, %44 : vector<16x16xf32>
    %c216 = arith.constant 216 : index
    %46 = memref.load %arg3[%c216] : memref<288xf32, #tpu.memory_space<smem>>
    %47 = vector.broadcast %46 : f32 to vector<16x16xf32>
    %48 = arith.mulf %47, %21 : vector<16x16xf32>
    %49 = arith.addf %15, %48 : vector<16x16xf32>
    %c252 = arith.constant 252 : index
    %50 = memref.load %arg3[%c252] : memref<288xf32, #tpu.memory_space<smem>>
    %51 = vector.broadcast %50 : f32 to vector<16x16xf32>
    %52 = arith.mulf %51, %21 : vector<16x16xf32>
    %53 = arith.addf %17, %52 : vector<16x16xf32>
    %c0_i32_4 = arith.constant 0 : i32
    %54 = arith.addi %1, %c0_i32_4 : i32
    %c0_5 = arith.constant 0 : index
    %c0_6 = arith.constant 0 : index
    %55 = arith.index_cast %54 : i32 to index
    %c1_7 = arith.constant 1 : index
    %56 = vector.load %arg2[%c0_5, %c0_6, %55, %c1_7] : memref<1x4x18x18xf32, #tpu.memory_space<vmem>>, vector<1x1x16x16xf32>
    %57 = vector.shape_cast %56 : vector<1x1x16x16xf32> to vector<16x16xf32>
    %c1_8 = arith.constant 1 : index
    %58 = memref.load %arg3[%c1_8] : memref<288xf32, #tpu.memory_space<smem>>
    %59 = vector.broadcast %58 : f32 to vector<16x16xf32>
    %60 = arith.mulf %59, %57 : vector<16x16xf32>
    %61 = arith.addf %25, %60 : vector<16x16xf32>
    %c37 = arith.constant 37 : index
    %62 = memref.load %arg3[%c37] : memref<288xf32, #tpu.memory_space<smem>>
    %63 = vector.broadcast %62 : f32 to vector<16x16xf32>
    %64 = arith.mulf %63, %57 : vector<16x16xf32>
    %65 = arith.addf %29, %64 : vector<16x16xf32>
    %c73 = arith.constant 73 : index
    %66 = memref.load %arg3[%c73] : memref<288xf32, #tpu.memory_space<smem>>
    %67 = vector.broadcast %66 : f32 to vector<16x16xf32>
    %68 = arith.mulf %67, %57 : vector<16x16xf32>
    %69 = arith.addf %33, %68 : vector<16x16xf32>
    %c109 = arith.constant 109 : index
    %70 = memref.load %arg3[%c109] : memref<288xf32, #tpu.memory_space<smem>>
    %71 = vector.broadcast %70 : f32 to vector<16x16xf32>
    %72 = arith.mulf %71, %57 : vector<16x16xf32>
    %73 = arith.addf %37, %72 : vector<16x16xf32>
    %c145 = arith.constant 145 : index
    %74 = memref.load %arg3[%c145] : memref<288xf32, #tpu.memory_space<smem>>
    %75 = vector.broadcast %74 : f32 to vector<16x16xf32>
    %76 = arith.mulf %75, %57 : vector<16x16xf32>
    %77 = arith.addf %41, %76 : vector<16x16xf32>
    %c181 = arith.constant 181 : index
    %78 = memref.load %arg3[%c181] : memref<288xf32, #tpu.memory_space<smem>>
    %79 = vector.broadcast %78 : f32 to vector<16x16xf32>
    %80 = arith.mulf %79, %57 : vector<16x16xf32>
    %81 = arith.addf %45, %80 : vector<16x16xf32>
    %c217 = arith.constant 217 : index
    %82 = memref.load %arg3[%c217] : memref<288xf32, #tpu.memory_space<smem>>
    %83 = vector.broadcast %82 : f32 to vector<16x16xf32>
    %84 = arith.mulf %83, %57 : vector<16x16xf32>
    %85 = arith.addf %49, %84 : vector<16x16xf32>
    %c253 = arith.constant 253 : index
    %86 = memref.load %arg3[%c253] : memref<288xf32, #tpu.memory_space<smem>>
    %87 = vector.broadcast %86 : f32 to vector<16x16xf32>
    %88 = arith.mulf %87, %57 : vector<16x16xf32>
    %89 = arith.addf %53, %88 : vector<16x16xf32>
    %c0_i32_9 = arith.constant 0 : i32
    %90 = arith.addi %1, %c0_i32_9 : i32
    %c0_10 = arith.constant 0 : index
    %c0_11 = arith.constant 0 : index
    %91 = arith.index_cast %90 : i32 to index
    %c2_12 = arith.constant 2 : index
    %92 = vector.load %arg2[%c0_10, %c0_11, %91, %c2_12] : memref<1x4x18x18xf32, #tpu.memory_space<vmem>>, vector<1x1x16x16xf32>
    %93 = vector.shape_cast %92 : vector<1x1x16x16xf32> to vector<16x16xf32>
    %c2_13 = arith.constant 2 : index
    %94 = memref.load %arg3[%c2_13] : memref<288xf32, #tpu.memory_space<smem>>
    %95 = vector.broadcast %94 : f32 to vector<16x16xf32>
    %96 = arith.mulf %95, %93 : vector<16x16xf32>
    %97 = arith.addf %61, %96 : vector<16x16xf32>
    %c38 = arith.constant 38 : index
    %98 = memref.load %arg3[%c38] : memref<288xf32, #tpu.memory_space<smem>>
    %99 = vector.broadcast %98 : f32 to vector<16x16xf32>
    %100 = arith.mulf %99, %93 : vector<16x16xf32>
    %101 = arith.addf %65, %100 : vector<16x16xf32>
    %c74 = arith.constant 74 : index
    %102 = memref.load %arg3[%c74] : memref<288xf32, #tpu.memory_space<smem>>
    %103 = vector.broadcast %102 : f32 to vector<16x16xf32>
    %104 = arith.mulf %103, %93 : vector<16x16xf32>
    %105 = arith.addf %69, %104 : vector<16x16xf32>
    %c110 = arith.constant 110 : index
    %106 = memref.load %arg3[%c110] : memref<288xf32, #tpu.memory_space<smem>>
    %107 = vector.broadcast %106 : f32 to vector<16x16xf32>
    %108 = arith.mulf %107, %93 : vector<16x16xf32>
    %109 = arith.addf %73, %108 : vector<16x16xf32>
    %c146 = arith.constant 146 : index
    %110 = memref.load %arg3[%c146] : memref<288xf32, #tpu.memory_space<smem>>
    %111 = vector.broadcast %110 : f32 to vector<16x16xf32>
    %112 = arith.mulf %111, %93 : vector<16x16xf32>
    %113 = arith.addf %77, %112 : vector<16x16xf32>
    %c182 = arith.constant 182 : index
    %114 = memref.load %arg3[%c182] : memref<288xf32, #tpu.memory_space<smem>>
    %115 = vector.broadcast %114 : f32 to vector<16x16xf32>
    %116 = arith.mulf %115, %93 : vector<16x16xf32>
    %117 = arith.addf %81, %116 : vector<16x16xf32>
    %c218 = arith.constant 218 : index
    %118 = memref.load %arg3[%c218] : memref<288xf32, #tpu.memory_space<smem>>
    %119 = vector.broadcast %118 : f32 to vector<16x16xf32>
    %120 = arith.mulf %119, %93 : vector<16x16xf32>
    %121 = arith.addf %85, %120 : vector<16x16xf32>
    %c254 = arith.constant 254 : index
    %122 = memref.load %arg3[%c254] : memref<288xf32, #tpu.memory_space<smem>>
    %123 = vector.broadcast %122 : f32 to vector<16x16xf32>
    %124 = arith.mulf %123, %93 : vector<16x16xf32>
    %125 = arith.addf %89, %124 : vector<16x16xf32>
    %c1_i32 = arith.constant 1 : i32
    %126 = arith.addi %1, %c1_i32 : i32
    %c0_14 = arith.constant 0 : index
    %c0_15 = arith.constant 0 : index
    %127 = arith.index_cast %126 : i32 to index
    %c0_16 = arith.constant 0 : index
    %128 = vector.load %arg2[%c0_14, %c0_15, %127, %c0_16] : memref<1x4x18x18xf32, #tpu.memory_space<vmem>>, vector<1x1x16x16xf32>
    %129 = vector.shape_cast %128 : vector<1x1x16x16xf32> to vector<16x16xf32>
    %c3_17 = arith.constant 3 : index
    %130 = memref.load %arg3[%c3_17] : memref<288xf32, #tpu.memory_space<smem>>
    %131 = vector.broadcast %130 : f32 to vector<16x16xf32>
    %132 = arith.mulf %131, %129 : vector<16x16xf32>
    %133 = arith.addf %97, %132 : vector<16x16xf32>
    %c39 = arith.constant 39 : index
    %134 = memref.load %arg3[%c39] : memref<288xf32, #tpu.memory_space<smem>>
    %135 = vector.broadcast %134 : f32 to vector<16x16xf32>
    %136 = arith.mulf %135, %129 : vector<16x16xf32>
    %137 = arith.addf %101, %136 : vector<16x16xf32>
    %c75 = arith.constant 75 : index
    %138 = memref.load %arg3[%c75] : memref<288xf32, #tpu.memory_space<smem>>
    %139 = vector.broadcast %138 : f32 to vector<16x16xf32>
    %140 = arith.mulf %139, %129 : vector<16x16xf32>
    %141 = arith.addf %105, %140 : vector<16x16xf32>
    %c111 = arith.constant 111 : index
    %142 = memref.load %arg3[%c111] : memref<288xf32, #tpu.memory_space<smem>>
    %143 = vector.broadcast %142 : f32 to vector<16x16xf32>
    %144 = arith.mulf %143, %129 : vector<16x16xf32>
    %145 = arith.addf %109, %144 : vector<16x16xf32>
    %c147 = arith.constant 147 : index
    %146 = memref.load %arg3[%c147] : memref<288xf32, #tpu.memory_space<smem>>
    %147 = vector.broadcast %146 : f32 to vector<16x16xf32>
    %148 = arith.mulf %147, %129 : vector<16x16xf32>
    %149 = arith.addf %113, %148 : vector<16x16xf32>
    %c183 = arith.constant 183 : index
    %150 = memref.load %arg3[%c183] : memref<288xf32, #tpu.memory_space<smem>>
    %151 = vector.broadcast %150 : f32 to vector<16x16xf32>
    %152 = arith.mulf %151, %129 : vector<16x16xf32>
    %153 = arith.addf %117, %152 : vector<16x16xf32>
    %c219 = arith.constant 219 : index
    %154 = memref.load %arg3[%c219] : memref<288xf32, #tpu.memory_space<smem>>
    %155 = vector.broadcast %154 : f32 to vector<16x16xf32>
    %156 = arith.mulf %155, %129 : vector<16x16xf32>
    %157 = arith.addf %121, %156 : vector<16x16xf32>
    %c255 = arith.constant 255 : index
    %158 = memref.load %arg3[%c255] : memref<288xf32, #tpu.memory_space<smem>>
    %159 = vector.broadcast %158 : f32 to vector<16x16xf32>
    %160 = arith.mulf %159, %129 : vector<16x16xf32>
    %161 = arith.addf %125, %160 : vector<16x16xf32>
    %c1_i32_18 = arith.constant 1 : i32
    %162 = arith.addi %1, %c1_i32_18 : i32
    %c0_19 = arith.constant 0 : index
    %c0_20 = arith.constant 0 : index
    %163 = arith.index_cast %162 : i32 to index
    %c1_21 = arith.constant 1 : index
    %164 = vector.load %arg2[%c0_19, %c0_20, %163, %c1_21] : memref<1x4x18x18xf32, #tpu.memory_space<vmem>>, vector<1x1x16x16xf32>
    %165 = vector.shape_cast %164 : vector<1x1x16x16xf32> to vector<16x16xf32>
    %c4_22 = arith.constant 4 : index
    %166 = memref.load %arg3[%c4_22] : memref<288xf32, #tpu.memory_space<smem>>
    %167 = vector.broadcast %166 : f32 to vector<16x16xf32>
    %168 = arith.mulf %167, %165 : vector<16x16xf32>
    %169 = arith.addf %133, %168 : vector<16x16xf32>
    %c40 = arith.constant 40 : index
    %170 = memref.load %arg3[%c40] : memref<288xf32, #tpu.memory_space<smem>>
    %171 = vector.broadcast %170 : f32 to vector<16x16xf32>
    %172 = arith.mulf %171, %165 : vector<16x16xf32>
    %173 = arith.addf %137, %172 : vector<16x16xf32>
    %c76 = arith.constant 76 : index
    %174 = memref.load %arg3[%c76] : memref<288xf32, #tpu.memory_space<smem>>
    %175 = vector.broadcast %174 : f32 to vector<16x16xf32>
    %176 = arith.mulf %175, %165 : vector<16x16xf32>
    %177 = arith.addf %141, %176 : vector<16x16xf32>
    %c112 = arith.constant 112 : index
    %178 = memref.load %arg3[%c112] : memref<288xf32, #tpu.memory_space<smem>>
    %179 = vector.broadcast %178 : f32 to vector<16x16xf32>
    %180 = arith.mulf %179, %165 : vector<16x16xf32>
    %181 = arith.addf %145, %180 : vector<16x16xf32>
    %c148 = arith.constant 148 : index
    %182 = memref.load %arg3[%c148] : memref<288xf32, #tpu.memory_space<smem>>
    %183 = vector.broadcast %182 : f32 to vector<16x16xf32>
    %184 = arith.mulf %183, %165 : vector<16x16xf32>
    %185 = arith.addf %149, %184 : vector<16x16xf32>
    %c184 = arith.constant 184 : index
    %186 = memref.load %arg3[%c184] : memref<288xf32, #tpu.memory_space<smem>>
    %187 = vector.broadcast %186 : f32 to vector<16x16xf32>
    %188 = arith.mulf %187, %165 : vector<16x16xf32>
    %189 = arith.addf %153, %188 : vector<16x16xf32>
    %c220 = arith.constant 220 : index
    %190 = memref.load %arg3[%c220] : memref<288xf32, #tpu.memory_space<smem>>
    %191 = vector.broadcast %190 : f32 to vector<16x16xf32>
    %192 = arith.mulf %191, %165 : vector<16x16xf32>
    %193 = arith.addf %157, %192 : vector<16x16xf32>
    %c256 = arith.constant 256 : index
    %194 = memref.load %arg3[%c256] : memref<288xf32, #tpu.memory_space<smem>>
    %195 = vector.broadcast %194 : f32 to vector<16x16xf32>
    %196 = arith.mulf %195, %165 : vector<16x16xf32>
    %197 = arith.addf %161, %196 : vector<16x16xf32>
    %c1_i32_23 = arith.constant 1 : i32
    %198 = arith.addi %1, %c1_i32_23 : i32
    %c0_24 = arith.constant 0 : index
    %c0_25 = arith.constant 0 : index
    %199 = arith.index_cast %198 : i32 to index
    %c2_26 = arith.constant 2 : index
    %200 = vector.load %arg2[%c0_24, %c0_25, %199, %c2_26] : memref<1x4x18x18xf32, #tpu.memory_space<vmem>>, vector<1x1x16x16xf32>
    %201 = vector.shape_cast %200 : vector<1x1x16x16xf32> to vector<16x16xf32>
    %c5_27 = arith.constant 5 : index
    %202 = memref.load %arg3[%c5_27] : memref<288xf32, #tpu.memory_space<smem>>
    %203 = vector.broadcast %202 : f32 to vector<16x16xf32>
    %204 = arith.mulf %203, %201 : vector<16x16xf32>
    %205 = arith.addf %169, %204 : vector<16x16xf32>
    %c41 = arith.constant 41 : index
    %206 = memref.load %arg3[%c41] : memref<288xf32, #tpu.memory_space<smem>>
    %207 = vector.broadcast %206 : f32 to vector<16x16xf32>
    %208 = arith.mulf %207, %201 : vector<16x16xf32>
    %209 = arith.addf %173, %208 : vector<16x16xf32>
    %c77 = arith.constant 77 : index
    %210 = memref.load %arg3[%c77] : memref<288xf32, #tpu.memory_space<smem>>
    %211 = vector.broadcast %210 : f32 to vector<16x16xf32>
    %212 = arith.mulf %211, %201 : vector<16x16xf32>
    %213 = arith.addf %177, %212 : vector<16x16xf32>
    %c113 = arith.constant 113 : index
    %214 = memref.load %arg3[%c113] : memref<288xf32, #tpu.memory_space<smem>>
    %215 = vector.broadcast %214 : f32 to vector<16x16xf32>
    %216 = arith.mulf %215, %201 : vector<16x16xf32>
    %217 = arith.addf %181, %216 : vector<16x16xf32>
    %c149 = arith.constant 149 : index
    %218 = memref.load %arg3[%c149] : memref<288xf32, #tpu.memory_space<smem>>
    %219 = vector.broadcast %218 : f32 to vector<16x16xf32>
    %220 = arith.mulf %219, %201 : vector<16x16xf32>
    %221 = arith.addf %185, %220 : vector<16x16xf32>
    %c185 = arith.constant 185 : index
    %222 = memref.load %arg3[%c185] : memref<288xf32, #tpu.memory_space<smem>>
    %223 = vector.broadcast %222 : f32 to vector<16x16xf32>
    %224 = arith.mulf %223, %201 : vector<16x16xf32>
    %225 = arith.addf %189, %224 : vector<16x16xf32>
    %c221 = arith.constant 221 : index
    %226 = memref.load %arg3[%c221] : memref<288xf32, #tpu.memory_space<smem>>
    %227 = vector.broadcast %226 : f32 to vector<16x16xf32>
    %228 = arith.mulf %227, %201 : vector<16x16xf32>
    %229 = arith.addf %193, %228 : vector<16x16xf32>
    %c257 = arith.constant 257 : index
    %230 = memref.load %arg3[%c257] : memref<288xf32, #tpu.memory_space<smem>>
    %231 = vector.broadcast %230 : f32 to vector<16x16xf32>
    %232 = arith.mulf %231, %201 : vector<16x16xf32>
    %233 = arith.addf %197, %232 : vector<16x16xf32>
    %c2_i32 = arith.constant 2 : i32
    %234 = arith.addi %1, %c2_i32 : i32
    %c0_28 = arith.constant 0 : index
    %c0_29 = arith.constant 0 : index
    %235 = arith.index_cast %234 : i32 to index
    %c0_30 = arith.constant 0 : index
    %236 = vector.load %arg2[%c0_28, %c0_29, %235, %c0_30] : memref<1x4x18x18xf32, #tpu.memory_space<vmem>>, vector<1x1x16x16xf32>
    %237 = vector.shape_cast %236 : vector<1x1x16x16xf32> to vector<16x16xf32>
    %c6_31 = arith.constant 6 : index
    %238 = memref.load %arg3[%c6_31] : memref<288xf32, #tpu.memory_space<smem>>
    %239 = vector.broadcast %238 : f32 to vector<16x16xf32>
    %240 = arith.mulf %239, %237 : vector<16x16xf32>
    %241 = arith.addf %205, %240 : vector<16x16xf32>
    %c42 = arith.constant 42 : index
    %242 = memref.load %arg3[%c42] : memref<288xf32, #tpu.memory_space<smem>>
    %243 = vector.broadcast %242 : f32 to vector<16x16xf32>
    %244 = arith.mulf %243, %237 : vector<16x16xf32>
    %245 = arith.addf %209, %244 : vector<16x16xf32>
    %c78 = arith.constant 78 : index
    %246 = memref.load %arg3[%c78] : memref<288xf32, #tpu.memory_space<smem>>
    %247 = vector.broadcast %246 : f32 to vector<16x16xf32>
    %248 = arith.mulf %247, %237 : vector<16x16xf32>
    %249 = arith.addf %213, %248 : vector<16x16xf32>
    %c114 = arith.constant 114 : index
    %250 = memref.load %arg3[%c114] : memref<288xf32, #tpu.memory_space<smem>>
    %251 = vector.broadcast %250 : f32 to vector<16x16xf32>
    %252 = arith.mulf %251, %237 : vector<16x16xf32>
    %253 = arith.addf %217, %252 : vector<16x16xf32>
    %c150 = arith.constant 150 : index
    %254 = memref.load %arg3[%c150] : memref<288xf32, #tpu.memory_space<smem>>
    %255 = vector.broadcast %254 : f32 to vector<16x16xf32>
    %256 = arith.mulf %255, %237 : vector<16x16xf32>
    %257 = arith.addf %221, %256 : vector<16x16xf32>
    %c186 = arith.constant 186 : index
    %258 = memref.load %arg3[%c186] : memref<288xf32, #tpu.memory_space<smem>>
    %259 = vector.broadcast %258 : f32 to vector<16x16xf32>
    %260 = arith.mulf %259, %237 : vector<16x16xf32>
    %261 = arith.addf %225, %260 : vector<16x16xf32>
    %c222 = arith.constant 222 : index
    %262 = memref.load %arg3[%c222] : memref<288xf32, #tpu.memory_space<smem>>
    %263 = vector.broadcast %262 : f32 to vector<16x16xf32>
    %264 = arith.mulf %263, %237 : vector<16x16xf32>
    %265 = arith.addf %229, %264 : vector<16x16xf32>
    %c258 = arith.constant 258 : index
    %266 = memref.load %arg3[%c258] : memref<288xf32, #tpu.memory_space<smem>>
    %267 = vector.broadcast %266 : f32 to vector<16x16xf32>
    %268 = arith.mulf %267, %237 : vector<16x16xf32>
    %269 = arith.addf %233, %268 : vector<16x16xf32>
    %c2_i32_32 = arith.constant 2 : i32
    %270 = arith.addi %1, %c2_i32_32 : i32
    %c0_33 = arith.constant 0 : index
    %c0_34 = arith.constant 0 : index
    %271 = arith.index_cast %270 : i32 to index
    %c1_35 = arith.constant 1 : index
    %272 = vector.load %arg2[%c0_33, %c0_34, %271, %c1_35] : memref<1x4x18x18xf32, #tpu.memory_space<vmem>>, vector<1x1x16x16xf32>
    %273 = vector.shape_cast %272 : vector<1x1x16x16xf32> to vector<16x16xf32>
    %c7_36 = arith.constant 7 : index
    %274 = memref.load %arg3[%c7_36] : memref<288xf32, #tpu.memory_space<smem>>
    %275 = vector.broadcast %274 : f32 to vector<16x16xf32>
    %276 = arith.mulf %275, %273 : vector<16x16xf32>
    %277 = arith.addf %241, %276 : vector<16x16xf32>
    %c43 = arith.constant 43 : index
    %278 = memref.load %arg3[%c43] : memref<288xf32, #tpu.memory_space<smem>>
    %279 = vector.broadcast %278 : f32 to vector<16x16xf32>
    %280 = arith.mulf %279, %273 : vector<16x16xf32>
    %281 = arith.addf %245, %280 : vector<16x16xf32>
    %c79 = arith.constant 79 : index
    %282 = memref.load %arg3[%c79] : memref<288xf32, #tpu.memory_space<smem>>
    %283 = vector.broadcast %282 : f32 to vector<16x16xf32>
    %284 = arith.mulf %283, %273 : vector<16x16xf32>
    %285 = arith.addf %249, %284 : vector<16x16xf32>
    %c115 = arith.constant 115 : index
    %286 = memref.load %arg3[%c115] : memref<288xf32, #tpu.memory_space<smem>>
    %287 = vector.broadcast %286 : f32 to vector<16x16xf32>
    %288 = arith.mulf %287, %273 : vector<16x16xf32>
    %289 = arith.addf %253, %288 : vector<16x16xf32>
    %c151 = arith.constant 151 : index
    %290 = memref.load %arg3[%c151] : memref<288xf32, #tpu.memory_space<smem>>
    %291 = vector.broadcast %290 : f32 to vector<16x16xf32>
    %292 = arith.mulf %291, %273 : vector<16x16xf32>
    %293 = arith.addf %257, %292 : vector<16x16xf32>
    %c187 = arith.constant 187 : index
    %294 = memref.load %arg3[%c187] : memref<288xf32, #tpu.memory_space<smem>>
    %295 = vector.broadcast %294 : f32 to vector<16x16xf32>
    %296 = arith.mulf %295, %273 : vector<16x16xf32>
    %297 = arith.addf %261, %296 : vector<16x16xf32>
    %c223 = arith.constant 223 : index
    %298 = memref.load %arg3[%c223] : memref<288xf32, #tpu.memory_space<smem>>
    %299 = vector.broadcast %298 : f32 to vector<16x16xf32>
    %300 = arith.mulf %299, %273 : vector<16x16xf32>
    %301 = arith.addf %265, %300 : vector<16x16xf32>
    %c259 = arith.constant 259 : index
    %302 = memref.load %arg3[%c259] : memref<288xf32, #tpu.memory_space<smem>>
    %303 = vector.broadcast %302 : f32 to vector<16x16xf32>
    %304 = arith.mulf %303, %273 : vector<16x16xf32>
    %305 = arith.addf %269, %304 : vector<16x16xf32>
    %c2_i32_37 = arith.constant 2 : i32
    %306 = arith.addi %1, %c2_i32_37 : i32
    %c0_38 = arith.constant 0 : index
    %c0_39 = arith.constant 0 : index
    %307 = arith.index_cast %306 : i32 to index
    %c2_40 = arith.constant 2 : index
    %308 = vector.load %arg2[%c0_38, %c0_39, %307, %c2_40] : memref<1x4x18x18xf32, #tpu.memory_space<vmem>>, vector<1x1x16x16xf32>
    %309 = vector.shape_cast %308 : vector<1x1x16x16xf32> to vector<16x16xf32>
    %c8 = arith.constant 8 : index
    %310 = memref.load %arg3[%c8] : memref<288xf32, #tpu.memory_space<smem>>
    %311 = vector.broadcast %310 : f32 to vector<16x16xf32>
    %312 = arith.mulf %311, %309 : vector<16x16xf32>
    %313 = arith.addf %277, %312 : vector<16x16xf32>
    %c44 = arith.constant 44 : index
    %314 = memref.load %arg3[%c44] : memref<288xf32, #tpu.memory_space<smem>>
    %315 = vector.broadcast %314 : f32 to vector<16x16xf32>
    %316 = arith.mulf %315, %309 : vector<16x16xf32>
    %317 = arith.addf %281, %316 : vector<16x16xf32>
    %c80 = arith.constant 80 : index
    %318 = memref.load %arg3[%c80] : memref<288xf32, #tpu.memory_space<smem>>
    %319 = vector.broadcast %318 : f32 to vector<16x16xf32>
    %320 = arith.mulf %319, %309 : vector<16x16xf32>
    %321 = arith.addf %285, %320 : vector<16x16xf32>
    %c116 = arith.constant 116 : index
    %322 = memref.load %arg3[%c116] : memref<288xf32, #tpu.memory_space<smem>>
    %323 = vector.broadcast %322 : f32 to vector<16x16xf32>
    %324 = arith.mulf %323, %309 : vector<16x16xf32>
    %325 = arith.addf %289, %324 : vector<16x16xf32>
    %c152 = arith.constant 152 : index
    %326 = memref.load %arg3[%c152] : memref<288xf32, #tpu.memory_space<smem>>
    %327 = vector.broadcast %326 : f32 to vector<16x16xf32>
    %328 = arith.mulf %327, %309 : vector<16x16xf32>
    %329 = arith.addf %293, %328 : vector<16x16xf32>
    %c188 = arith.constant 188 : index
    %330 = memref.load %arg3[%c188] : memref<288xf32, #tpu.memory_space<smem>>
    %331 = vector.broadcast %330 : f32 to vector<16x16xf32>
    %332 = arith.mulf %331, %309 : vector<16x16xf32>
    %333 = arith.addf %297, %332 : vector<16x16xf32>
    %c224 = arith.constant 224 : index
    %334 = memref.load %arg3[%c224] : memref<288xf32, #tpu.memory_space<smem>>
    %335 = vector.broadcast %334 : f32 to vector<16x16xf32>
    %336 = arith.mulf %335, %309 : vector<16x16xf32>
    %337 = arith.addf %301, %336 : vector<16x16xf32>
    %c260 = arith.constant 260 : index
    %338 = memref.load %arg3[%c260] : memref<288xf32, #tpu.memory_space<smem>>
    %339 = vector.broadcast %338 : f32 to vector<16x16xf32>
    %340 = arith.mulf %339, %309 : vector<16x16xf32>
    %341 = arith.addf %305, %340 : vector<16x16xf32>
    %c0_i32_41 = arith.constant 0 : i32
    %342 = arith.addi %1, %c0_i32_41 : i32
    %c0_42 = arith.constant 0 : index
    %c1_43 = arith.constant 1 : index
    %343 = arith.index_cast %342 : i32 to index
    %c0_44 = arith.constant 0 : index
    %344 = vector.load %arg2[%c0_42, %c1_43, %343, %c0_44] : memref<1x4x18x18xf32, #tpu.memory_space<vmem>>, vector<1x1x16x16xf32>
    %345 = vector.shape_cast %344 : vector<1x1x16x16xf32> to vector<16x16xf32>
    %c9 = arith.constant 9 : index
    %346 = memref.load %arg3[%c9] : memref<288xf32, #tpu.memory_space<smem>>
    %347 = vector.broadcast %346 : f32 to vector<16x16xf32>
    %348 = arith.mulf %347, %345 : vector<16x16xf32>
    %349 = arith.addf %313, %348 : vector<16x16xf32>
    %c45 = arith.constant 45 : index
    %350 = memref.load %arg3[%c45] : memref<288xf32, #tpu.memory_space<smem>>
    %351 = vector.broadcast %350 : f32 to vector<16x16xf32>
    %352 = arith.mulf %351, %345 : vector<16x16xf32>
    %353 = arith.addf %317, %352 : vector<16x16xf32>
    %c81 = arith.constant 81 : index
    %354 = memref.load %arg3[%c81] : memref<288xf32, #tpu.memory_space<smem>>
    %355 = vector.broadcast %354 : f32 to vector<16x16xf32>
    %356 = arith.mulf %355, %345 : vector<16x16xf32>
    %357 = arith.addf %321, %356 : vector<16x16xf32>
    %c117 = arith.constant 117 : index
    %358 = memref.load %arg3[%c117] : memref<288xf32, #tpu.memory_space<smem>>
    %359 = vector.broadcast %358 : f32 to vector<16x16xf32>
    %360 = arith.mulf %359, %345 : vector<16x16xf32>
    %361 = arith.addf %325, %360 : vector<16x16xf32>
    %c153 = arith.constant 153 : index
    %362 = memref.load %arg3[%c153] : memref<288xf32, #tpu.memory_space<smem>>
    %363 = vector.broadcast %362 : f32 to vector<16x16xf32>
    %364 = arith.mulf %363, %345 : vector<16x16xf32>
    %365 = arith.addf %329, %364 : vector<16x16xf32>
    %c189 = arith.constant 189 : index
    %366 = memref.load %arg3[%c189] : memref<288xf32, #tpu.memory_space<smem>>
    %367 = vector.broadcast %366 : f32 to vector<16x16xf32>
    %368 = arith.mulf %367, %345 : vector<16x16xf32>
    %369 = arith.addf %333, %368 : vector<16x16xf32>
    %c225 = arith.constant 225 : index
    %370 = memref.load %arg3[%c225] : memref<288xf32, #tpu.memory_space<smem>>
    %371 = vector.broadcast %370 : f32 to vector<16x16xf32>
    %372 = arith.mulf %371, %345 : vector<16x16xf32>
    %373 = arith.addf %337, %372 : vector<16x16xf32>
    %c261 = arith.constant 261 : index
    %374 = memref.load %arg3[%c261] : memref<288xf32, #tpu.memory_space<smem>>
    %375 = vector.broadcast %374 : f32 to vector<16x16xf32>
    %376 = arith.mulf %375, %345 : vector<16x16xf32>
    %377 = arith.addf %341, %376 : vector<16x16xf32>
    %c0_i32_45 = arith.constant 0 : i32
    %378 = arith.addi %1, %c0_i32_45 : i32
    %c0_46 = arith.constant 0 : index
    %c1_47 = arith.constant 1 : index
    %379 = arith.index_cast %378 : i32 to index
    %c1_48 = arith.constant 1 : index
    %380 = vector.load %arg2[%c0_46, %c1_47, %379, %c1_48] : memref<1x4x18x18xf32, #tpu.memory_space<vmem>>, vector<1x1x16x16xf32>
    %381 = vector.shape_cast %380 : vector<1x1x16x16xf32> to vector<16x16xf32>
    %c10 = arith.constant 10 : index
    %382 = memref.load %arg3[%c10] : memref<288xf32, #tpu.memory_space<smem>>
    %383 = vector.broadcast %382 : f32 to vector<16x16xf32>
    %384 = arith.mulf %383, %381 : vector<16x16xf32>
    %385 = arith.addf %349, %384 : vector<16x16xf32>
    %c46 = arith.constant 46 : index
    %386 = memref.load %arg3[%c46] : memref<288xf32, #tpu.memory_space<smem>>
    %387 = vector.broadcast %386 : f32 to vector<16x16xf32>
    %388 = arith.mulf %387, %381 : vector<16x16xf32>
    %389 = arith.addf %353, %388 : vector<16x16xf32>
    %c82 = arith.constant 82 : index
    %390 = memref.load %arg3[%c82] : memref<288xf32, #tpu.memory_space<smem>>
    %391 = vector.broadcast %390 : f32 to vector<16x16xf32>
    %392 = arith.mulf %391, %381 : vector<16x16xf32>
    %393 = arith.addf %357, %392 : vector<16x16xf32>
    %c118 = arith.constant 118 : index
    %394 = memref.load %arg3[%c118] : memref<288xf32, #tpu.memory_space<smem>>
    %395 = vector.broadcast %394 : f32 to vector<16x16xf32>
    %396 = arith.mulf %395, %381 : vector<16x16xf32>
    %397 = arith.addf %361, %396 : vector<16x16xf32>
    %c154 = arith.constant 154 : index
    %398 = memref.load %arg3[%c154] : memref<288xf32, #tpu.memory_space<smem>>
    %399 = vector.broadcast %398 : f32 to vector<16x16xf32>
    %400 = arith.mulf %399, %381 : vector<16x16xf32>
    %401 = arith.addf %365, %400 : vector<16x16xf32>
    %c190 = arith.constant 190 : index
    %402 = memref.load %arg3[%c190] : memref<288xf32, #tpu.memory_space<smem>>
    %403 = vector.broadcast %402 : f32 to vector<16x16xf32>
    %404 = arith.mulf %403, %381 : vector<16x16xf32>
    %405 = arith.addf %369, %404 : vector<16x16xf32>
    %c226 = arith.constant 226 : index
    %406 = memref.load %arg3[%c226] : memref<288xf32, #tpu.memory_space<smem>>
    %407 = vector.broadcast %406 : f32 to vector<16x16xf32>
    %408 = arith.mulf %407, %381 : vector<16x16xf32>
    %409 = arith.addf %373, %408 : vector<16x16xf32>
    %c262 = arith.constant 262 : index
    %410 = memref.load %arg3[%c262] : memref<288xf32, #tpu.memory_space<smem>>
    %411 = vector.broadcast %410 : f32 to vector<16x16xf32>
    %412 = arith.mulf %411, %381 : vector<16x16xf32>
    %413 = arith.addf %377, %412 : vector<16x16xf32>
    %c0_i32_49 = arith.constant 0 : i32
    %414 = arith.addi %1, %c0_i32_49 : i32
    %c0_50 = arith.constant 0 : index
    %c1_51 = arith.constant 1 : index
    %415 = arith.index_cast %414 : i32 to index
    %c2_52 = arith.constant 2 : index
    %416 = vector.load %arg2[%c0_50, %c1_51, %415, %c2_52] : memref<1x4x18x18xf32, #tpu.memory_space<vmem>>, vector<1x1x16x16xf32>
    %417 = vector.shape_cast %416 : vector<1x1x16x16xf32> to vector<16x16xf32>
    %c11 = arith.constant 11 : index
    %418 = memref.load %arg3[%c11] : memref<288xf32, #tpu.memory_space<smem>>
    %419 = vector.broadcast %418 : f32 to vector<16x16xf32>
    %420 = arith.mulf %419, %417 : vector<16x16xf32>
    %421 = arith.addf %385, %420 : vector<16x16xf32>
    %c47 = arith.constant 47 : index
    %422 = memref.load %arg3[%c47] : memref<288xf32, #tpu.memory_space<smem>>
    %423 = vector.broadcast %422 : f32 to vector<16x16xf32>
    %424 = arith.mulf %423, %417 : vector<16x16xf32>
    %425 = arith.addf %389, %424 : vector<16x16xf32>
    %c83 = arith.constant 83 : index
    %426 = memref.load %arg3[%c83] : memref<288xf32, #tpu.memory_space<smem>>
    %427 = vector.broadcast %426 : f32 to vector<16x16xf32>
    %428 = arith.mulf %427, %417 : vector<16x16xf32>
    %429 = arith.addf %393, %428 : vector<16x16xf32>
    %c119 = arith.constant 119 : index
    %430 = memref.load %arg3[%c119] : memref<288xf32, #tpu.memory_space<smem>>
    %431 = vector.broadcast %430 : f32 to vector<16x16xf32>
    %432 = arith.mulf %431, %417 : vector<16x16xf32>
    %433 = arith.addf %397, %432 : vector<16x16xf32>
    %c155 = arith.constant 155 : index
    %434 = memref.load %arg3[%c155] : memref<288xf32, #tpu.memory_space<smem>>
    %435 = vector.broadcast %434 : f32 to vector<16x16xf32>
    %436 = arith.mulf %435, %417 : vector<16x16xf32>
    %437 = arith.addf %401, %436 : vector<16x16xf32>
    %c191 = arith.constant 191 : index
    %438 = memref.load %arg3[%c191] : memref<288xf32, #tpu.memory_space<smem>>
    %439 = vector.broadcast %438 : f32 to vector<16x16xf32>
    %440 = arith.mulf %439, %417 : vector<16x16xf32>
    %441 = arith.addf %405, %440 : vector<16x16xf32>
    %c227 = arith.constant 227 : index
    %442 = memref.load %arg3[%c227] : memref<288xf32, #tpu.memory_space<smem>>
    %443 = vector.broadcast %442 : f32 to vector<16x16xf32>
    %444 = arith.mulf %443, %417 : vector<16x16xf32>
    %445 = arith.addf %409, %444 : vector<16x16xf32>
    %c263 = arith.constant 263 : index
    %446 = memref.load %arg3[%c263] : memref<288xf32, #tpu.memory_space<smem>>
    %447 = vector.broadcast %446 : f32 to vector<16x16xf32>
    %448 = arith.mulf %447, %417 : vector<16x16xf32>
    %449 = arith.addf %413, %448 : vector<16x16xf32>
    %c1_i32_53 = arith.constant 1 : i32
    %450 = arith.addi %1, %c1_i32_53 : i32
    %c0_54 = arith.constant 0 : index
    %c1_55 = arith.constant 1 : index
    %451 = arith.index_cast %450 : i32 to index
    %c0_56 = arith.constant 0 : index
    %452 = vector.load %arg2[%c0_54, %c1_55, %451, %c0_56] : memref<1x4x18x18xf32, #tpu.memory_space<vmem>>, vector<1x1x16x16xf32>
    %453 = vector.shape_cast %452 : vector<1x1x16x16xf32> to vector<16x16xf32>
    %c12 = arith.constant 12 : index
    %454 = memref.load %arg3[%c12] : memref<288xf32, #tpu.memory_space<smem>>
    %455 = vector.broadcast %454 : f32 to vector<16x16xf32>
    %456 = arith.mulf %455, %453 : vector<16x16xf32>
    %457 = arith.addf %421, %456 : vector<16x16xf32>
    %c48 = arith.constant 48 : index
    %458 = memref.load %arg3[%c48] : memref<288xf32, #tpu.memory_space<smem>>
    %459 = vector.broadcast %458 : f32 to vector<16x16xf32>
    %460 = arith.mulf %459, %453 : vector<16x16xf32>
    %461 = arith.addf %425, %460 : vector<16x16xf32>
    %c84 = arith.constant 84 : index
    %462 = memref.load %arg3[%c84] : memref<288xf32, #tpu.memory_space<smem>>
    %463 = vector.broadcast %462 : f32 to vector<16x16xf32>
    %464 = arith.mulf %463, %453 : vector<16x16xf32>
    %465 = arith.addf %429, %464 : vector<16x16xf32>
    %c120 = arith.constant 120 : index
    %466 = memref.load %arg3[%c120] : memref<288xf32, #tpu.memory_space<smem>>
    %467 = vector.broadcast %466 : f32 to vector<16x16xf32>
    %468 = arith.mulf %467, %453 : vector<16x16xf32>
    %469 = arith.addf %433, %468 : vector<16x16xf32>
    %c156 = arith.constant 156 : index
    %470 = memref.load %arg3[%c156] : memref<288xf32, #tpu.memory_space<smem>>
    %471 = vector.broadcast %470 : f32 to vector<16x16xf32>
    %472 = arith.mulf %471, %453 : vector<16x16xf32>
    %473 = arith.addf %437, %472 : vector<16x16xf32>
    %c192 = arith.constant 192 : index
    %474 = memref.load %arg3[%c192] : memref<288xf32, #tpu.memory_space<smem>>
    %475 = vector.broadcast %474 : f32 to vector<16x16xf32>
    %476 = arith.mulf %475, %453 : vector<16x16xf32>
    %477 = arith.addf %441, %476 : vector<16x16xf32>
    %c228 = arith.constant 228 : index
    %478 = memref.load %arg3[%c228] : memref<288xf32, #tpu.memory_space<smem>>
    %479 = vector.broadcast %478 : f32 to vector<16x16xf32>
    %480 = arith.mulf %479, %453 : vector<16x16xf32>
    %481 = arith.addf %445, %480 : vector<16x16xf32>
    %c264 = arith.constant 264 : index
    %482 = memref.load %arg3[%c264] : memref<288xf32, #tpu.memory_space<smem>>
    %483 = vector.broadcast %482 : f32 to vector<16x16xf32>
    %484 = arith.mulf %483, %453 : vector<16x16xf32>
    %485 = arith.addf %449, %484 : vector<16x16xf32>
    %c1_i32_57 = arith.constant 1 : i32
    %486 = arith.addi %1, %c1_i32_57 : i32
    %c0_58 = arith.constant 0 : index
    %c1_59 = arith.constant 1 : index
    %487 = arith.index_cast %486 : i32 to index
    %c1_60 = arith.constant 1 : index
    %488 = vector.load %arg2[%c0_58, %c1_59, %487, %c1_60] : memref<1x4x18x18xf32, #tpu.memory_space<vmem>>, vector<1x1x16x16xf32>
    %489 = vector.shape_cast %488 : vector<1x1x16x16xf32> to vector<16x16xf32>
    %c13 = arith.constant 13 : index
    %490 = memref.load %arg3[%c13] : memref<288xf32, #tpu.memory_space<smem>>
    %491 = vector.broadcast %490 : f32 to vector<16x16xf32>
    %492 = arith.mulf %491, %489 : vector<16x16xf32>
    %493 = arith.addf %457, %492 : vector<16x16xf32>
    %c49 = arith.constant 49 : index
    %494 = memref.load %arg3[%c49] : memref<288xf32, #tpu.memory_space<smem>>
    %495 = vector.broadcast %494 : f32 to vector<16x16xf32>
    %496 = arith.mulf %495, %489 : vector<16x16xf32>
    %497 = arith.addf %461, %496 : vector<16x16xf32>
    %c85 = arith.constant 85 : index
    %498 = memref.load %arg3[%c85] : memref<288xf32, #tpu.memory_space<smem>>
    %499 = vector.broadcast %498 : f32 to vector<16x16xf32>
    %500 = arith.mulf %499, %489 : vector<16x16xf32>
    %501 = arith.addf %465, %500 : vector<16x16xf32>
    %c121 = arith.constant 121 : index
    %502 = memref.load %arg3[%c121] : memref<288xf32, #tpu.memory_space<smem>>
    %503 = vector.broadcast %502 : f32 to vector<16x16xf32>
    %504 = arith.mulf %503, %489 : vector<16x16xf32>
    %505 = arith.addf %469, %504 : vector<16x16xf32>
    %c157 = arith.constant 157 : index
    %506 = memref.load %arg3[%c157] : memref<288xf32, #tpu.memory_space<smem>>
    %507 = vector.broadcast %506 : f32 to vector<16x16xf32>
    %508 = arith.mulf %507, %489 : vector<16x16xf32>
    %509 = arith.addf %473, %508 : vector<16x16xf32>
    %c193 = arith.constant 193 : index
    %510 = memref.load %arg3[%c193] : memref<288xf32, #tpu.memory_space<smem>>
    %511 = vector.broadcast %510 : f32 to vector<16x16xf32>
    %512 = arith.mulf %511, %489 : vector<16x16xf32>
    %513 = arith.addf %477, %512 : vector<16x16xf32>
    %c229 = arith.constant 229 : index
    %514 = memref.load %arg3[%c229] : memref<288xf32, #tpu.memory_space<smem>>
    %515 = vector.broadcast %514 : f32 to vector<16x16xf32>
    %516 = arith.mulf %515, %489 : vector<16x16xf32>
    %517 = arith.addf %481, %516 : vector<16x16xf32>
    %c265 = arith.constant 265 : index
    %518 = memref.load %arg3[%c265] : memref<288xf32, #tpu.memory_space<smem>>
    %519 = vector.broadcast %518 : f32 to vector<16x16xf32>
    %520 = arith.mulf %519, %489 : vector<16x16xf32>
    %521 = arith.addf %485, %520 : vector<16x16xf32>
    %c1_i32_61 = arith.constant 1 : i32
    %522 = arith.addi %1, %c1_i32_61 : i32
    %c0_62 = arith.constant 0 : index
    %c1_63 = arith.constant 1 : index
    %523 = arith.index_cast %522 : i32 to index
    %c2_64 = arith.constant 2 : index
    %524 = vector.load %arg2[%c0_62, %c1_63, %523, %c2_64] : memref<1x4x18x18xf32, #tpu.memory_space<vmem>>, vector<1x1x16x16xf32>
    %525 = vector.shape_cast %524 : vector<1x1x16x16xf32> to vector<16x16xf32>
    %c14 = arith.constant 14 : index
    %526 = memref.load %arg3[%c14] : memref<288xf32, #tpu.memory_space<smem>>
    %527 = vector.broadcast %526 : f32 to vector<16x16xf32>
    %528 = arith.mulf %527, %525 : vector<16x16xf32>
    %529 = arith.addf %493, %528 : vector<16x16xf32>
    %c50 = arith.constant 50 : index
    %530 = memref.load %arg3[%c50] : memref<288xf32, #tpu.memory_space<smem>>
    %531 = vector.broadcast %530 : f32 to vector<16x16xf32>
    %532 = arith.mulf %531, %525 : vector<16x16xf32>
    %533 = arith.addf %497, %532 : vector<16x16xf32>
    %c86 = arith.constant 86 : index
    %534 = memref.load %arg3[%c86] : memref<288xf32, #tpu.memory_space<smem>>
    %535 = vector.broadcast %534 : f32 to vector<16x16xf32>
    %536 = arith.mulf %535, %525 : vector<16x16xf32>
    %537 = arith.addf %501, %536 : vector<16x16xf32>
    %c122 = arith.constant 122 : index
    %538 = memref.load %arg3[%c122] : memref<288xf32, #tpu.memory_space<smem>>
    %539 = vector.broadcast %538 : f32 to vector<16x16xf32>
    %540 = arith.mulf %539, %525 : vector<16x16xf32>
    %541 = arith.addf %505, %540 : vector<16x16xf32>
    %c158 = arith.constant 158 : index
    %542 = memref.load %arg3[%c158] : memref<288xf32, #tpu.memory_space<smem>>
    %543 = vector.broadcast %542 : f32 to vector<16x16xf32>
    %544 = arith.mulf %543, %525 : vector<16x16xf32>
    %545 = arith.addf %509, %544 : vector<16x16xf32>
    %c194 = arith.constant 194 : index
    %546 = memref.load %arg3[%c194] : memref<288xf32, #tpu.memory_space<smem>>
    %547 = vector.broadcast %546 : f32 to vector<16x16xf32>
    %548 = arith.mulf %547, %525 : vector<16x16xf32>
    %549 = arith.addf %513, %548 : vector<16x16xf32>
    %c230 = arith.constant 230 : index
    %550 = memref.load %arg3[%c230] : memref<288xf32, #tpu.memory_space<smem>>
    %551 = vector.broadcast %550 : f32 to vector<16x16xf32>
    %552 = arith.mulf %551, %525 : vector<16x16xf32>
    %553 = arith.addf %517, %552 : vector<16x16xf32>
    %c266 = arith.constant 266 : index
    %554 = memref.load %arg3[%c266] : memref<288xf32, #tpu.memory_space<smem>>
    %555 = vector.broadcast %554 : f32 to vector<16x16xf32>
    %556 = arith.mulf %555, %525 : vector<16x16xf32>
    %557 = arith.addf %521, %556 : vector<16x16xf32>
    %c2_i32_65 = arith.constant 2 : i32
    %558 = arith.addi %1, %c2_i32_65 : i32
    %c0_66 = arith.constant 0 : index
    %c1_67 = arith.constant 1 : index
    %559 = arith.index_cast %558 : i32 to index
    %c0_68 = arith.constant 0 : index
    %560 = vector.load %arg2[%c0_66, %c1_67, %559, %c0_68] : memref<1x4x18x18xf32, #tpu.memory_space<vmem>>, vector<1x1x16x16xf32>
    %561 = vector.shape_cast %560 : vector<1x1x16x16xf32> to vector<16x16xf32>
    %c15 = arith.constant 15 : index
    %562 = memref.load %arg3[%c15] : memref<288xf32, #tpu.memory_space<smem>>
    %563 = vector.broadcast %562 : f32 to vector<16x16xf32>
    %564 = arith.mulf %563, %561 : vector<16x16xf32>
    %565 = arith.addf %529, %564 : vector<16x16xf32>
    %c51 = arith.constant 51 : index
    %566 = memref.load %arg3[%c51] : memref<288xf32, #tpu.memory_space<smem>>
    %567 = vector.broadcast %566 : f32 to vector<16x16xf32>
    %568 = arith.mulf %567, %561 : vector<16x16xf32>
    %569 = arith.addf %533, %568 : vector<16x16xf32>
    %c87 = arith.constant 87 : index
    %570 = memref.load %arg3[%c87] : memref<288xf32, #tpu.memory_space<smem>>
    %571 = vector.broadcast %570 : f32 to vector<16x16xf32>
    %572 = arith.mulf %571, %561 : vector<16x16xf32>
    %573 = arith.addf %537, %572 : vector<16x16xf32>
    %c123 = arith.constant 123 : index
    %574 = memref.load %arg3[%c123] : memref<288xf32, #tpu.memory_space<smem>>
    %575 = vector.broadcast %574 : f32 to vector<16x16xf32>
    %576 = arith.mulf %575, %561 : vector<16x16xf32>
    %577 = arith.addf %541, %576 : vector<16x16xf32>
    %c159 = arith.constant 159 : index
    %578 = memref.load %arg3[%c159] : memref<288xf32, #tpu.memory_space<smem>>
    %579 = vector.broadcast %578 : f32 to vector<16x16xf32>
    %580 = arith.mulf %579, %561 : vector<16x16xf32>
    %581 = arith.addf %545, %580 : vector<16x16xf32>
    %c195 = arith.constant 195 : index
    %582 = memref.load %arg3[%c195] : memref<288xf32, #tpu.memory_space<smem>>
    %583 = vector.broadcast %582 : f32 to vector<16x16xf32>
    %584 = arith.mulf %583, %561 : vector<16x16xf32>
    %585 = arith.addf %549, %584 : vector<16x16xf32>
    %c231 = arith.constant 231 : index
    %586 = memref.load %arg3[%c231] : memref<288xf32, #tpu.memory_space<smem>>
    %587 = vector.broadcast %586 : f32 to vector<16x16xf32>
    %588 = arith.mulf %587, %561 : vector<16x16xf32>
    %589 = arith.addf %553, %588 : vector<16x16xf32>
    %c267 = arith.constant 267 : index
    %590 = memref.load %arg3[%c267] : memref<288xf32, #tpu.memory_space<smem>>
    %591 = vector.broadcast %590 : f32 to vector<16x16xf32>
    %592 = arith.mulf %591, %561 : vector<16x16xf32>
    %593 = arith.addf %557, %592 : vector<16x16xf32>
    %c2_i32_69 = arith.constant 2 : i32
    %594 = arith.addi %1, %c2_i32_69 : i32
    %c0_70 = arith.constant 0 : index
    %c1_71 = arith.constant 1 : index
    %595 = arith.index_cast %594 : i32 to index
    %c1_72 = arith.constant 1 : index
    %596 = vector.load %arg2[%c0_70, %c1_71, %595, %c1_72] : memref<1x4x18x18xf32, #tpu.memory_space<vmem>>, vector<1x1x16x16xf32>
    %597 = vector.shape_cast %596 : vector<1x1x16x16xf32> to vector<16x16xf32>
    %c16 = arith.constant 16 : index
    %598 = memref.load %arg3[%c16] : memref<288xf32, #tpu.memory_space<smem>>
    %599 = vector.broadcast %598 : f32 to vector<16x16xf32>
    %600 = arith.mulf %599, %597 : vector<16x16xf32>
    %601 = arith.addf %565, %600 : vector<16x16xf32>
    %c52 = arith.constant 52 : index
    %602 = memref.load %arg3[%c52] : memref<288xf32, #tpu.memory_space<smem>>
    %603 = vector.broadcast %602 : f32 to vector<16x16xf32>
    %604 = arith.mulf %603, %597 : vector<16x16xf32>
    %605 = arith.addf %569, %604 : vector<16x16xf32>
    %c88 = arith.constant 88 : index
    %606 = memref.load %arg3[%c88] : memref<288xf32, #tpu.memory_space<smem>>
    %607 = vector.broadcast %606 : f32 to vector<16x16xf32>
    %608 = arith.mulf %607, %597 : vector<16x16xf32>
    %609 = arith.addf %573, %608 : vector<16x16xf32>
    %c124 = arith.constant 124 : index
    %610 = memref.load %arg3[%c124] : memref<288xf32, #tpu.memory_space<smem>>
    %611 = vector.broadcast %610 : f32 to vector<16x16xf32>
    %612 = arith.mulf %611, %597 : vector<16x16xf32>
    %613 = arith.addf %577, %612 : vector<16x16xf32>
    %c160 = arith.constant 160 : index
    %614 = memref.load %arg3[%c160] : memref<288xf32, #tpu.memory_space<smem>>
    %615 = vector.broadcast %614 : f32 to vector<16x16xf32>
    %616 = arith.mulf %615, %597 : vector<16x16xf32>
    %617 = arith.addf %581, %616 : vector<16x16xf32>
    %c196 = arith.constant 196 : index
    %618 = memref.load %arg3[%c196] : memref<288xf32, #tpu.memory_space<smem>>
    %619 = vector.broadcast %618 : f32 to vector<16x16xf32>
    %620 = arith.mulf %619, %597 : vector<16x16xf32>
    %621 = arith.addf %585, %620 : vector<16x16xf32>
    %c232 = arith.constant 232 : index
    %622 = memref.load %arg3[%c232] : memref<288xf32, #tpu.memory_space<smem>>
    %623 = vector.broadcast %622 : f32 to vector<16x16xf32>
    %624 = arith.mulf %623, %597 : vector<16x16xf32>
    %625 = arith.addf %589, %624 : vector<16x16xf32>
    %c268 = arith.constant 268 : index
    %626 = memref.load %arg3[%c268] : memref<288xf32, #tpu.memory_space<smem>>
    %627 = vector.broadcast %626 : f32 to vector<16x16xf32>
    %628 = arith.mulf %627, %597 : vector<16x16xf32>
    %629 = arith.addf %593, %628 : vector<16x16xf32>
    %c2_i32_73 = arith.constant 2 : i32
    %630 = arith.addi %1, %c2_i32_73 : i32
    %c0_74 = arith.constant 0 : index
    %c1_75 = arith.constant 1 : index
    %631 = arith.index_cast %630 : i32 to index
    %c2_76 = arith.constant 2 : index
    %632 = vector.load %arg2[%c0_74, %c1_75, %631, %c2_76] : memref<1x4x18x18xf32, #tpu.memory_space<vmem>>, vector<1x1x16x16xf32>
    %633 = vector.shape_cast %632 : vector<1x1x16x16xf32> to vector<16x16xf32>
    %c17 = arith.constant 17 : index
    %634 = memref.load %arg3[%c17] : memref<288xf32, #tpu.memory_space<smem>>
    %635 = vector.broadcast %634 : f32 to vector<16x16xf32>
    %636 = arith.mulf %635, %633 : vector<16x16xf32>
    %637 = arith.addf %601, %636 : vector<16x16xf32>
    %c53 = arith.constant 53 : index
    %638 = memref.load %arg3[%c53] : memref<288xf32, #tpu.memory_space<smem>>
    %639 = vector.broadcast %638 : f32 to vector<16x16xf32>
    %640 = arith.mulf %639, %633 : vector<16x16xf32>
    %641 = arith.addf %605, %640 : vector<16x16xf32>
    %c89 = arith.constant 89 : index
    %642 = memref.load %arg3[%c89] : memref<288xf32, #tpu.memory_space<smem>>
    %643 = vector.broadcast %642 : f32 to vector<16x16xf32>
    %644 = arith.mulf %643, %633 : vector<16x16xf32>
    %645 = arith.addf %609, %644 : vector<16x16xf32>
    %c125 = arith.constant 125 : index
    %646 = memref.load %arg3[%c125] : memref<288xf32, #tpu.memory_space<smem>>
    %647 = vector.broadcast %646 : f32 to vector<16x16xf32>
    %648 = arith.mulf %647, %633 : vector<16x16xf32>
    %649 = arith.addf %613, %648 : vector<16x16xf32>
    %c161 = arith.constant 161 : index
    %650 = memref.load %arg3[%c161] : memref<288xf32, #tpu.memory_space<smem>>
    %651 = vector.broadcast %650 : f32 to vector<16x16xf32>
    %652 = arith.mulf %651, %633 : vector<16x16xf32>
    %653 = arith.addf %617, %652 : vector<16x16xf32>
    %c197 = arith.constant 197 : index
    %654 = memref.load %arg3[%c197] : memref<288xf32, #tpu.memory_space<smem>>
    %655 = vector.broadcast %654 : f32 to vector<16x16xf32>
    %656 = arith.mulf %655, %633 : vector<16x16xf32>
    %657 = arith.addf %621, %656 : vector<16x16xf32>
    %c233 = arith.constant 233 : index
    %658 = memref.load %arg3[%c233] : memref<288xf32, #tpu.memory_space<smem>>
    %659 = vector.broadcast %658 : f32 to vector<16x16xf32>
    %660 = arith.mulf %659, %633 : vector<16x16xf32>
    %661 = arith.addf %625, %660 : vector<16x16xf32>
    %c269 = arith.constant 269 : index
    %662 = memref.load %arg3[%c269] : memref<288xf32, #tpu.memory_space<smem>>
    %663 = vector.broadcast %662 : f32 to vector<16x16xf32>
    %664 = arith.mulf %663, %633 : vector<16x16xf32>
    %665 = arith.addf %629, %664 : vector<16x16xf32>
    %c0_i32_77 = arith.constant 0 : i32
    %666 = arith.addi %1, %c0_i32_77 : i32
    %c0_78 = arith.constant 0 : index
    %c2_79 = arith.constant 2 : index
    %667 = arith.index_cast %666 : i32 to index
    %c0_80 = arith.constant 0 : index
    %668 = vector.load %arg2[%c0_78, %c2_79, %667, %c0_80] : memref<1x4x18x18xf32, #tpu.memory_space<vmem>>, vector<1x1x16x16xf32>
    %669 = vector.shape_cast %668 : vector<1x1x16x16xf32> to vector<16x16xf32>
    %c18 = arith.constant 18 : index
    %670 = memref.load %arg3[%c18] : memref<288xf32, #tpu.memory_space<smem>>
    %671 = vector.broadcast %670 : f32 to vector<16x16xf32>
    %672 = arith.mulf %671, %669 : vector<16x16xf32>
    %673 = arith.addf %637, %672 : vector<16x16xf32>
    %c54 = arith.constant 54 : index
    %674 = memref.load %arg3[%c54] : memref<288xf32, #tpu.memory_space<smem>>
    %675 = vector.broadcast %674 : f32 to vector<16x16xf32>
    %676 = arith.mulf %675, %669 : vector<16x16xf32>
    %677 = arith.addf %641, %676 : vector<16x16xf32>
    %c90 = arith.constant 90 : index
    %678 = memref.load %arg3[%c90] : memref<288xf32, #tpu.memory_space<smem>>
    %679 = vector.broadcast %678 : f32 to vector<16x16xf32>
    %680 = arith.mulf %679, %669 : vector<16x16xf32>
    %681 = arith.addf %645, %680 : vector<16x16xf32>
    %c126 = arith.constant 126 : index
    %682 = memref.load %arg3[%c126] : memref<288xf32, #tpu.memory_space<smem>>
    %683 = vector.broadcast %682 : f32 to vector<16x16xf32>
    %684 = arith.mulf %683, %669 : vector<16x16xf32>
    %685 = arith.addf %649, %684 : vector<16x16xf32>
    %c162 = arith.constant 162 : index
    %686 = memref.load %arg3[%c162] : memref<288xf32, #tpu.memory_space<smem>>
    %687 = vector.broadcast %686 : f32 to vector<16x16xf32>
    %688 = arith.mulf %687, %669 : vector<16x16xf32>
    %689 = arith.addf %653, %688 : vector<16x16xf32>
    %c198 = arith.constant 198 : index
    %690 = memref.load %arg3[%c198] : memref<288xf32, #tpu.memory_space<smem>>
    %691 = vector.broadcast %690 : f32 to vector<16x16xf32>
    %692 = arith.mulf %691, %669 : vector<16x16xf32>
    %693 = arith.addf %657, %692 : vector<16x16xf32>
    %c234 = arith.constant 234 : index
    %694 = memref.load %arg3[%c234] : memref<288xf32, #tpu.memory_space<smem>>
    %695 = vector.broadcast %694 : f32 to vector<16x16xf32>
    %696 = arith.mulf %695, %669 : vector<16x16xf32>
    %697 = arith.addf %661, %696 : vector<16x16xf32>
    %c270 = arith.constant 270 : index
    %698 = memref.load %arg3[%c270] : memref<288xf32, #tpu.memory_space<smem>>
    %699 = vector.broadcast %698 : f32 to vector<16x16xf32>
    %700 = arith.mulf %699, %669 : vector<16x16xf32>
    %701 = arith.addf %665, %700 : vector<16x16xf32>
    %c0_i32_81 = arith.constant 0 : i32
    %702 = arith.addi %1, %c0_i32_81 : i32
    %c0_82 = arith.constant 0 : index
    %c2_83 = arith.constant 2 : index
    %703 = arith.index_cast %702 : i32 to index
    %c1_84 = arith.constant 1 : index
    %704 = vector.load %arg2[%c0_82, %c2_83, %703, %c1_84] : memref<1x4x18x18xf32, #tpu.memory_space<vmem>>, vector<1x1x16x16xf32>
    %705 = vector.shape_cast %704 : vector<1x1x16x16xf32> to vector<16x16xf32>
    %c19 = arith.constant 19 : index
    %706 = memref.load %arg3[%c19] : memref<288xf32, #tpu.memory_space<smem>>
    %707 = vector.broadcast %706 : f32 to vector<16x16xf32>
    %708 = arith.mulf %707, %705 : vector<16x16xf32>
    %709 = arith.addf %673, %708 : vector<16x16xf32>
    %c55 = arith.constant 55 : index
    %710 = memref.load %arg3[%c55] : memref<288xf32, #tpu.memory_space<smem>>
    %711 = vector.broadcast %710 : f32 to vector<16x16xf32>
    %712 = arith.mulf %711, %705 : vector<16x16xf32>
    %713 = arith.addf %677, %712 : vector<16x16xf32>
    %c91 = arith.constant 91 : index
    %714 = memref.load %arg3[%c91] : memref<288xf32, #tpu.memory_space<smem>>
    %715 = vector.broadcast %714 : f32 to vector<16x16xf32>
    %716 = arith.mulf %715, %705 : vector<16x16xf32>
    %717 = arith.addf %681, %716 : vector<16x16xf32>
    %c127 = arith.constant 127 : index
    %718 = memref.load %arg3[%c127] : memref<288xf32, #tpu.memory_space<smem>>
    %719 = vector.broadcast %718 : f32 to vector<16x16xf32>
    %720 = arith.mulf %719, %705 : vector<16x16xf32>
    %721 = arith.addf %685, %720 : vector<16x16xf32>
    %c163 = arith.constant 163 : index
    %722 = memref.load %arg3[%c163] : memref<288xf32, #tpu.memory_space<smem>>
    %723 = vector.broadcast %722 : f32 to vector<16x16xf32>
    %724 = arith.mulf %723, %705 : vector<16x16xf32>
    %725 = arith.addf %689, %724 : vector<16x16xf32>
    %c199 = arith.constant 199 : index
    %726 = memref.load %arg3[%c199] : memref<288xf32, #tpu.memory_space<smem>>
    %727 = vector.broadcast %726 : f32 to vector<16x16xf32>
    %728 = arith.mulf %727, %705 : vector<16x16xf32>
    %729 = arith.addf %693, %728 : vector<16x16xf32>
    %c235 = arith.constant 235 : index
    %730 = memref.load %arg3[%c235] : memref<288xf32, #tpu.memory_space<smem>>
    %731 = vector.broadcast %730 : f32 to vector<16x16xf32>
    %732 = arith.mulf %731, %705 : vector<16x16xf32>
    %733 = arith.addf %697, %732 : vector<16x16xf32>
    %c271 = arith.constant 271 : index
    %734 = memref.load %arg3[%c271] : memref<288xf32, #tpu.memory_space<smem>>
    %735 = vector.broadcast %734 : f32 to vector<16x16xf32>
    %736 = arith.mulf %735, %705 : vector<16x16xf32>
    %737 = arith.addf %701, %736 : vector<16x16xf32>
    %c0_i32_85 = arith.constant 0 : i32
    %738 = arith.addi %1, %c0_i32_85 : i32
    %c0_86 = arith.constant 0 : index
    %c2_87 = arith.constant 2 : index
    %739 = arith.index_cast %738 : i32 to index
    %c2_88 = arith.constant 2 : index
    %740 = vector.load %arg2[%c0_86, %c2_87, %739, %c2_88] : memref<1x4x18x18xf32, #tpu.memory_space<vmem>>, vector<1x1x16x16xf32>
    %741 = vector.shape_cast %740 : vector<1x1x16x16xf32> to vector<16x16xf32>
    %c20 = arith.constant 20 : index
    %742 = memref.load %arg3[%c20] : memref<288xf32, #tpu.memory_space<smem>>
    %743 = vector.broadcast %742 : f32 to vector<16x16xf32>
    %744 = arith.mulf %743, %741 : vector<16x16xf32>
    %745 = arith.addf %709, %744 : vector<16x16xf32>
    %c56 = arith.constant 56 : index
    %746 = memref.load %arg3[%c56] : memref<288xf32, #tpu.memory_space<smem>>
    %747 = vector.broadcast %746 : f32 to vector<16x16xf32>
    %748 = arith.mulf %747, %741 : vector<16x16xf32>
    %749 = arith.addf %713, %748 : vector<16x16xf32>
    %c92 = arith.constant 92 : index
    %750 = memref.load %arg3[%c92] : memref<288xf32, #tpu.memory_space<smem>>
    %751 = vector.broadcast %750 : f32 to vector<16x16xf32>
    %752 = arith.mulf %751, %741 : vector<16x16xf32>
    %753 = arith.addf %717, %752 : vector<16x16xf32>
    %c128 = arith.constant 128 : index
    %754 = memref.load %arg3[%c128] : memref<288xf32, #tpu.memory_space<smem>>
    %755 = vector.broadcast %754 : f32 to vector<16x16xf32>
    %756 = arith.mulf %755, %741 : vector<16x16xf32>
    %757 = arith.addf %721, %756 : vector<16x16xf32>
    %c164 = arith.constant 164 : index
    %758 = memref.load %arg3[%c164] : memref<288xf32, #tpu.memory_space<smem>>
    %759 = vector.broadcast %758 : f32 to vector<16x16xf32>
    %760 = arith.mulf %759, %741 : vector<16x16xf32>
    %761 = arith.addf %725, %760 : vector<16x16xf32>
    %c200 = arith.constant 200 : index
    %762 = memref.load %arg3[%c200] : memref<288xf32, #tpu.memory_space<smem>>
    %763 = vector.broadcast %762 : f32 to vector<16x16xf32>
    %764 = arith.mulf %763, %741 : vector<16x16xf32>
    %765 = arith.addf %729, %764 : vector<16x16xf32>
    %c236 = arith.constant 236 : index
    %766 = memref.load %arg3[%c236] : memref<288xf32, #tpu.memory_space<smem>>
    %767 = vector.broadcast %766 : f32 to vector<16x16xf32>
    %768 = arith.mulf %767, %741 : vector<16x16xf32>
    %769 = arith.addf %733, %768 : vector<16x16xf32>
    %c272 = arith.constant 272 : index
    %770 = memref.load %arg3[%c272] : memref<288xf32, #tpu.memory_space<smem>>
    %771 = vector.broadcast %770 : f32 to vector<16x16xf32>
    %772 = arith.mulf %771, %741 : vector<16x16xf32>
    %773 = arith.addf %737, %772 : vector<16x16xf32>
    %c1_i32_89 = arith.constant 1 : i32
    %774 = arith.addi %1, %c1_i32_89 : i32
    %c0_90 = arith.constant 0 : index
    %c2_91 = arith.constant 2 : index
    %775 = arith.index_cast %774 : i32 to index
    %c0_92 = arith.constant 0 : index
    %776 = vector.load %arg2[%c0_90, %c2_91, %775, %c0_92] : memref<1x4x18x18xf32, #tpu.memory_space<vmem>>, vector<1x1x16x16xf32>
    %777 = vector.shape_cast %776 : vector<1x1x16x16xf32> to vector<16x16xf32>
    %c21 = arith.constant 21 : index
    %778 = memref.load %arg3[%c21] : memref<288xf32, #tpu.memory_space<smem>>
    %779 = vector.broadcast %778 : f32 to vector<16x16xf32>
    %780 = arith.mulf %779, %777 : vector<16x16xf32>
    %781 = arith.addf %745, %780 : vector<16x16xf32>
    %c57 = arith.constant 57 : index
    %782 = memref.load %arg3[%c57] : memref<288xf32, #tpu.memory_space<smem>>
    %783 = vector.broadcast %782 : f32 to vector<16x16xf32>
    %784 = arith.mulf %783, %777 : vector<16x16xf32>
    %785 = arith.addf %749, %784 : vector<16x16xf32>
    %c93 = arith.constant 93 : index
    %786 = memref.load %arg3[%c93] : memref<288xf32, #tpu.memory_space<smem>>
    %787 = vector.broadcast %786 : f32 to vector<16x16xf32>
    %788 = arith.mulf %787, %777 : vector<16x16xf32>
    %789 = arith.addf %753, %788 : vector<16x16xf32>
    %c129 = arith.constant 129 : index
    %790 = memref.load %arg3[%c129] : memref<288xf32, #tpu.memory_space<smem>>
    %791 = vector.broadcast %790 : f32 to vector<16x16xf32>
    %792 = arith.mulf %791, %777 : vector<16x16xf32>
    %793 = arith.addf %757, %792 : vector<16x16xf32>
    %c165 = arith.constant 165 : index
    %794 = memref.load %arg3[%c165] : memref<288xf32, #tpu.memory_space<smem>>
    %795 = vector.broadcast %794 : f32 to vector<16x16xf32>
    %796 = arith.mulf %795, %777 : vector<16x16xf32>
    %797 = arith.addf %761, %796 : vector<16x16xf32>
    %c201 = arith.constant 201 : index
    %798 = memref.load %arg3[%c201] : memref<288xf32, #tpu.memory_space<smem>>
    %799 = vector.broadcast %798 : f32 to vector<16x16xf32>
    %800 = arith.mulf %799, %777 : vector<16x16xf32>
    %801 = arith.addf %765, %800 : vector<16x16xf32>
    %c237 = arith.constant 237 : index
    %802 = memref.load %arg3[%c237] : memref<288xf32, #tpu.memory_space<smem>>
    %803 = vector.broadcast %802 : f32 to vector<16x16xf32>
    %804 = arith.mulf %803, %777 : vector<16x16xf32>
    %805 = arith.addf %769, %804 : vector<16x16xf32>
    %c273 = arith.constant 273 : index
    %806 = memref.load %arg3[%c273] : memref<288xf32, #tpu.memory_space<smem>>
    %807 = vector.broadcast %806 : f32 to vector<16x16xf32>
    %808 = arith.mulf %807, %777 : vector<16x16xf32>
    %809 = arith.addf %773, %808 : vector<16x16xf32>
    %c1_i32_93 = arith.constant 1 : i32
    %810 = arith.addi %1, %c1_i32_93 : i32
    %c0_94 = arith.constant 0 : index
    %c2_95 = arith.constant 2 : index
    %811 = arith.index_cast %810 : i32 to index
    %c1_96 = arith.constant 1 : index
    %812 = vector.load %arg2[%c0_94, %c2_95, %811, %c1_96] : memref<1x4x18x18xf32, #tpu.memory_space<vmem>>, vector<1x1x16x16xf32>
    %813 = vector.shape_cast %812 : vector<1x1x16x16xf32> to vector<16x16xf32>
    %c22 = arith.constant 22 : index
    %814 = memref.load %arg3[%c22] : memref<288xf32, #tpu.memory_space<smem>>
    %815 = vector.broadcast %814 : f32 to vector<16x16xf32>
    %816 = arith.mulf %815, %813 : vector<16x16xf32>
    %817 = arith.addf %781, %816 : vector<16x16xf32>
    %c58 = arith.constant 58 : index
    %818 = memref.load %arg3[%c58] : memref<288xf32, #tpu.memory_space<smem>>
    %819 = vector.broadcast %818 : f32 to vector<16x16xf32>
    %820 = arith.mulf %819, %813 : vector<16x16xf32>
    %821 = arith.addf %785, %820 : vector<16x16xf32>
    %c94 = arith.constant 94 : index
    %822 = memref.load %arg3[%c94] : memref<288xf32, #tpu.memory_space<smem>>
    %823 = vector.broadcast %822 : f32 to vector<16x16xf32>
    %824 = arith.mulf %823, %813 : vector<16x16xf32>
    %825 = arith.addf %789, %824 : vector<16x16xf32>
    %c130 = arith.constant 130 : index
    %826 = memref.load %arg3[%c130] : memref<288xf32, #tpu.memory_space<smem>>
    %827 = vector.broadcast %826 : f32 to vector<16x16xf32>
    %828 = arith.mulf %827, %813 : vector<16x16xf32>
    %829 = arith.addf %793, %828 : vector<16x16xf32>
    %c166 = arith.constant 166 : index
    %830 = memref.load %arg3[%c166] : memref<288xf32, #tpu.memory_space<smem>>
    %831 = vector.broadcast %830 : f32 to vector<16x16xf32>
    %832 = arith.mulf %831, %813 : vector<16x16xf32>
    %833 = arith.addf %797, %832 : vector<16x16xf32>
    %c202 = arith.constant 202 : index
    %834 = memref.load %arg3[%c202] : memref<288xf32, #tpu.memory_space<smem>>
    %835 = vector.broadcast %834 : f32 to vector<16x16xf32>
    %836 = arith.mulf %835, %813 : vector<16x16xf32>
    %837 = arith.addf %801, %836 : vector<16x16xf32>
    %c238 = arith.constant 238 : index
    %838 = memref.load %arg3[%c238] : memref<288xf32, #tpu.memory_space<smem>>
    %839 = vector.broadcast %838 : f32 to vector<16x16xf32>
    %840 = arith.mulf %839, %813 : vector<16x16xf32>
    %841 = arith.addf %805, %840 : vector<16x16xf32>
    %c274 = arith.constant 274 : index
    %842 = memref.load %arg3[%c274] : memref<288xf32, #tpu.memory_space<smem>>
    %843 = vector.broadcast %842 : f32 to vector<16x16xf32>
    %844 = arith.mulf %843, %813 : vector<16x16xf32>
    %845 = arith.addf %809, %844 : vector<16x16xf32>
    %c1_i32_97 = arith.constant 1 : i32
    %846 = arith.addi %1, %c1_i32_97 : i32
    %c0_98 = arith.constant 0 : index
    %c2_99 = arith.constant 2 : index
    %847 = arith.index_cast %846 : i32 to index
    %c2_100 = arith.constant 2 : index
    %848 = vector.load %arg2[%c0_98, %c2_99, %847, %c2_100] : memref<1x4x18x18xf32, #tpu.memory_space<vmem>>, vector<1x1x16x16xf32>
    %849 = vector.shape_cast %848 : vector<1x1x16x16xf32> to vector<16x16xf32>
    %c23 = arith.constant 23 : index
    %850 = memref.load %arg3[%c23] : memref<288xf32, #tpu.memory_space<smem>>
    %851 = vector.broadcast %850 : f32 to vector<16x16xf32>
    %852 = arith.mulf %851, %849 : vector<16x16xf32>
    %853 = arith.addf %817, %852 : vector<16x16xf32>
    %c59 = arith.constant 59 : index
    %854 = memref.load %arg3[%c59] : memref<288xf32, #tpu.memory_space<smem>>
    %855 = vector.broadcast %854 : f32 to vector<16x16xf32>
    %856 = arith.mulf %855, %849 : vector<16x16xf32>
    %857 = arith.addf %821, %856 : vector<16x16xf32>
    %c95 = arith.constant 95 : index
    %858 = memref.load %arg3[%c95] : memref<288xf32, #tpu.memory_space<smem>>
    %859 = vector.broadcast %858 : f32 to vector<16x16xf32>
    %860 = arith.mulf %859, %849 : vector<16x16xf32>
    %861 = arith.addf %825, %860 : vector<16x16xf32>
    %c131 = arith.constant 131 : index
    %862 = memref.load %arg3[%c131] : memref<288xf32, #tpu.memory_space<smem>>
    %863 = vector.broadcast %862 : f32 to vector<16x16xf32>
    %864 = arith.mulf %863, %849 : vector<16x16xf32>
    %865 = arith.addf %829, %864 : vector<16x16xf32>
    %c167 = arith.constant 167 : index
    %866 = memref.load %arg3[%c167] : memref<288xf32, #tpu.memory_space<smem>>
    %867 = vector.broadcast %866 : f32 to vector<16x16xf32>
    %868 = arith.mulf %867, %849 : vector<16x16xf32>
    %869 = arith.addf %833, %868 : vector<16x16xf32>
    %c203 = arith.constant 203 : index
    %870 = memref.load %arg3[%c203] : memref<288xf32, #tpu.memory_space<smem>>
    %871 = vector.broadcast %870 : f32 to vector<16x16xf32>
    %872 = arith.mulf %871, %849 : vector<16x16xf32>
    %873 = arith.addf %837, %872 : vector<16x16xf32>
    %c239 = arith.constant 239 : index
    %874 = memref.load %arg3[%c239] : memref<288xf32, #tpu.memory_space<smem>>
    %875 = vector.broadcast %874 : f32 to vector<16x16xf32>
    %876 = arith.mulf %875, %849 : vector<16x16xf32>
    %877 = arith.addf %841, %876 : vector<16x16xf32>
    %c275 = arith.constant 275 : index
    %878 = memref.load %arg3[%c275] : memref<288xf32, #tpu.memory_space<smem>>
    %879 = vector.broadcast %878 : f32 to vector<16x16xf32>
    %880 = arith.mulf %879, %849 : vector<16x16xf32>
    %881 = arith.addf %845, %880 : vector<16x16xf32>
    %c2_i32_101 = arith.constant 2 : i32
    %882 = arith.addi %1, %c2_i32_101 : i32
    %c0_102 = arith.constant 0 : index
    %c2_103 = arith.constant 2 : index
    %883 = arith.index_cast %882 : i32 to index
    %c0_104 = arith.constant 0 : index
    %884 = vector.load %arg2[%c0_102, %c2_103, %883, %c0_104] : memref<1x4x18x18xf32, #tpu.memory_space<vmem>>, vector<1x1x16x16xf32>
    %885 = vector.shape_cast %884 : vector<1x1x16x16xf32> to vector<16x16xf32>
    %c24 = arith.constant 24 : index
    %886 = memref.load %arg3[%c24] : memref<288xf32, #tpu.memory_space<smem>>
    %887 = vector.broadcast %886 : f32 to vector<16x16xf32>
    %888 = arith.mulf %887, %885 : vector<16x16xf32>
    %889 = arith.addf %853, %888 : vector<16x16xf32>
    %c60 = arith.constant 60 : index
    %890 = memref.load %arg3[%c60] : memref<288xf32, #tpu.memory_space<smem>>
    %891 = vector.broadcast %890 : f32 to vector<16x16xf32>
    %892 = arith.mulf %891, %885 : vector<16x16xf32>
    %893 = arith.addf %857, %892 : vector<16x16xf32>
    %c96 = arith.constant 96 : index
    %894 = memref.load %arg3[%c96] : memref<288xf32, #tpu.memory_space<smem>>
    %895 = vector.broadcast %894 : f32 to vector<16x16xf32>
    %896 = arith.mulf %895, %885 : vector<16x16xf32>
    %897 = arith.addf %861, %896 : vector<16x16xf32>
    %c132 = arith.constant 132 : index
    %898 = memref.load %arg3[%c132] : memref<288xf32, #tpu.memory_space<smem>>
    %899 = vector.broadcast %898 : f32 to vector<16x16xf32>
    %900 = arith.mulf %899, %885 : vector<16x16xf32>
    %901 = arith.addf %865, %900 : vector<16x16xf32>
    %c168 = arith.constant 168 : index
    %902 = memref.load %arg3[%c168] : memref<288xf32, #tpu.memory_space<smem>>
    %903 = vector.broadcast %902 : f32 to vector<16x16xf32>
    %904 = arith.mulf %903, %885 : vector<16x16xf32>
    %905 = arith.addf %869, %904 : vector<16x16xf32>
    %c204 = arith.constant 204 : index
    %906 = memref.load %arg3[%c204] : memref<288xf32, #tpu.memory_space<smem>>
    %907 = vector.broadcast %906 : f32 to vector<16x16xf32>
    %908 = arith.mulf %907, %885 : vector<16x16xf32>
    %909 = arith.addf %873, %908 : vector<16x16xf32>
    %c240 = arith.constant 240 : index
    %910 = memref.load %arg3[%c240] : memref<288xf32, #tpu.memory_space<smem>>
    %911 = vector.broadcast %910 : f32 to vector<16x16xf32>
    %912 = arith.mulf %911, %885 : vector<16x16xf32>
    %913 = arith.addf %877, %912 : vector<16x16xf32>
    %c276 = arith.constant 276 : index
    %914 = memref.load %arg3[%c276] : memref<288xf32, #tpu.memory_space<smem>>
    %915 = vector.broadcast %914 : f32 to vector<16x16xf32>
    %916 = arith.mulf %915, %885 : vector<16x16xf32>
    %917 = arith.addf %881, %916 : vector<16x16xf32>
    %c2_i32_105 = arith.constant 2 : i32
    %918 = arith.addi %1, %c2_i32_105 : i32
    %c0_106 = arith.constant 0 : index
    %c2_107 = arith.constant 2 : index
    %919 = arith.index_cast %918 : i32 to index
    %c1_108 = arith.constant 1 : index
    %920 = vector.load %arg2[%c0_106, %c2_107, %919, %c1_108] : memref<1x4x18x18xf32, #tpu.memory_space<vmem>>, vector<1x1x16x16xf32>
    %921 = vector.shape_cast %920 : vector<1x1x16x16xf32> to vector<16x16xf32>
    %c25 = arith.constant 25 : index
    %922 = memref.load %arg3[%c25] : memref<288xf32, #tpu.memory_space<smem>>
    %923 = vector.broadcast %922 : f32 to vector<16x16xf32>
    %924 = arith.mulf %923, %921 : vector<16x16xf32>
    %925 = arith.addf %889, %924 : vector<16x16xf32>
    %c61 = arith.constant 61 : index
    %926 = memref.load %arg3[%c61] : memref<288xf32, #tpu.memory_space<smem>>
    %927 = vector.broadcast %926 : f32 to vector<16x16xf32>
    %928 = arith.mulf %927, %921 : vector<16x16xf32>
    %929 = arith.addf %893, %928 : vector<16x16xf32>
    %c97 = arith.constant 97 : index
    %930 = memref.load %arg3[%c97] : memref<288xf32, #tpu.memory_space<smem>>
    %931 = vector.broadcast %930 : f32 to vector<16x16xf32>
    %932 = arith.mulf %931, %921 : vector<16x16xf32>
    %933 = arith.addf %897, %932 : vector<16x16xf32>
    %c133 = arith.constant 133 : index
    %934 = memref.load %arg3[%c133] : memref<288xf32, #tpu.memory_space<smem>>
    %935 = vector.broadcast %934 : f32 to vector<16x16xf32>
    %936 = arith.mulf %935, %921 : vector<16x16xf32>
    %937 = arith.addf %901, %936 : vector<16x16xf32>
    %c169 = arith.constant 169 : index
    %938 = memref.load %arg3[%c169] : memref<288xf32, #tpu.memory_space<smem>>
    %939 = vector.broadcast %938 : f32 to vector<16x16xf32>
    %940 = arith.mulf %939, %921 : vector<16x16xf32>
    %941 = arith.addf %905, %940 : vector<16x16xf32>
    %c205 = arith.constant 205 : index
    %942 = memref.load %arg3[%c205] : memref<288xf32, #tpu.memory_space<smem>>
    %943 = vector.broadcast %942 : f32 to vector<16x16xf32>
    %944 = arith.mulf %943, %921 : vector<16x16xf32>
    %945 = arith.addf %909, %944 : vector<16x16xf32>
    %c241 = arith.constant 241 : index
    %946 = memref.load %arg3[%c241] : memref<288xf32, #tpu.memory_space<smem>>
    %947 = vector.broadcast %946 : f32 to vector<16x16xf32>
    %948 = arith.mulf %947, %921 : vector<16x16xf32>
    %949 = arith.addf %913, %948 : vector<16x16xf32>
    %c277 = arith.constant 277 : index
    %950 = memref.load %arg3[%c277] : memref<288xf32, #tpu.memory_space<smem>>
    %951 = vector.broadcast %950 : f32 to vector<16x16xf32>
    %952 = arith.mulf %951, %921 : vector<16x16xf32>
    %953 = arith.addf %917, %952 : vector<16x16xf32>
    %c2_i32_109 = arith.constant 2 : i32
    %954 = arith.addi %1, %c2_i32_109 : i32
    %c0_110 = arith.constant 0 : index
    %c2_111 = arith.constant 2 : index
    %955 = arith.index_cast %954 : i32 to index
    %c2_112 = arith.constant 2 : index
    %956 = vector.load %arg2[%c0_110, %c2_111, %955, %c2_112] : memref<1x4x18x18xf32, #tpu.memory_space<vmem>>, vector<1x1x16x16xf32>
    %957 = vector.shape_cast %956 : vector<1x1x16x16xf32> to vector<16x16xf32>
    %c26 = arith.constant 26 : index
    %958 = memref.load %arg3[%c26] : memref<288xf32, #tpu.memory_space<smem>>
    %959 = vector.broadcast %958 : f32 to vector<16x16xf32>
    %960 = arith.mulf %959, %957 : vector<16x16xf32>
    %961 = arith.addf %925, %960 : vector<16x16xf32>
    %c62 = arith.constant 62 : index
    %962 = memref.load %arg3[%c62] : memref<288xf32, #tpu.memory_space<smem>>
    %963 = vector.broadcast %962 : f32 to vector<16x16xf32>
    %964 = arith.mulf %963, %957 : vector<16x16xf32>
    %965 = arith.addf %929, %964 : vector<16x16xf32>
    %c98 = arith.constant 98 : index
    %966 = memref.load %arg3[%c98] : memref<288xf32, #tpu.memory_space<smem>>
    %967 = vector.broadcast %966 : f32 to vector<16x16xf32>
    %968 = arith.mulf %967, %957 : vector<16x16xf32>
    %969 = arith.addf %933, %968 : vector<16x16xf32>
    %c134 = arith.constant 134 : index
    %970 = memref.load %arg3[%c134] : memref<288xf32, #tpu.memory_space<smem>>
    %971 = vector.broadcast %970 : f32 to vector<16x16xf32>
    %972 = arith.mulf %971, %957 : vector<16x16xf32>
    %973 = arith.addf %937, %972 : vector<16x16xf32>
    %c170 = arith.constant 170 : index
    %974 = memref.load %arg3[%c170] : memref<288xf32, #tpu.memory_space<smem>>
    %975 = vector.broadcast %974 : f32 to vector<16x16xf32>
    %976 = arith.mulf %975, %957 : vector<16x16xf32>
    %977 = arith.addf %941, %976 : vector<16x16xf32>
    %c206 = arith.constant 206 : index
    %978 = memref.load %arg3[%c206] : memref<288xf32, #tpu.memory_space<smem>>
    %979 = vector.broadcast %978 : f32 to vector<16x16xf32>
    %980 = arith.mulf %979, %957 : vector<16x16xf32>
    %981 = arith.addf %945, %980 : vector<16x16xf32>
    %c242 = arith.constant 242 : index
    %982 = memref.load %arg3[%c242] : memref<288xf32, #tpu.memory_space<smem>>
    %983 = vector.broadcast %982 : f32 to vector<16x16xf32>
    %984 = arith.mulf %983, %957 : vector<16x16xf32>
    %985 = arith.addf %949, %984 : vector<16x16xf32>
    %c278 = arith.constant 278 : index
    %986 = memref.load %arg3[%c278] : memref<288xf32, #tpu.memory_space<smem>>
    %987 = vector.broadcast %986 : f32 to vector<16x16xf32>
    %988 = arith.mulf %987, %957 : vector<16x16xf32>
    %989 = arith.addf %953, %988 : vector<16x16xf32>
    %c0_i32_113 = arith.constant 0 : i32
    %990 = arith.addi %1, %c0_i32_113 : i32
    %c0_114 = arith.constant 0 : index
    %c3_115 = arith.constant 3 : index
    %991 = arith.index_cast %990 : i32 to index
    %c0_116 = arith.constant 0 : index
    %992 = vector.load %arg2[%c0_114, %c3_115, %991, %c0_116] : memref<1x4x18x18xf32, #tpu.memory_space<vmem>>, vector<1x1x16x16xf32>
    %993 = vector.shape_cast %992 : vector<1x1x16x16xf32> to vector<16x16xf32>
    %c27 = arith.constant 27 : index
    %994 = memref.load %arg3[%c27] : memref<288xf32, #tpu.memory_space<smem>>
    %995 = vector.broadcast %994 : f32 to vector<16x16xf32>
    %996 = arith.mulf %995, %993 : vector<16x16xf32>
    %997 = arith.addf %961, %996 : vector<16x16xf32>
    %c63 = arith.constant 63 : index
    %998 = memref.load %arg3[%c63] : memref<288xf32, #tpu.memory_space<smem>>
    %999 = vector.broadcast %998 : f32 to vector<16x16xf32>
    %1000 = arith.mulf %999, %993 : vector<16x16xf32>
    %1001 = arith.addf %965, %1000 : vector<16x16xf32>
    %c99 = arith.constant 99 : index
    %1002 = memref.load %arg3[%c99] : memref<288xf32, #tpu.memory_space<smem>>
    %1003 = vector.broadcast %1002 : f32 to vector<16x16xf32>
    %1004 = arith.mulf %1003, %993 : vector<16x16xf32>
    %1005 = arith.addf %969, %1004 : vector<16x16xf32>
    %c135 = arith.constant 135 : index
    %1006 = memref.load %arg3[%c135] : memref<288xf32, #tpu.memory_space<smem>>
    %1007 = vector.broadcast %1006 : f32 to vector<16x16xf32>
    %1008 = arith.mulf %1007, %993 : vector<16x16xf32>
    %1009 = arith.addf %973, %1008 : vector<16x16xf32>
    %c171 = arith.constant 171 : index
    %1010 = memref.load %arg3[%c171] : memref<288xf32, #tpu.memory_space<smem>>
    %1011 = vector.broadcast %1010 : f32 to vector<16x16xf32>
    %1012 = arith.mulf %1011, %993 : vector<16x16xf32>
    %1013 = arith.addf %977, %1012 : vector<16x16xf32>
    %c207 = arith.constant 207 : index
    %1014 = memref.load %arg3[%c207] : memref<288xf32, #tpu.memory_space<smem>>
    %1015 = vector.broadcast %1014 : f32 to vector<16x16xf32>
    %1016 = arith.mulf %1015, %993 : vector<16x16xf32>
    %1017 = arith.addf %981, %1016 : vector<16x16xf32>
    %c243 = arith.constant 243 : index
    %1018 = memref.load %arg3[%c243] : memref<288xf32, #tpu.memory_space<smem>>
    %1019 = vector.broadcast %1018 : f32 to vector<16x16xf32>
    %1020 = arith.mulf %1019, %993 : vector<16x16xf32>
    %1021 = arith.addf %985, %1020 : vector<16x16xf32>
    %c279 = arith.constant 279 : index
    %1022 = memref.load %arg3[%c279] : memref<288xf32, #tpu.memory_space<smem>>
    %1023 = vector.broadcast %1022 : f32 to vector<16x16xf32>
    %1024 = arith.mulf %1023, %993 : vector<16x16xf32>
    %1025 = arith.addf %989, %1024 : vector<16x16xf32>
    %c0_i32_117 = arith.constant 0 : i32
    %1026 = arith.addi %1, %c0_i32_117 : i32
    %c0_118 = arith.constant 0 : index
    %c3_119 = arith.constant 3 : index
    %1027 = arith.index_cast %1026 : i32 to index
    %c1_120 = arith.constant 1 : index
    %1028 = vector.load %arg2[%c0_118, %c3_119, %1027, %c1_120] : memref<1x4x18x18xf32, #tpu.memory_space<vmem>>, vector<1x1x16x16xf32>
    %1029 = vector.shape_cast %1028 : vector<1x1x16x16xf32> to vector<16x16xf32>
    %c28 = arith.constant 28 : index
    %1030 = memref.load %arg3[%c28] : memref<288xf32, #tpu.memory_space<smem>>
    %1031 = vector.broadcast %1030 : f32 to vector<16x16xf32>
    %1032 = arith.mulf %1031, %1029 : vector<16x16xf32>
    %1033 = arith.addf %997, %1032 : vector<16x16xf32>
    %c64 = arith.constant 64 : index
    %1034 = memref.load %arg3[%c64] : memref<288xf32, #tpu.memory_space<smem>>
    %1035 = vector.broadcast %1034 : f32 to vector<16x16xf32>
    %1036 = arith.mulf %1035, %1029 : vector<16x16xf32>
    %1037 = arith.addf %1001, %1036 : vector<16x16xf32>
    %c100 = arith.constant 100 : index
    %1038 = memref.load %arg3[%c100] : memref<288xf32, #tpu.memory_space<smem>>
    %1039 = vector.broadcast %1038 : f32 to vector<16x16xf32>
    %1040 = arith.mulf %1039, %1029 : vector<16x16xf32>
    %1041 = arith.addf %1005, %1040 : vector<16x16xf32>
    %c136 = arith.constant 136 : index
    %1042 = memref.load %arg3[%c136] : memref<288xf32, #tpu.memory_space<smem>>
    %1043 = vector.broadcast %1042 : f32 to vector<16x16xf32>
    %1044 = arith.mulf %1043, %1029 : vector<16x16xf32>
    %1045 = arith.addf %1009, %1044 : vector<16x16xf32>
    %c172 = arith.constant 172 : index
    %1046 = memref.load %arg3[%c172] : memref<288xf32, #tpu.memory_space<smem>>
    %1047 = vector.broadcast %1046 : f32 to vector<16x16xf32>
    %1048 = arith.mulf %1047, %1029 : vector<16x16xf32>
    %1049 = arith.addf %1013, %1048 : vector<16x16xf32>
    %c208 = arith.constant 208 : index
    %1050 = memref.load %arg3[%c208] : memref<288xf32, #tpu.memory_space<smem>>
    %1051 = vector.broadcast %1050 : f32 to vector<16x16xf32>
    %1052 = arith.mulf %1051, %1029 : vector<16x16xf32>
    %1053 = arith.addf %1017, %1052 : vector<16x16xf32>
    %c244 = arith.constant 244 : index
    %1054 = memref.load %arg3[%c244] : memref<288xf32, #tpu.memory_space<smem>>
    %1055 = vector.broadcast %1054 : f32 to vector<16x16xf32>
    %1056 = arith.mulf %1055, %1029 : vector<16x16xf32>
    %1057 = arith.addf %1021, %1056 : vector<16x16xf32>
    %c280 = arith.constant 280 : index
    %1058 = memref.load %arg3[%c280] : memref<288xf32, #tpu.memory_space<smem>>
    %1059 = vector.broadcast %1058 : f32 to vector<16x16xf32>
    %1060 = arith.mulf %1059, %1029 : vector<16x16xf32>
    %1061 = arith.addf %1025, %1060 : vector<16x16xf32>
    %c0_i32_121 = arith.constant 0 : i32
    %1062 = arith.addi %1, %c0_i32_121 : i32
    %c0_122 = arith.constant 0 : index
    %c3_123 = arith.constant 3 : index
    %1063 = arith.index_cast %1062 : i32 to index
    %c2_124 = arith.constant 2 : index
    %1064 = vector.load %arg2[%c0_122, %c3_123, %1063, %c2_124] : memref<1x4x18x18xf32, #tpu.memory_space<vmem>>, vector<1x1x16x16xf32>
    %1065 = vector.shape_cast %1064 : vector<1x1x16x16xf32> to vector<16x16xf32>
    %c29 = arith.constant 29 : index
    %1066 = memref.load %arg3[%c29] : memref<288xf32, #tpu.memory_space<smem>>
    %1067 = vector.broadcast %1066 : f32 to vector<16x16xf32>
    %1068 = arith.mulf %1067, %1065 : vector<16x16xf32>
    %1069 = arith.addf %1033, %1068 : vector<16x16xf32>
    %c65 = arith.constant 65 : index
    %1070 = memref.load %arg3[%c65] : memref<288xf32, #tpu.memory_space<smem>>
    %1071 = vector.broadcast %1070 : f32 to vector<16x16xf32>
    %1072 = arith.mulf %1071, %1065 : vector<16x16xf32>
    %1073 = arith.addf %1037, %1072 : vector<16x16xf32>
    %c101 = arith.constant 101 : index
    %1074 = memref.load %arg3[%c101] : memref<288xf32, #tpu.memory_space<smem>>
    %1075 = vector.broadcast %1074 : f32 to vector<16x16xf32>
    %1076 = arith.mulf %1075, %1065 : vector<16x16xf32>
    %1077 = arith.addf %1041, %1076 : vector<16x16xf32>
    %c137 = arith.constant 137 : index
    %1078 = memref.load %arg3[%c137] : memref<288xf32, #tpu.memory_space<smem>>
    %1079 = vector.broadcast %1078 : f32 to vector<16x16xf32>
    %1080 = arith.mulf %1079, %1065 : vector<16x16xf32>
    %1081 = arith.addf %1045, %1080 : vector<16x16xf32>
    %c173 = arith.constant 173 : index
    %1082 = memref.load %arg3[%c173] : memref<288xf32, #tpu.memory_space<smem>>
    %1083 = vector.broadcast %1082 : f32 to vector<16x16xf32>
    %1084 = arith.mulf %1083, %1065 : vector<16x16xf32>
    %1085 = arith.addf %1049, %1084 : vector<16x16xf32>
    %c209 = arith.constant 209 : index
    %1086 = memref.load %arg3[%c209] : memref<288xf32, #tpu.memory_space<smem>>
    %1087 = vector.broadcast %1086 : f32 to vector<16x16xf32>
    %1088 = arith.mulf %1087, %1065 : vector<16x16xf32>
    %1089 = arith.addf %1053, %1088 : vector<16x16xf32>
    %c245 = arith.constant 245 : index
    %1090 = memref.load %arg3[%c245] : memref<288xf32, #tpu.memory_space<smem>>
    %1091 = vector.broadcast %1090 : f32 to vector<16x16xf32>
    %1092 = arith.mulf %1091, %1065 : vector<16x16xf32>
    %1093 = arith.addf %1057, %1092 : vector<16x16xf32>
    %c281 = arith.constant 281 : index
    %1094 = memref.load %arg3[%c281] : memref<288xf32, #tpu.memory_space<smem>>
    %1095 = vector.broadcast %1094 : f32 to vector<16x16xf32>
    %1096 = arith.mulf %1095, %1065 : vector<16x16xf32>
    %1097 = arith.addf %1061, %1096 : vector<16x16xf32>
    %c1_i32_125 = arith.constant 1 : i32
    %1098 = arith.addi %1, %c1_i32_125 : i32
    %c0_126 = arith.constant 0 : index
    %c3_127 = arith.constant 3 : index
    %1099 = arith.index_cast %1098 : i32 to index
    %c0_128 = arith.constant 0 : index
    %1100 = vector.load %arg2[%c0_126, %c3_127, %1099, %c0_128] : memref<1x4x18x18xf32, #tpu.memory_space<vmem>>, vector<1x1x16x16xf32>
    %1101 = vector.shape_cast %1100 : vector<1x1x16x16xf32> to vector<16x16xf32>
    %c30 = arith.constant 30 : index
    %1102 = memref.load %arg3[%c30] : memref<288xf32, #tpu.memory_space<smem>>
    %1103 = vector.broadcast %1102 : f32 to vector<16x16xf32>
    %1104 = arith.mulf %1103, %1101 : vector<16x16xf32>
    %1105 = arith.addf %1069, %1104 : vector<16x16xf32>
    %c66 = arith.constant 66 : index
    %1106 = memref.load %arg3[%c66] : memref<288xf32, #tpu.memory_space<smem>>
    %1107 = vector.broadcast %1106 : f32 to vector<16x16xf32>
    %1108 = arith.mulf %1107, %1101 : vector<16x16xf32>
    %1109 = arith.addf %1073, %1108 : vector<16x16xf32>
    %c102 = arith.constant 102 : index
    %1110 = memref.load %arg3[%c102] : memref<288xf32, #tpu.memory_space<smem>>
    %1111 = vector.broadcast %1110 : f32 to vector<16x16xf32>
    %1112 = arith.mulf %1111, %1101 : vector<16x16xf32>
    %1113 = arith.addf %1077, %1112 : vector<16x16xf32>
    %c138 = arith.constant 138 : index
    %1114 = memref.load %arg3[%c138] : memref<288xf32, #tpu.memory_space<smem>>
    %1115 = vector.broadcast %1114 : f32 to vector<16x16xf32>
    %1116 = arith.mulf %1115, %1101 : vector<16x16xf32>
    %1117 = arith.addf %1081, %1116 : vector<16x16xf32>
    %c174 = arith.constant 174 : index
    %1118 = memref.load %arg3[%c174] : memref<288xf32, #tpu.memory_space<smem>>
    %1119 = vector.broadcast %1118 : f32 to vector<16x16xf32>
    %1120 = arith.mulf %1119, %1101 : vector<16x16xf32>
    %1121 = arith.addf %1085, %1120 : vector<16x16xf32>
    %c210 = arith.constant 210 : index
    %1122 = memref.load %arg3[%c210] : memref<288xf32, #tpu.memory_space<smem>>
    %1123 = vector.broadcast %1122 : f32 to vector<16x16xf32>
    %1124 = arith.mulf %1123, %1101 : vector<16x16xf32>
    %1125 = arith.addf %1089, %1124 : vector<16x16xf32>
    %c246 = arith.constant 246 : index
    %1126 = memref.load %arg3[%c246] : memref<288xf32, #tpu.memory_space<smem>>
    %1127 = vector.broadcast %1126 : f32 to vector<16x16xf32>
    %1128 = arith.mulf %1127, %1101 : vector<16x16xf32>
    %1129 = arith.addf %1093, %1128 : vector<16x16xf32>
    %c282 = arith.constant 282 : index
    %1130 = memref.load %arg3[%c282] : memref<288xf32, #tpu.memory_space<smem>>
    %1131 = vector.broadcast %1130 : f32 to vector<16x16xf32>
    %1132 = arith.mulf %1131, %1101 : vector<16x16xf32>
    %1133 = arith.addf %1097, %1132 : vector<16x16xf32>
    %c1_i32_129 = arith.constant 1 : i32
    %1134 = arith.addi %1, %c1_i32_129 : i32
    %c0_130 = arith.constant 0 : index
    %c3_131 = arith.constant 3 : index
    %1135 = arith.index_cast %1134 : i32 to index
    %c1_132 = arith.constant 1 : index
    %1136 = vector.load %arg2[%c0_130, %c3_131, %1135, %c1_132] : memref<1x4x18x18xf32, #tpu.memory_space<vmem>>, vector<1x1x16x16xf32>
    %1137 = vector.shape_cast %1136 : vector<1x1x16x16xf32> to vector<16x16xf32>
    %c31 = arith.constant 31 : index
    %1138 = memref.load %arg3[%c31] : memref<288xf32, #tpu.memory_space<smem>>
    %1139 = vector.broadcast %1138 : f32 to vector<16x16xf32>
    %1140 = arith.mulf %1139, %1137 : vector<16x16xf32>
    %1141 = arith.addf %1105, %1140 : vector<16x16xf32>
    %c67 = arith.constant 67 : index
    %1142 = memref.load %arg3[%c67] : memref<288xf32, #tpu.memory_space<smem>>
    %1143 = vector.broadcast %1142 : f32 to vector<16x16xf32>
    %1144 = arith.mulf %1143, %1137 : vector<16x16xf32>
    %1145 = arith.addf %1109, %1144 : vector<16x16xf32>
    %c103 = arith.constant 103 : index
    %1146 = memref.load %arg3[%c103] : memref<288xf32, #tpu.memory_space<smem>>
    %1147 = vector.broadcast %1146 : f32 to vector<16x16xf32>
    %1148 = arith.mulf %1147, %1137 : vector<16x16xf32>
    %1149 = arith.addf %1113, %1148 : vector<16x16xf32>
    %c139 = arith.constant 139 : index
    %1150 = memref.load %arg3[%c139] : memref<288xf32, #tpu.memory_space<smem>>
    %1151 = vector.broadcast %1150 : f32 to vector<16x16xf32>
    %1152 = arith.mulf %1151, %1137 : vector<16x16xf32>
    %1153 = arith.addf %1117, %1152 : vector<16x16xf32>
    %c175 = arith.constant 175 : index
    %1154 = memref.load %arg3[%c175] : memref<288xf32, #tpu.memory_space<smem>>
    %1155 = vector.broadcast %1154 : f32 to vector<16x16xf32>
    %1156 = arith.mulf %1155, %1137 : vector<16x16xf32>
    %1157 = arith.addf %1121, %1156 : vector<16x16xf32>
    %c211 = arith.constant 211 : index
    %1158 = memref.load %arg3[%c211] : memref<288xf32, #tpu.memory_space<smem>>
    %1159 = vector.broadcast %1158 : f32 to vector<16x16xf32>
    %1160 = arith.mulf %1159, %1137 : vector<16x16xf32>
    %1161 = arith.addf %1125, %1160 : vector<16x16xf32>
    %c247 = arith.constant 247 : index
    %1162 = memref.load %arg3[%c247] : memref<288xf32, #tpu.memory_space<smem>>
    %1163 = vector.broadcast %1162 : f32 to vector<16x16xf32>
    %1164 = arith.mulf %1163, %1137 : vector<16x16xf32>
    %1165 = arith.addf %1129, %1164 : vector<16x16xf32>
    %c283 = arith.constant 283 : index
    %1166 = memref.load %arg3[%c283] : memref<288xf32, #tpu.memory_space<smem>>
    %1167 = vector.broadcast %1166 : f32 to vector<16x16xf32>
    %1168 = arith.mulf %1167, %1137 : vector<16x16xf32>
    %1169 = arith.addf %1133, %1168 : vector<16x16xf32>
    %c1_i32_133 = arith.constant 1 : i32
    %1170 = arith.addi %1, %c1_i32_133 : i32
    %c0_134 = arith.constant 0 : index
    %c3_135 = arith.constant 3 : index
    %1171 = arith.index_cast %1170 : i32 to index
    %c2_136 = arith.constant 2 : index
    %1172 = vector.load %arg2[%c0_134, %c3_135, %1171, %c2_136] : memref<1x4x18x18xf32, #tpu.memory_space<vmem>>, vector<1x1x16x16xf32>
    %1173 = vector.shape_cast %1172 : vector<1x1x16x16xf32> to vector<16x16xf32>
    %c32 = arith.constant 32 : index
    %1174 = memref.load %arg3[%c32] : memref<288xf32, #tpu.memory_space<smem>>
    %1175 = vector.broadcast %1174 : f32 to vector<16x16xf32>
    %1176 = arith.mulf %1175, %1173 : vector<16x16xf32>
    %1177 = arith.addf %1141, %1176 : vector<16x16xf32>
    %c68 = arith.constant 68 : index
    %1178 = memref.load %arg3[%c68] : memref<288xf32, #tpu.memory_space<smem>>
    %1179 = vector.broadcast %1178 : f32 to vector<16x16xf32>
    %1180 = arith.mulf %1179, %1173 : vector<16x16xf32>
    %1181 = arith.addf %1145, %1180 : vector<16x16xf32>
    %c104 = arith.constant 104 : index
    %1182 = memref.load %arg3[%c104] : memref<288xf32, #tpu.memory_space<smem>>
    %1183 = vector.broadcast %1182 : f32 to vector<16x16xf32>
    %1184 = arith.mulf %1183, %1173 : vector<16x16xf32>
    %1185 = arith.addf %1149, %1184 : vector<16x16xf32>
    %c140 = arith.constant 140 : index
    %1186 = memref.load %arg3[%c140] : memref<288xf32, #tpu.memory_space<smem>>
    %1187 = vector.broadcast %1186 : f32 to vector<16x16xf32>
    %1188 = arith.mulf %1187, %1173 : vector<16x16xf32>
    %1189 = arith.addf %1153, %1188 : vector<16x16xf32>
    %c176 = arith.constant 176 : index
    %1190 = memref.load %arg3[%c176] : memref<288xf32, #tpu.memory_space<smem>>
    %1191 = vector.broadcast %1190 : f32 to vector<16x16xf32>
    %1192 = arith.mulf %1191, %1173 : vector<16x16xf32>
    %1193 = arith.addf %1157, %1192 : vector<16x16xf32>
    %c212 = arith.constant 212 : index
    %1194 = memref.load %arg3[%c212] : memref<288xf32, #tpu.memory_space<smem>>
    %1195 = vector.broadcast %1194 : f32 to vector<16x16xf32>
    %1196 = arith.mulf %1195, %1173 : vector<16x16xf32>
    %1197 = arith.addf %1161, %1196 : vector<16x16xf32>
    %c248 = arith.constant 248 : index
    %1198 = memref.load %arg3[%c248] : memref<288xf32, #tpu.memory_space<smem>>
    %1199 = vector.broadcast %1198 : f32 to vector<16x16xf32>
    %1200 = arith.mulf %1199, %1173 : vector<16x16xf32>
    %1201 = arith.addf %1165, %1200 : vector<16x16xf32>
    %c284 = arith.constant 284 : index
    %1202 = memref.load %arg3[%c284] : memref<288xf32, #tpu.memory_space<smem>>
    %1203 = vector.broadcast %1202 : f32 to vector<16x16xf32>
    %1204 = arith.mulf %1203, %1173 : vector<16x16xf32>
    %1205 = arith.addf %1169, %1204 : vector<16x16xf32>
    %c2_i32_137 = arith.constant 2 : i32
    %1206 = arith.addi %1, %c2_i32_137 : i32
    %c0_138 = arith.constant 0 : index
    %c3_139 = arith.constant 3 : index
    %1207 = arith.index_cast %1206 : i32 to index
    %c0_140 = arith.constant 0 : index
    %1208 = vector.load %arg2[%c0_138, %c3_139, %1207, %c0_140] : memref<1x4x18x18xf32, #tpu.memory_space<vmem>>, vector<1x1x16x16xf32>
    %1209 = vector.shape_cast %1208 : vector<1x1x16x16xf32> to vector<16x16xf32>
    %c33 = arith.constant 33 : index
    %1210 = memref.load %arg3[%c33] : memref<288xf32, #tpu.memory_space<smem>>
    %1211 = vector.broadcast %1210 : f32 to vector<16x16xf32>
    %1212 = arith.mulf %1211, %1209 : vector<16x16xf32>
    %1213 = arith.addf %1177, %1212 : vector<16x16xf32>
    %c69 = arith.constant 69 : index
    %1214 = memref.load %arg3[%c69] : memref<288xf32, #tpu.memory_space<smem>>
    %1215 = vector.broadcast %1214 : f32 to vector<16x16xf32>
    %1216 = arith.mulf %1215, %1209 : vector<16x16xf32>
    %1217 = arith.addf %1181, %1216 : vector<16x16xf32>
    %c105 = arith.constant 105 : index
    %1218 = memref.load %arg3[%c105] : memref<288xf32, #tpu.memory_space<smem>>
    %1219 = vector.broadcast %1218 : f32 to vector<16x16xf32>
    %1220 = arith.mulf %1219, %1209 : vector<16x16xf32>
    %1221 = arith.addf %1185, %1220 : vector<16x16xf32>
    %c141 = arith.constant 141 : index
    %1222 = memref.load %arg3[%c141] : memref<288xf32, #tpu.memory_space<smem>>
    %1223 = vector.broadcast %1222 : f32 to vector<16x16xf32>
    %1224 = arith.mulf %1223, %1209 : vector<16x16xf32>
    %1225 = arith.addf %1189, %1224 : vector<16x16xf32>
    %c177 = arith.constant 177 : index
    %1226 = memref.load %arg3[%c177] : memref<288xf32, #tpu.memory_space<smem>>
    %1227 = vector.broadcast %1226 : f32 to vector<16x16xf32>
    %1228 = arith.mulf %1227, %1209 : vector<16x16xf32>
    %1229 = arith.addf %1193, %1228 : vector<16x16xf32>
    %c213 = arith.constant 213 : index
    %1230 = memref.load %arg3[%c213] : memref<288xf32, #tpu.memory_space<smem>>
    %1231 = vector.broadcast %1230 : f32 to vector<16x16xf32>
    %1232 = arith.mulf %1231, %1209 : vector<16x16xf32>
    %1233 = arith.addf %1197, %1232 : vector<16x16xf32>
    %c249 = arith.constant 249 : index
    %1234 = memref.load %arg3[%c249] : memref<288xf32, #tpu.memory_space<smem>>
    %1235 = vector.broadcast %1234 : f32 to vector<16x16xf32>
    %1236 = arith.mulf %1235, %1209 : vector<16x16xf32>
    %1237 = arith.addf %1201, %1236 : vector<16x16xf32>
    %c285 = arith.constant 285 : index
    %1238 = memref.load %arg3[%c285] : memref<288xf32, #tpu.memory_space<smem>>
    %1239 = vector.broadcast %1238 : f32 to vector<16x16xf32>
    %1240 = arith.mulf %1239, %1209 : vector<16x16xf32>
    %1241 = arith.addf %1205, %1240 : vector<16x16xf32>
    %c2_i32_141 = arith.constant 2 : i32
    %1242 = arith.addi %1, %c2_i32_141 : i32
    %c0_142 = arith.constant 0 : index
    %c3_143 = arith.constant 3 : index
    %1243 = arith.index_cast %1242 : i32 to index
    %c1_144 = arith.constant 1 : index
    %1244 = vector.load %arg2[%c0_142, %c3_143, %1243, %c1_144] : memref<1x4x18x18xf32, #tpu.memory_space<vmem>>, vector<1x1x16x16xf32>
    %1245 = vector.shape_cast %1244 : vector<1x1x16x16xf32> to vector<16x16xf32>
    %c34 = arith.constant 34 : index
    %1246 = memref.load %arg3[%c34] : memref<288xf32, #tpu.memory_space<smem>>
    %1247 = vector.broadcast %1246 : f32 to vector<16x16xf32>
    %1248 = arith.mulf %1247, %1245 : vector<16x16xf32>
    %1249 = arith.addf %1213, %1248 : vector<16x16xf32>
    %c70 = arith.constant 70 : index
    %1250 = memref.load %arg3[%c70] : memref<288xf32, #tpu.memory_space<smem>>
    %1251 = vector.broadcast %1250 : f32 to vector<16x16xf32>
    %1252 = arith.mulf %1251, %1245 : vector<16x16xf32>
    %1253 = arith.addf %1217, %1252 : vector<16x16xf32>
    %c106 = arith.constant 106 : index
    %1254 = memref.load %arg3[%c106] : memref<288xf32, #tpu.memory_space<smem>>
    %1255 = vector.broadcast %1254 : f32 to vector<16x16xf32>
    %1256 = arith.mulf %1255, %1245 : vector<16x16xf32>
    %1257 = arith.addf %1221, %1256 : vector<16x16xf32>
    %c142 = arith.constant 142 : index
    %1258 = memref.load %arg3[%c142] : memref<288xf32, #tpu.memory_space<smem>>
    %1259 = vector.broadcast %1258 : f32 to vector<16x16xf32>
    %1260 = arith.mulf %1259, %1245 : vector<16x16xf32>
    %1261 = arith.addf %1225, %1260 : vector<16x16xf32>
    %c178 = arith.constant 178 : index
    %1262 = memref.load %arg3[%c178] : memref<288xf32, #tpu.memory_space<smem>>
    %1263 = vector.broadcast %1262 : f32 to vector<16x16xf32>
    %1264 = arith.mulf %1263, %1245 : vector<16x16xf32>
    %1265 = arith.addf %1229, %1264 : vector<16x16xf32>
    %c214 = arith.constant 214 : index
    %1266 = memref.load %arg3[%c214] : memref<288xf32, #tpu.memory_space<smem>>
    %1267 = vector.broadcast %1266 : f32 to vector<16x16xf32>
    %1268 = arith.mulf %1267, %1245 : vector<16x16xf32>
    %1269 = arith.addf %1233, %1268 : vector<16x16xf32>
    %c250 = arith.constant 250 : index
    %1270 = memref.load %arg3[%c250] : memref<288xf32, #tpu.memory_space<smem>>
    %1271 = vector.broadcast %1270 : f32 to vector<16x16xf32>
    %1272 = arith.mulf %1271, %1245 : vector<16x16xf32>
    %1273 = arith.addf %1237, %1272 : vector<16x16xf32>
    %c286 = arith.constant 286 : index
    %1274 = memref.load %arg3[%c286] : memref<288xf32, #tpu.memory_space<smem>>
    %1275 = vector.broadcast %1274 : f32 to vector<16x16xf32>
    %1276 = arith.mulf %1275, %1245 : vector<16x16xf32>
    %1277 = arith.addf %1241, %1276 : vector<16x16xf32>
    %c2_i32_145 = arith.constant 2 : i32
    %1278 = arith.addi %1, %c2_i32_145 : i32
    %c0_146 = arith.constant 0 : index
    %c3_147 = arith.constant 3 : index
    %1279 = arith.index_cast %1278 : i32 to index
    %c2_148 = arith.constant 2 : index
    %1280 = vector.load %arg2[%c0_146, %c3_147, %1279, %c2_148] : memref<1x4x18x18xf32, #tpu.memory_space<vmem>>, vector<1x1x16x16xf32>
    %1281 = vector.shape_cast %1280 : vector<1x1x16x16xf32> to vector<16x16xf32>
    %c35 = arith.constant 35 : index
    %1282 = memref.load %arg3[%c35] : memref<288xf32, #tpu.memory_space<smem>>
    %1283 = vector.broadcast %1282 : f32 to vector<16x16xf32>
    %1284 = arith.mulf %1283, %1281 : vector<16x16xf32>
    %1285 = arith.addf %1249, %1284 : vector<16x16xf32>
    %c71 = arith.constant 71 : index
    %1286 = memref.load %arg3[%c71] : memref<288xf32, #tpu.memory_space<smem>>
    %1287 = vector.broadcast %1286 : f32 to vector<16x16xf32>
    %1288 = arith.mulf %1287, %1281 : vector<16x16xf32>
    %1289 = arith.addf %1253, %1288 : vector<16x16xf32>
    %c107 = arith.constant 107 : index
    %1290 = memref.load %arg3[%c107] : memref<288xf32, #tpu.memory_space<smem>>
    %1291 = vector.broadcast %1290 : f32 to vector<16x16xf32>
    %1292 = arith.mulf %1291, %1281 : vector<16x16xf32>
    %1293 = arith.addf %1257, %1292 : vector<16x16xf32>
    %c143 = arith.constant 143 : index
    %1294 = memref.load %arg3[%c143] : memref<288xf32, #tpu.memory_space<smem>>
    %1295 = vector.broadcast %1294 : f32 to vector<16x16xf32>
    %1296 = arith.mulf %1295, %1281 : vector<16x16xf32>
    %1297 = arith.addf %1261, %1296 : vector<16x16xf32>
    %c179 = arith.constant 179 : index
    %1298 = memref.load %arg3[%c179] : memref<288xf32, #tpu.memory_space<smem>>
    %1299 = vector.broadcast %1298 : f32 to vector<16x16xf32>
    %1300 = arith.mulf %1299, %1281 : vector<16x16xf32>
    %1301 = arith.addf %1265, %1300 : vector<16x16xf32>
    %c215 = arith.constant 215 : index
    %1302 = memref.load %arg3[%c215] : memref<288xf32, #tpu.memory_space<smem>>
    %1303 = vector.broadcast %1302 : f32 to vector<16x16xf32>
    %1304 = arith.mulf %1303, %1281 : vector<16x16xf32>
    %1305 = arith.addf %1269, %1304 : vector<16x16xf32>
    %c251 = arith.constant 251 : index
    %1306 = memref.load %arg3[%c251] : memref<288xf32, #tpu.memory_space<smem>>
    %1307 = vector.broadcast %1306 : f32 to vector<16x16xf32>
    %1308 = arith.mulf %1307, %1281 : vector<16x16xf32>
    %1309 = arith.addf %1273, %1308 : vector<16x16xf32>
    %c287 = arith.constant 287 : index
    %1310 = memref.load %arg3[%c287] : memref<288xf32, #tpu.memory_space<smem>>
    %1311 = vector.broadcast %1310 : f32 to vector<16x16xf32>
    %1312 = arith.mulf %1311, %1281 : vector<16x16xf32>
    %1313 = arith.addf %1277, %1312 : vector<16x16xf32>
    %c0_149 = arith.constant 0 : index
    %c0_150 = arith.constant 0 : index
    %c0_151 = arith.constant 0 : index
    %c0_152 = arith.constant 0 : index
    %1314 = vector.load %arg5[%c0_149, %c0_150, %c0_151, %c0_152] : memref<1x8x16x16xf32, #tpu.memory_space<vmem>>, vector<1x1x16x16xf32>
    %1315 = vector.shape_cast %1314 : vector<1x1x16x16xf32> to vector<16x16xf32>
    %1316 = vector.shape_cast %1285 : vector<16x16xf32> to vector<1x1x16x16xf32>
    tpu.vector_store %arg5[%c0_149, %c0_150, %c0_151, %c0_152], %1316 {strides = array<i32>} : memref<1x8x16x16xf32, #tpu.memory_space<vmem>>, vector<1x1x16x16xf32>,
    %c0_153 = arith.constant 0 : index
    %c1_154 = arith.constant 1 : index
    %c0_155 = arith.constant 0 : index
    %c0_156 = arith.constant 0 : index
    %1317 = vector.load %arg5[%c0_153, %c1_154, %c0_155, %c0_156] : memref<1x8x16x16xf32, #tpu.memory_space<vmem>>, vector<1x1x16x16xf32>
    %1318 = vector.shape_cast %1317 : vector<1x1x16x16xf32> to vector<16x16xf32>
    %1319 = vector.shape_cast %1289 : vector<16x16xf32> to vector<1x1x16x16xf32>
    tpu.vector_store %arg5[%c0_153, %c1_154, %c0_155, %c0_156], %1319 {strides = array<i32>} : memref<1x8x16x16xf32, #tpu.memory_space<vmem>>, vector<1x1x16x16xf32>,
    %c0_157 = arith.constant 0 : index
    %c2_158 = arith.constant 2 : index
    %c0_159 = arith.constant 0 : index
    %c0_160 = arith.constant 0 : index
    %1320 = vector.load %arg5[%c0_157, %c2_158, %c0_159, %c0_160] : memref<1x8x16x16xf32, #tpu.memory_space<vmem>>, vector<1x1x16x16xf32>
    %1321 = vector.shape_cast %1320 : vector<1x1x16x16xf32> to vector<16x16xf32>
    %1322 = vector.shape_cast %1293 : vector<16x16xf32> to vector<1x1x16x16xf32>
    tpu.vector_store %arg5[%c0_157, %c2_158, %c0_159, %c0_160], %1322 {strides = array<i32>} : memref<1x8x16x16xf32, #tpu.memory_space<vmem>>, vector<1x1x16x16xf32>,
    %c0_161 = arith.constant 0 : index
    %c3_162 = arith.constant 3 : index
    %c0_163 = arith.constant 0 : index
    %c0_164 = arith.constant 0 : index
    %1323 = vector.load %arg5[%c0_161, %c3_162, %c0_163, %c0_164] : memref<1x8x16x16xf32, #tpu.memory_space<vmem>>, vector<1x1x16x16xf32>
    %1324 = vector.shape_cast %1323 : vector<1x1x16x16xf32> to vector<16x16xf32>
    %1325 = vector.shape_cast %1297 : vector<16x16xf32> to vector<1x1x16x16xf32>
    tpu.vector_store %arg5[%c0_161, %c3_162, %c0_163, %c0_164], %1325 {strides = array<i32>} : memref<1x8x16x16xf32, #tpu.memory_space<vmem>>, vector<1x1x16x16xf32>,
    %c0_165 = arith.constant 0 : index
    %c4_166 = arith.constant 4 : index
    %c0_167 = arith.constant 0 : index
    %c0_168 = arith.constant 0 : index
    %1326 = vector.load %arg5[%c0_165, %c4_166, %c0_167, %c0_168] : memref<1x8x16x16xf32, #tpu.memory_space<vmem>>, vector<1x1x16x16xf32>
    %1327 = vector.shape_cast %1326 : vector<1x1x16x16xf32> to vector<16x16xf32>
    %1328 = vector.shape_cast %1301 : vector<16x16xf32> to vector<1x1x16x16xf32>
    tpu.vector_store %arg5[%c0_165, %c4_166, %c0_167, %c0_168], %1328 {strides = array<i32>} : memref<1x8x16x16xf32, #tpu.memory_space<vmem>>, vector<1x1x16x16xf32>,
    %c0_169 = arith.constant 0 : index
    %c5_170 = arith.constant 5 : index
    %c0_171 = arith.constant 0 : index
    %c0_172 = arith.constant 0 : index
    %1329 = vector.load %arg5[%c0_169, %c5_170, %c0_171, %c0_172] : memref<1x8x16x16xf32, #tpu.memory_space<vmem>>, vector<1x1x16x16xf32>
    %1330 = vector.shape_cast %1329 : vector<1x1x16x16xf32> to vector<16x16xf32>
    %1331 = vector.shape_cast %1305 : vector<16x16xf32> to vector<1x1x16x16xf32>
    tpu.vector_store %arg5[%c0_169, %c5_170, %c0_171, %c0_172], %1331 {strides = array<i32>} : memref<1x8x16x16xf32, #tpu.memory_space<vmem>>, vector<1x1x16x16xf32>,
    %c0_173 = arith.constant 0 : index
    %c6_174 = arith.constant 6 : index
    %c0_175 = arith.constant 0 : index
    %c0_176 = arith.constant 0 : index
    %1332 = vector.load %arg5[%c0_173, %c6_174, %c0_175, %c0_176] : memref<1x8x16x16xf32, #tpu.memory_space<vmem>>, vector<1x1x16x16xf32>
    %1333 = vector.shape_cast %1332 : vector<1x1x16x16xf32> to vector<16x16xf32>
    %1334 = vector.shape_cast %1309 : vector<16x16xf32> to vector<1x1x16x16xf32>
    tpu.vector_store %arg5[%c0_173, %c6_174, %c0_175, %c0_176], %1334 {strides = array<i32>} : memref<1x8x16x16xf32, #tpu.memory_space<vmem>>, vector<1x1x16x16xf32>,
    %c0_177 = arith.constant 0 : index
    %c7_178 = arith.constant 7 : index
    %c0_179 = arith.constant 0 : index
    %c0_180 = arith.constant 0 : index
    %1335 = vector.load %arg5[%c0_177, %c7_178, %c0_179, %c0_180] : memref<1x8x16x16xf32, #tpu.memory_space<vmem>>, vector<1x1x16x16xf32>
    %1336 = vector.shape_cast %1335 : vector<1x1x16x16xf32> to vector<16x16xf32>
    %1337 = vector.shape_cast %1313 : vector<16x16xf32> to vector<1x1x16x16xf32>
    tpu.vector_store %arg5[%c0_177, %c7_178, %c0_179, %c0_180], %1337 {strides = array<i32>} : memref<1x8x16x16xf32, #tpu.memory_space<vmem>>, vector<1x1x16x16xf32>,
    return
  }
  func.func @transform_0(%arg0: i32, %arg1: i32) -> (i32, i32, i32, i32) {
    %c0_i32 = arith.constant 0 : i32
    %c0_i32_0 = arith.constant 0 : i32
    %c0_i32_1 = arith.constant 0 : i32
    %c0_i32_2 = arith.constant 0 : i32
    return %arg0, %c0_i32, %c0_i32_0, %c0_i32_1 : i32, i32, i32, i32
  }
  func.func @transform_1(%arg0: i32, %arg1: i32) -> i32 {
    %c0_i32 = arith.constant 0 : i32
    %c0_i32_0 = arith.constant 0 : i32
    return %c0_i32 : i32
  }
  func.func @transform_2(%arg0: i32, %arg1: i32) -> i32 {
    %c0_i32 = arith.constant 0 : i32
    %c0_i32_0 = arith.constant 0 : i32
    return %c0_i32 : i32
  }
  func.func @transform_3(%arg0: i32, %arg1: i32) -> (i32, i32, i32, i32) {
    %c0_i32 = arith.constant 0 : i32
    %c0_i32_0 = arith.constant 0 : i32
    %c0_i32_1 = arith.constant 0 : i32
    return %arg0, %c0_i32, %arg1, %c0_i32_0 : i32, i32, i32, i32
  }
}

</mosaic_0001>

<llo_original>
// kernel: tpu_custom_call.1
$region0: #{tpu_custom_call.1}
  #allocation0 [shape = 'u32[]', space=smem, size = 0x4, offset = 0x4, fixed_abs, tag = 'smem constant byte address 0x4 - core index']
  #allocation1 [shape = 'u32[72,128]{1,0:T(1,128)}', space=vmem, size = 0x9000, scoped, tag = 'internal scratch']
  %s0 = inlined_call_operand.vmem [shape: f32[2,4,18,18], index: 0, kind: input, shape index: {}]
  %s1 = inlined_call_operand.vmem [shape: f32[288], index: 1, kind: input, shape index: {}]
  %s2 = inlined_call_operand.vmem [shape: f32[8], index: 2, kind: input, shape index: {}]
  %s3 = inlined_call_operand.hbm [shape: f32[2,8,16,16], index: 3, kind: output, shape index: {}]
  %s4 = sld [smem:[#allocation0]]
  $region53: #{tpu_custom_call.1} parent=0
    _
  %s6 = ssub.s32 1, %s4
  %s7 = scalar_select 0, %s6, %s4
  $region1: #{tpu_custom_call.1} parent=0
    #allocation2 [shape = 'u8[1536]{0}', space=smem, size = 0x600, scoped, tag = 'input window, operand 1, single buffered']
    #allocation3 [shape = 's32[2]{0}', space=sflag, size = 0x8, scoped, tag = 'scoped memory for tpu_custom_call.1']
    #allocation4 [shape = 's32[2]{0}', space=sflag, size = 0x8, scoped, tag = 'scoped memory for tpu_custom_call.1']
    #allocation5 [shape = 'u8[512]{0}', space=smem, size = 0x200, scoped, tag = 'input window, operand 2, single buffered']
    #allocation6 [shape = 's32[1]{0}', space=sflag, size = 0x4, scoped, tag = 'scoped memory for tpu_custom_call.1']
    #allocation7 [shape = 'u8[131072]{0}', space=vmem, size = 0x20000, scoped, tag = 'output window, operand 0']
    %8 = vsyncpa [#allocation4], 0
    %9 = vsyncpa [#allocation6], 0
    %10 = vsyncpa [#allocation3], 0
    %s11 = scalar_lea.sflag [#allocation3], 1
    %12 = vsyncpa %s11, 0
    loop: start=0, step=1, limit=4
    $region2: #{tpu_custom_call.1} parent=1 // loop_pre_header
      _
    $region3: #{tpu_custom_call.1} parent=1 // loop_header
      %s14 = sphi 0, %s18
      %p15 = scmp.ge.s32.totalorder %s14, 4
      %s21 = sphi 0, %s33
      %s22 = sphi 0, %s29
      %s23 = sphi 0, %s21
      %s24 = sphi 0, %s22
      %s25 = sphi 0, %s23
      %s26 = sphi 0, %s24
      %s36 = sphi 0, %s38
      %s39 = sphi 0, %s36
      %s40 = sphi 0, %s39
      %s56 = sphi 0, %s40
      %s60 = sphi 0, %s60
      %s62 = sphi 0, %s60
      %s63 = sphi 0, %s62
      %s77 = sphi 0, %s63
      %s81 = sphi 0, %s81
      %s83 = sphi 0, %s81
      %s84 = sphi 0, %s83
      %s98 = sphi 0, %s84
      %s106 = sphi 0, %s108
      %s109 = sphi 0, %s106
      %s110 = sphi 0, %s109
      %s126 = sphi 0, %s110
    $region4: #{tpu_custom_call.1} parent=1 // loop_header_branch
      %17 = sbr.rel (%p15) target = $region8
    $region5: #{tpu_custom_call.1} parent=1 // loop_body
      %s19 = ssub.s32 %s14, 1
      %s20 = ssub.s32 %s14, 2
      %s27 = sadd.s32 1, %s22
      %p28 = scmp.ge.s32.totalorder %s27, 1
      %s29 = scalar_select %p28, 0, %s27
      %s30 = sadd.s32 1, %s21
      %s31 = scalar_select %p28, %s30, %s21
      %p32 = scmp.ge.s32.totalorder %s31, 2
      %s33 = scalar_select %p32, 0, %s31
      %s34 = ssub.s32 %s21, %s33
      %p35 = scmp.eq.s32.totalorder %s34, 0
      %s37 = sadd.s32 %s36, 1
      %s38 = scalar_select %p35, %s36, %s37
      %p41 = pneg %p35
      %p42 = scmp.eq.s32.totalorder %s14, 1
      %p43 = por %p41, %p42
      %p44 = scmp.ne.s32.totalorder %s36, %s39
      %p45 = scmp.eq.s32.totalorder %s14, 0
      %p46 = por %p44, %p45
      %p47 = scmp.ne.s32.totalorder %s36, %s39
      %p48 = scmp.eq.s32.totalorder %s19, 1
      %p49 = por %p47, %p48
      %p50 = scmp.ne.s32.totalorder %s39, %s40
      %p51 = scmp.eq.s32.totalorder %s19, 0
      %p52 = por %p50, %p51
      %p53 = scmp.ne.s32.totalorder %s39, %s40
      %p54 = scmp.eq.s32.totalorder %s20, 1
      %p55 = por %p53, %p54
      %p57 = scmp.ne.s32.totalorder %s40, %s56
      %p58 = scmp.eq.s32.totalorder %s20, 0
      %p59 = por %p57, %p58
      %s61 = sadd.s32 %s60, 1
      %p64 = scmp.eq.s32.totalorder %s14, 1
      %p65 = scmp.ne.s32.totalorder %s60, %s62
      %p66 = scmp.eq.s32.totalorder %s14, 0
      %p67 = por %p65, %p66
      %p68 = scmp.ne.s32.totalorder %s60, %s62
      %p69 = scmp.eq.s32.totalorder %s19, 1
      %p70 = por %p68, %p69
      %p71 = scmp.ne.s32.totalorder %s62, %s63
      %p72 = scmp.eq.s32.totalorder %s19, 0
      %p73 = por %p71, %p72
      %p74 = scmp.ne.s32.totalorder %s62, %s63
      %p75 = scmp.eq.s32.totalorder %s20, 1
      %p76 = por %p74, %p75
      %p78 = scmp.ne.s32.totalorder %s63, %s77
      %p79 = scmp.eq.s32.totalorder %s20, 0
      %p80 = por %p78, %p79
      %s82 = sadd.s32 %s81, 1
      %p85 = scmp.eq.s32.totalorder %s14, 1
      %p86 = scmp.ne.s32.totalorder %s81, %s83
      %p87 = scmp.eq.s32.totalorder %s14, 0
      %p88 = por %p86, %p87
      %p89 = scmp.ne.s32.totalorder %s81, %s83
      %p90 = scmp.eq.s32.totalorder %s19, 1
      %p91 = por %p89, %p90
      %p92 = scmp.ne.s32.totalorder %s83, %s84
      %p93 = scmp.eq.s32.totalorder %s19, 0
      %p94 = por %p92, %p93
      %p95 = scmp.ne.s32.totalorder %s83, %s84
      %p96 = scmp.eq.s32.totalorder %s20, 1
      %p97 = por %p95, %p96
      %p99 = scmp.ne.s32.totalorder %s84, %s98
      %p100 = scmp.eq.s32.totalorder %s20, 0
      %p101 = por %p99, %p100
      %s102 = ssub.s32 %s21, %s33
      %s103 = ssub.s32 %s22, %s29
      %s104 = sor.u32 %s102, %s103
      %p105 = scmp.eq.s32.totalorder %s104, 0
      %s107 = sadd.s32 %s106, 1
      %s108 = scalar_select %p105, %s106, %s107
      %p111 = pneg %p105
      %p112 = scmp.eq.s32.totalorder %s14, 1
      %p113 = por %p111, %p112
      %p114 = scmp.ne.s32.totalorder %s106, %s109
      %p115 = scmp.eq.s32.totalorder %s14, 0
      %p116 = por %p114, %p115
      %p117 = scmp.ne.s32.totalorder %s106, %s109
      %p118 = scmp.eq.s32.totalorder %s19, 1
      %p119 = por %p117, %p118
      %p120 = scmp.ne.s32.totalorder %s109, %s110
      %p121 = scmp.eq.s32.totalorder %s19, 0
      %p122 = por %p120, %p121
      %p123 = scmp.ne.s32.totalorder %s109, %s110
      %p124 = scmp.eq.s32.totalorder %s20, 1
      %p125 = por %p123, %p124
      %p127 = scmp.ne.s32.totalorder %s110, %s126
      %p128 = scmp.eq.s32.totalorder %s20, 0
      %p129 = por %p127, %p128
      %p130 = scmp.le.s32.totalorder 1, %s14
      %p131 = scmp.lt.s32.totalorder %s14, 3
      %p132 = pnand %p130, %p131
      %p133 = pneg %p132
      // Predicated region
      $region9: #{tpu_custom_call.1} parent=5 // pred_check
        _
      $region10: #{tpu_custom_call.1} parent=5 // pred_check_branch
        %135 = sbr.rel (%p132) target = $region12
      $region11: #{tpu_custom_call.1} parent=5 // pred_region
        %s136 = ssub.s32 %s14, 1
        // Predicated region
        $region13: #{tpu_custom_call.1} parent=11 // pred_check
          %p137 = pneg %p73
        $region14: #{tpu_custom_call.1} parent=11 // pred_check_branch
          %139 = sbr.rel (%p137) target = $region16
        $region15: #{tpu_custom_call.1} parent=11 // pred_region
          %141 = vsyncadd [#allocation4], 0
          %s143 = sshll.u32 %s1, 4
          %s144 = int_to_ptr.vmem [resolvable:$true] %s143
          %146 = dma.vmem_to_smem %s144, 48, [#allocation2], [#allocation4]
        $region16: #{tpu_custom_call.1} parent=11 // pred_fallthru
          _
        // Predicated region
        $region17: #{tpu_custom_call.1} parent=11 // pred_check
          %p147 = pneg %p94
        $region18: #{tpu_custom_call.1} parent=11 // pred_check_branch
          %149 = sbr.rel (%p147) target = $region20
        $region19: #{tpu_custom_call.1} parent=11 // pred_region
          %151 = vsyncadd [#allocation6], 0
          %s153 = sshll.u32 %s2, 4
          %s154 = int_to_ptr.vmem [resolvable:$true] %s153
          %156 = dma.vmem_to_smem %s154, 16, [#allocation5], [#allocation6]
        $region20: #{tpu_custom_call.1} parent=11 // pred_fallthru
          _
      $region12: #{tpu_custom_call.1} parent=5 // pred_fallthru
        _
      %p157 = scmp.lt.s32.totalorder %s14, 2
      // Predicated region
      $region21: #{tpu_custom_call.1} parent=5 // pred_check
        %p158 = pneg %p157
      $region22: #{tpu_custom_call.1} parent=5 // pred_check_branch
        %160 = sbr.rel (%p158) target = $region24
      $region23: #{tpu_custom_call.1} parent=5 // pred_region
        // Predicated region
        $region25: #{tpu_custom_call.1} parent=23 // pred_check
          %p161 = pneg %p46
        $region26: #{tpu_custom_call.1} parent=23 // pred_check_branch
          %163 = sbr.rel (%p161) target = $region28
        $region27: #{tpu_custom_call.1} parent=23 // pred_region
          %p164 = scmp.lt.s32.totalorder %s21, 1
          %s165 = scalar_select %p164, %s21, 1
          %s166 = smul.addr %s165, 12
          %s167 = smul.addr %s166, 8
          %s168 = scalar_lea.vmem %s0, %s167
        $region28: #{tpu_custom_call.1} parent=23 // pred_fallthru
          _
      $region24: #{tpu_custom_call.1} parent=5 // pred_fallthru
        _
      %p169 = scmp.le.s32.totalorder 1, %s14
      %p170 = scmp.lt.s32.totalorder %s14, 3
      %p171 = pnand %p169, %p170
      %p172 = pneg %p171
      // Predicated region
      $region29: #{tpu_custom_call.1} parent=5 // pred_check
        _
      $region30: #{tpu_custom_call.1} parent=5 // pred_check_branch
        %174 = sbr.rel (%p171) target = $region32
      $region31: #{tpu_custom_call.1} parent=5 // pred_region
        %s175 = ssub.s32 %s14, 1
        // Predicated region
        $region33: #{tpu_custom_call.1} parent=31 // pred_check
          %p176 = pneg %p73
        $region34: #{tpu_custom_call.1} parent=31 // pred_check_branch
          %178 = sbr.rel (%p176) target = $region36
        $region35: #{tpu_custom_call.1} parent=31 // pred_region
          %180 = dma.done [#allocation4], 48
        $region36: #{tpu_custom_call.1} parent=31 // pred_fallthru
          _
        // Predicated region
        $region37: #{tpu_custom_call.1} parent=31 // pred_check
          %p181 = pneg %p94
        $region38: #{tpu_custom_call.1} parent=31 // pred_check_branch
          %183 = sbr.rel (%p181) target = $region40
        $region39: #{tpu_custom_call.1} parent=31 // pred_region
          %185 = dma.done [#allocation6], 16
        $region40: #{tpu_custom_call.1} parent=31 // pred_fallthru
          _
        %186 = sfence
        %p187 = scmp.lt.s32.totalorder %s23, 1
        %s188 = scalar_select %p187, %s23, 1
        %s189 = smul.addr %s188, 12
        %s190 = smul.addr %s189, 8
        %s191 = scalar_lea.vmem %s0, %s190
        %p192 = pneg %p52
        %p193 = pneg %p49
        %p194 = pneg %p73
        %p195 = pneg %p70
        %p196 = pneg %p94
        %p197 = pneg %p91
        %p198 = pneg %p122
        %p199 = pneg %p119
        %s200 = sand.u32 %s109, 1
        %s201 = scalar_lea.sflag [#allocation3], %s200
        %s202 = sand.u32 %s109, 1
        %s203 = smul.addr %s202, 128
        %s204 = scalar_lea.vmem [#allocation7], %s203
        %p205 = scmp.lt.s32.totalorder %s23, 1
        %s206 = scalar_select %p205, %s23, 1
        %s207 = smul.addr %s206, 12
        %s208 = smul.addr %s207, 8
        %s209 = scalar_lea.vmem %s0, %s208
        %s210 = smul.u32 2, %s24
        %s211 = smul.u32 %s24, 16
        %s212 = sld [smem:[#allocation5]]
        %v213 = vstv %s212
        %s214 = sld [smem:[#allocation5 + $0x1]]
        %v215 = vstv %s214
        %s216 = sld [smem:[#allocation5 + $0x2]]
        %v217 = vstv %s216
        %s218 = sld [smem:[#allocation5 + $0x3]]
        %v219 = vstv %s218
        %s220 = sld [smem:[#allocation5 + $0x4]]
        %v221 = vstv %s220
        %s222 = sld [smem:[#allocation5 + $0x5]]
        %v223 = vstv %s222
        %s224 = sld [smem:[#allocation5 + $0x6]]
        %v225 = vstv %s224
        %s226 = sld [smem:[#allocation5 + $0x7]]
        %v227 = vstv %s226
        %s228 = scalar_lea.vmem %s209, %s211
        %v229 = vld [vmem:[%s228] sm:$0xff]
        %v230 = vld [vmem:[%s228 + $0x8] sm:$0xff]
        %s231 = sld [smem:[#allocation2]]
        %v232 = vstv %s231
        %v233 = vmul.f32 %v232, %v229
        %v234 = vmul.f32 %v232, %v230
        %v235 = vadd.f32 %v213, %v233
        %v236 = vadd.f32 %v213, %v234
        %s237 = sld [smem:[#allocation2 + $0x24]]
        %v238 = vstv %s237
        %v239 = vmul.f32 %v238, %v229
        %v240 = vmul.f32 %v238, %v230
        %v241 = vadd.f32 %v215, %v239
        %v242 = vadd.f32 %v215, %v240
        %s243 = sld [smem:[#allocation2 + $0x48]]
        %v244 = vstv %s243
        %v245 = vmul.f32 %v244, %v229
        %v246 = vmul.f32 %v244, %v230
        %v247 = vadd.f32 %v217, %v245
        %v248 = vadd.f32 %v217, %v246
        %s249 = sld [smem:[#allocation2 + $0x6c]]
        %v250 = vstv %s249
        %v251 = vmul.f32 %v250, %v229
        %v252 = vmul.f32 %v250, %v230
        %v253 = vadd.f32 %v219, %v251
        %v254 = vadd.f32 %v219, %v252
        %s255 = sld [smem:[#allocation2 + $0x90]]
        %v256 = vstv %s255
        %v257 = vmul.f32 %v256, %v229
        %v258 = vmul.f32 %v256, %v230
        %v259 = vadd.f32 %v221, %v257
        %v260 = vadd.f32 %v221, %v258
        %s261 = sld [smem:[#allocation2 + $0xb4]]
        %v262 = vstv %s261
        %v263 = vmul.f32 %v262, %v229
        %v264 = vmul.f32 %v262, %v230
        %v265 = vadd.f32 %v223, %v263
        %v266 = vadd.f32 %v223, %v264
        %s267 = sld [smem:[#allocation2 + $0xd8]]
        %v268 = vstv %s267
        %v269 = vmul.f32 %v268, %v229
        %v270 = vmul.f32 %v268, %v230
        %v271 = vadd.f32 %v225, %v269
        %v272 = vadd.f32 %v225, %v270
        %s273 = sld [smem:[#allocation2 + $0xfc]]
        %v274 = vstv %s273
        %v275 = vmul.f32 %v274, %v229
        %v276 = vmul.f32 %v274, %v230
        %v277 = vadd.f32 %v227, %v275
        %v278 = vadd.f32 %v227, %v276
        %s279 = sld [smem:[#allocation2 + $0x1]]
        %v280 = vstv %s279
        %v281 = vmul.f32 %v280, %v229
        %v282 = vmul.f32 %v280, %v230
        %285 = vrot.lane.b32.xlu0 %v281, 127
        %v286 = vpop.permute.xlu0 %285
        %287 = vrot.lane.b32.xlu0 %v282, 127
        %v288 = vpop.permute.xlu0 %287
        %v291 = vadd.f32 %v235, %v286
        %v292 = vadd.f32 %v236, %v288
        %s293 = sld [smem:[#allocation2 + $0x25]]
        %v294 = vstv %s293
        %v295 = vmul.f32 %v294, %v229
        %v296 = vmul.f32 %v294, %v230
        %299 = vrot.lane.b32.xlu0 %v295, 127
        %v300 = vpop.permute.xlu0 %299
        %301 = vrot.lane.b32.xlu0 %v296, 127
        %v302 = vpop.permute.xlu0 %301
        %v305 = vadd.f32 %v241, %v300
        %v306 = vadd.f32 %v242, %v302
        %s307 = sld [smem:[#allocation2 + $0x49]]
        %v308 = vstv %s307
        %v309 = vmul.f32 %v308, %v229
        %v310 = vmul.f32 %v308, %v230
        %313 = vrot.lane.b32.xlu0 %v309, 127
        %v314 = vpop.permute.xlu0 %313
        %315 = vrot.lane.b32.xlu0 %v310, 127
        %v316 = vpop.permute.xlu0 %315
        %v319 = vadd.f32 %v247, %v314
        %v320 = vadd.f32 %v248, %v316
        %s321 = sld [smem:[#allocation2 + $0x6d]]
        %v322 = vstv %s321
        %v323 = vmul.f32 %v322, %v229
        %v324 = vmul.f32 %v322, %v230
        %327 = vrot.lane.b32.xlu0 %v323, 127
        %v328 = vpop.permute.xlu0 %327
        %329 = vrot.lane.b32.xlu0 %v324, 127
        %v330 = vpop.permute.xlu0 %329
        %v333 = vadd.f32 %v253, %v328
        %v334 = vadd.f32 %v254, %v330
        %s335 = sld [smem:[#allocation2 + $0x91]]
        %v336 = vstv %s335
        %v337 = vmul.f32 %v336, %v229
        %v338 = vmul.f32 %v336, %v230
        %341 = vrot.lane.b32.xlu0 %v337, 127
        %v342 = vpop.permute.xlu0 %341
        %343 = vrot.lane.b32.xlu0 %v338, 127
        %v344 = vpop.permute.xlu0 %343
        %v347 = vadd.f32 %v259, %v342
        %v348 = vadd.f32 %v260, %v344
        %s349 = sld [smem:[#allocation2 + $0xb5]]
        %v350 = vstv %s349
        %v351 = vmul.f32 %v350, %v229
        %v352 = vmul.f32 %v350, %v230
        %355 = vrot.lane.b32.xlu0 %v351, 127
        %v356 = vpop.permute.xlu0 %355
        %357 = vrot.lane.b32.xlu0 %v352, 127
        %v358 = vpop.permute.xlu0 %357
        %v361 = vadd.f32 %v265, %v356
        %v362 = vadd.f32 %v266, %v358
        %s363 = sld [smem:[#allocation2 + $0xd9]]
        %v364 = vstv %s363
        %v365 = vmul.f32 %v364, %v229
        %v366 = vmul.f32 %v364, %v230
        %369 = vrot.lane.b32.xlu0 %v365, 127
        %v370 = vpop.permute.xlu0 %369
        %371 = vrot.lane.b32.xlu0 %v366, 127
        %v372 = vpop.permute.xlu0 %371
        %v375 = vadd.f32 %v271, %v370
        %v376 = vadd.f32 %v272, %v372
        %s377 = sld [smem:[#allocation2 + $0xfd]]
        %v378 = vstv %s377
        %v379 = vmul.f32 %v378, %v229
        %v380 = vmul.f32 %v378, %v230
        %383 = vrot.lane.b32.xlu0 %v379, 127
        %v384 = vpop.permute.xlu0 %383
        %385 = vrot.lane.b32.xlu0 %v380, 127
        %v386 = vpop.permute.xlu0 %385
        %v389 = vadd.f32 %v277, %v384
        %v390 = vadd.f32 %v278, %v386
        %s391 = sld [smem:[#allocation2 + $0x2]]
        %v392 = vstv %s391
        %v393 = vmul.f32 %v392, %v229
        %v394 = vmul.f32 %v392, %v230
        %397 = vrot.lane.b32.xlu0 %v393, 126
        %v398 = vpop.permute.xlu0 %397
        %399 = vrot.lane.b32.xlu0 %v394, 126
        %v400 = vpop.permute.xlu0 %399
        %v403 = vadd.f32 %v291, %v398
        %v404 = vadd.f32 %v292, %v400
        %s405 = sld [smem:[#allocation2 + $0x26]]
        %v406 = vstv %s405
        %v407 = vmul.f32 %v406, %v229
        %v408 = vmul.f32 %v406, %v230
        %411 = vrot.lane.b32.xlu0 %v407, 126
        %v412 = vpop.permute.xlu0 %411
        %413 = vrot.lane.b32.xlu0 %v408, 126
        %v414 = vpop.permute.xlu0 %413
        %v417 = vadd.f32 %v305, %v412
        %v418 = vadd.f32 %v306, %v414
        %s419 = sld [smem:[#allocation2 + $0x4a]]
        %v420 = vstv %s419
        %v421 = vmul.f32 %v420, %v229
        %v422 = vmul.f32 %v420, %v230
        %425 = vrot.lane.b32.xlu0 %v421, 126
        %v426 = vpop.permute.xlu0 %425
        %427 = vrot.lane.b32.xlu0 %v422, 126
        %v428 = vpop.permute.xlu0 %427
        %v431 = vadd.f32 %v319, %v426
        %v432 = vadd.f32 %v320, %v428
        %s433 = sld [smem:[#allocation2 + $0x6e]]
        %v434 = vstv %s433
        %v435 = vmul.f32 %v434, %v229
        %v436 = vmul.f32 %v434, %v230
        %439 = vrot.lane.b32.xlu0 %v435, 126
        %v440 = vpop.permute.xlu0 %439
        %441 = vrot.lane.b32.xlu0 %v436, 126
        %v442 = vpop.permute.xlu0 %441
        %v445 = vadd.f32 %v333, %v440
        %v446 = vadd.f32 %v334, %v442
        %s447 = sld [smem:[#allocation2 + $0x92]]
        %v448 = vstv %s447
        %v449 = vmul.f32 %v448, %v229
        %v450 = vmul.f32 %v448, %v230
        %453 = vrot.lane.b32.xlu0 %v449, 126
        %v454 = vpop.permute.xlu0 %453
        %455 = vrot.lane.b32.xlu0 %v450, 126
        %v456 = vpop.permute.xlu0 %455
        %v459 = vadd.f32 %v347, %v454
        %v460 = vadd.f32 %v348, %v456
        %s461 = sld [smem:[#allocation2 + $0xb6]]
        %v462 = vstv %s461
        %v463 = vmul.f32 %v462, %v229
        %v464 = vmul.f32 %v462, %v230
        %467 = vrot.lane.b32.xlu0 %v463, 126
        %v468 = vpop.permute.xlu0 %467
        %469 = vrot.lane.b32.xlu0 %v464, 126
        %v470 = vpop.permute.xlu0 %469
        %v473 = vadd.f32 %v361, %v468
        %v474 = vadd.f32 %v362, %v470
        %s475 = sld [smem:[#allocation2 + $0xda]]
        %v476 = vstv %s475
        %v477 = vmul.f32 %v476, %v229
        %v478 = vmul.f32 %v476, %v230
        %481 = vrot.lane.b32.xlu0 %v477, 126
        %v482 = vpop.permute.xlu0 %481
        %483 = vrot.lane.b32.xlu0 %v478, 126
        %v484 = vpop.permute.xlu0 %483
        %v487 = vadd.f32 %v375, %v482
        %v488 = vadd.f32 %v376, %v484
        %s489 = sld [smem:[#allocation2 + $0xfe]]
        %v490 = vstv %s489
        %v491 = vmul.f32 %v490, %v229
        %v492 = vmul.f32 %v490, %v230
        %495 = vrot.lane.b32.xlu0 %v491, 126
        %v496 = vpop.permute.xlu0 %495
        %497 = vrot.lane.b32.xlu0 %v492, 126
        %v498 = vpop.permute.xlu0 %497
        %v501 = vadd.f32 %v389, %v496
        %v502 = vadd.f32 %v390, %v498
        %s503 = sadd.s32 %s211, 1
        %s504 = scalar_lea.vmem %s209, %s503
        %v505 = vld [vmem:[%s504] sm:$0xff]
        %v506 = vld [vmem:[%s504 + $0x8] sm:$0xff]
        %s507 = sld [smem:[#allocation2 + $0x3]]
        %v508 = vstv %s507
        %v509 = vmul.f32 %v508, %v505
        %v510 = vmul.f32 %v508, %v506
        %v511 = vadd.f32 %v403, %v509
        %v512 = vadd.f32 %v404, %v510
        %s513 = sld [smem:[#allocation2 + $0x27]]
        %v514 = vstv %s513
        %v515 = vmul.f32 %v514, %v505
        %v516 = vmul.f32 %v514, %v506
        %v517 = vadd.f32 %v417, %v515
        %v518 = vadd.f32 %v418, %v516
        %s519 = sld [smem:[#allocation2 + $0x4b]]
        %v520 = vstv %s519
        %v521 = vmul.f32 %v520, %v505
        %v522 = vmul.f32 %v520, %v506
        %v523 = vadd.f32 %v431, %v521
        %v524 = vadd.f32 %v432, %v522
        %s525 = sld [smem:[#allocation2 + $0x6f]]
        %v526 = vstv %s525
        %v527 = vmul.f32 %v526, %v505
        %v528 = vmul.f32 %v526, %v506
        %v529 = vadd.f32 %v445, %v527
        %v530 = vadd.f32 %v446, %v528
        %s531 = sld [smem:[#allocation2 + $0x93]]
        %v532 = vstv %s531
        %v533 = vmul.f32 %v532, %v505
        %v534 = vmul.f32 %v532, %v506
        %v535 = vadd.f32 %v459, %v533
        %v536 = vadd.f32 %v460, %v534
        %s537 = sld [smem:[#allocation2 + $0xb7]]
        %v538 = vstv %s537
        %v539 = vmul.f32 %v538, %v505
        %v540 = vmul.f32 %v538, %v506
        %v541 = vadd.f32 %v473, %v539
        %v542 = vadd.f32 %v474, %v540
        %s543 = sld [smem:[#allocation2 + $0xdb]]
        %v544 = vstv %s543
        %v545 = vmul.f32 %v544, %v505
        %v546 = vmul.f32 %v544, %v506
        %v547 = vadd.f32 %v487, %v545
        %v548 = vadd.f32 %v488, %v546
        %s549 = sld [smem:[#allocation2 + $0xff]]
        %v550 = vstv %s549
        %v551 = vmul.f32 %v550, %v505
        %v552 = vmul.f32 %v550, %v506
        %v553 = vadd.f32 %v501, %v551
        %v554 = vadd.f32 %v502, %v552
        %s555 = sld [smem:[#allocation2 + $0x4]]
        %v556 = vstv %s555
        %v557 = vmul.f32 %v556, %v505
        %v558 = vmul.f32 %v556, %v506
        %561 = vrot.lane.b32.xlu0 %v557, 127
        %v562 = vpop.permute.xlu0 %561
        %563 = vrot.lane.b32.xlu0 %v558, 127
        %v564 = vpop.permute.xlu0 %563
        %v567 = vadd.f32 %v511, %v562
        %v568 = vadd.f32 %v512, %v564
        %s569 = sld [smem:[#allocation2 + $0x28]]
        %v570 = vstv %s569
        %v571 = vmul.f32 %v570, %v505
        %v572 = vmul.f32 %v570, %v506
        %575 = vrot.lane.b32.xlu0 %v571, 127
        %v576 = vpop.permute.xlu0 %575
        %577 = vrot.lane.b32.xlu0 %v572, 127
        %v578 = vpop.permute.xlu0 %577
        %v581 = vadd.f32 %v517, %v576
        %v582 = vadd.f32 %v518, %v578
        %s583 = sld [smem:[#allocation2 + $0x4c]]
        %v584 = vstv %s583
        %v585 = vmul.f32 %v584, %v505
        %v586 = vmul.f32 %v584, %v506
        %589 = vrot.lane.b32.xlu0 %v585, 127
        %v590 = vpop.permute.xlu0 %589
        %591 = vrot.lane.b32.xlu0 %v586, 127
        %v592 = vpop.permute.xlu0 %591
        %v595 = vadd.f32 %v523, %v590
        %v596 = vadd.f32 %v524, %v592
        %s597 = sld [smem:[#allocation2 + $0x70]]
        %v598 = vstv %s597
        %v599 = vmul.f32 %v598, %v505
        %v600 = vmul.f32 %v598, %v506
        %603 = vrot.lane.b32.xlu0 %v599, 127
        %v604 = vpop.permute.xlu0 %603
        %605 = vrot.lane.b32.xlu0 %v600, 127
        %v606 = vpop.permute.xlu0 %605
        %v609 = vadd.f32 %v529, %v604
        %v610 = vadd.f32 %v530, %v606
        %s611 = sld [smem:[#allocation2 + $0x94]]
        %v612 = vstv %s611
        %v613 = vmul.f32 %v612, %v505
        %v614 = vmul.f32 %v612, %v506
        %617 = vrot.lane.b32.xlu0 %v613, 127
        %v618 = vpop.permute.xlu0 %617
        %619 = vrot.lane.b32.xlu0 %v614, 127
        %v620 = vpop.permute.xlu0 %619
        %v623 = vadd.f32 %v535, %v618
        %v624 = vadd.f32 %v536, %v620
        %s625 = sld [smem:[#allocation2 + $0xb8]]
        %v626 = vstv %s625
        %v627 = vmul.f32 %v626, %v505
        %v628 = vmul.f32 %v626, %v506
        %631 = vrot.lane.b32.xlu0 %v627, 127
        %v632 = vpop.permute.xlu0 %631
        %633 = vrot.lane.b32.xlu0 %v628, 127
        %v634 = vpop.permute.xlu0 %633
        %v637 = vadd.f32 %v541, %v632
        %v638 = vadd.f32 %v542, %v634
        %s639 = sld [smem:[#allocation2 + $0xdc]]
        %v640 = vstv %s639
        %v641 = vmul.f32 %v640, %v505
        %v642 = vmul.f32 %v640, %v506
        %645 = vrot.lane.b32.xlu0 %v641, 127
        %v646 = vpop.permute.xlu0 %645
        %647 = vrot.lane.b32.xlu0 %v642, 127
        %v648 = vpop.permute.xlu0 %647
        %v651 = vadd.f32 %v547, %v646
        %v652 = vadd.f32 %v548, %v648
        %s653 = sld [smem:[#allocation2 + $0x100]]
        %v654 = vstv %s653
        %v655 = vmul.f32 %v654, %v505
        %v656 = vmul.f32 %v654, %v506
        %659 = vrot.lane.b32.xlu0 %v655, 127
        %v660 = vpop.permute.xlu0 %659
        %661 = vrot.lane.b32.xlu0 %v656, 127
        %v662 = vpop.permute.xlu0 %661
        %v665 = vadd.f32 %v553, %v660
        %v666 = vadd.f32 %v554, %v662
        %s667 = sld [smem:[#allocation2 + $0x5]]
        %v668 = vstv %s667
        %v669 = vmul.f32 %v668, %v505
        %v670 = vmul.f32 %v668, %v506
        %673 = vrot.lane.b32.xlu0 %v669, 126
        %v674 = vpop.permute.xlu0 %673
        %675 = vrot.lane.b32.xlu0 %v670, 126
        %v676 = vpop.permute.xlu0 %675
        %v679 = vadd.f32 %v567, %v674
        %v680 = vadd.f32 %v568, %v676
        %s681 = sld [smem:[#allocation2 + $0x29]]
        %v682 = vstv %s681
        %v683 = vmul.f32 %v682, %v505
        %v684 = vmul.f32 %v682, %v506
        %687 = vrot.lane.b32.xlu0 %v683, 126
        %v688 = vpop.permute.xlu0 %687
        %689 = vrot.lane.b32.xlu0 %v684, 126
        %v690 = vpop.permute.xlu0 %689
        %v693 = vadd.f32 %v581, %v688
        %v694 = vadd.f32 %v582, %v690
        %s695 = sld [smem:[#allocation2 + $0x4d]]
        %v696 = vstv %s695
        %v697 = vmul.f32 %v696, %v505
        %v698 = vmul.f32 %v696, %v506
        %701 = vrot.lane.b32.xlu0 %v697, 126
        %v702 = vpop.permute.xlu0 %701
        %703 = vrot.lane.b32.xlu0 %v698, 126
        %v704 = vpop.permute.xlu0 %703
        %v707 = vadd.f32 %v595, %v702
        %v708 = vadd.f32 %v596, %v704
        %s709 = sld [smem:[#allocation2 + $0x71]]
        %v710 = vstv %s709
        %v711 = vmul.f32 %v710, %v505
        %v712 = vmul.f32 %v710, %v506
        %715 = vrot.lane.b32.xlu0 %v711, 126
        %v716 = vpop.permute.xlu0 %715
        %717 = vrot.lane.b32.xlu0 %v712, 126
        %v718 = vpop.permute.xlu0 %717
        %v721 = vadd.f32 %v609, %v716
        %v722 = vadd.f32 %v610, %v718
        %s723 = sld [smem:[#allocation2 + $0x95]]
        %v724 = vstv %s723
        %v725 = vmul.f32 %v724, %v505
        %v726 = vmul.f32 %v724, %v506
        %729 = vrot.lane.b32.xlu0 %v725, 126
        %v730 = vpop.permute.xlu0 %729
        %731 = vrot.lane.b32.xlu0 %v726, 126
        %v732 = vpop.permute.xlu0 %731
        %v735 = vadd.f32 %v623, %v730
        %v736 = vadd.f32 %v624, %v732
        %s737 = sld [smem:[#allocation2 + $0xb9]]
        %v738 = vstv %s737
        %v739 = vmul.f32 %v738, %v505
        %v740 = vmul.f32 %v738, %v506
        %743 = vrot.lane.b32.xlu0 %v739, 126
        %v744 = vpop.permute.xlu0 %743
        %745 = vrot.lane.b32.xlu0 %v740, 126
        %v746 = vpop.permute.xlu0 %745
        %v749 = vadd.f32 %v637, %v744
        %v750 = vadd.f32 %v638, %v746
        %s751 = sld [smem:[#allocation2 + $0xdd]]
        %v752 = vstv %s751
        %v753 = vmul.f32 %v752, %v505
        %v754 = vmul.f32 %v752, %v506
        %757 = vrot.lane.b32.xlu0 %v753, 126
        %v758 = vpop.permute.xlu0 %757
        %759 = vrot.lane.b32.xlu0 %v754, 126
        %v760 = vpop.permute.xlu0 %759
        %v763 = vadd.f32 %v651, %v758
        %v764 = vadd.f32 %v652, %v760
        %s765 = sld [smem:[#allocation2 + $0x101]]
        %v766 = vstv %s765
        %v767 = vmul.f32 %v766, %v505
        %v768 = vmul.f32 %v766, %v506
        %771 = vrot.lane.b32.xlu0 %v767, 126
        %v772 = vpop.permute.xlu0 %771
        %773 = vrot.lane.b32.xlu0 %v768, 126
        %v774 = vpop.permute.xlu0 %773
        %v777 = vadd.f32 %v665, %v772
        %v778 = vadd.f32 %v666, %v774
        %s779 = sadd.s32 %s211, 2
        %s780 = scalar_lea.vmem %s209, %s779
        %v781 = vld [vmem:[%s780] sm:$0xff]
        %v782 = vld [vmem:[%s780 + $0x8] sm:$0xff]
        %s783 = sld [smem:[#allocation2 + $0x6]]
        %v784 = vstv %s783
        %v785 = vmul.f32 %v784, %v781
        %v786 = vmul.f32 %v784, %v782
        %v787 = vadd.f32 %v679, %v785
        %v788 = vadd.f32 %v680, %v786
        %s789 = sld [smem:[#allocation2 + $0x2a]]
        %v790 = vstv %s789
        %v791 = vmul.f32 %v790, %v781
        %v792 = vmul.f32 %v790, %v782
        %v793 = vadd.f32 %v693, %v791
        %v794 = vadd.f32 %v694, %v792
        %s795 = sld [smem:[#allocation2 + $0x4e]]
        %v796 = vstv %s795
        %v797 = vmul.f32 %v796, %v781
        %v798 = vmul.f32 %v796, %v782
        %v799 = vadd.f32 %v707, %v797
        %v800 = vadd.f32 %v708, %v798
        %s801 = sld [smem:[#allocation2 + $0x72]]
        %v802 = vstv %s801
        %v803 = vmul.f32 %v802, %v781
        %v804 = vmul.f32 %v802, %v782
        %v805 = vadd.f32 %v721, %v803
        %v806 = vadd.f32 %v722, %v804
        %s807 = sld [smem:[#allocation2 + $0x96]]
        %v808 = vstv %s807
        %v809 = vmul.f32 %v808, %v781
        %v810 = vmul.f32 %v808, %v782
        %v811 = vadd.f32 %v735, %v809
        %v812 = vadd.f32 %v736, %v810
        %s813 = sld [smem:[#allocation2 + $0xba]]
        %v814 = vstv %s813
        %v815 = vmul.f32 %v814, %v781
        %v816 = vmul.f32 %v814, %v782
        %v817 = vadd.f32 %v749, %v815
        %v818 = vadd.f32 %v750, %v816
        %s819 = sld [smem:[#allocation2 + $0xde]]
        %v820 = vstv %s819
        %v821 = vmul.f32 %v820, %v781
        %v822 = vmul.f32 %v820, %v782
        %v823 = vadd.f32 %v763, %v821
        %v824 = vadd.f32 %v764, %v822
        %s825 = sld [smem:[#allocation2 + $0x102]]
        %v826 = vstv %s825
        %v827 = vmul.f32 %v826, %v781
        %v828 = vmul.f32 %v826, %v782
        %v829 = vadd.f32 %v777, %v827
        %v830 = vadd.f32 %v778, %v828
        %s831 = sld [smem:[#allocation2 + $0x7]]
        %v832 = vstv %s831
        %v833 = vmul.f32 %v832, %v781
        %v834 = vmul.f32 %v832, %v782
        %837 = vrot.lane.b32.xlu0 %v833, 127
        %v838 = vpop.permute.xlu0 %837
        %839 = vrot.lane.b32.xlu0 %v834, 127
        %v840 = vpop.permute.xlu0 %839
        %v843 = vadd.f32 %v787, %v838
        %v844 = vadd.f32 %v788, %v840
        %s845 = sld [smem:[#allocation2 + $0x2b]]
        %v846 = vstv %s845
        %v847 = vmul.f32 %v846, %v781
        %v848 = vmul.f32 %v846, %v782
        %851 = vrot.lane.b32.xlu0 %v847, 127
        %v852 = vpop.permute.xlu0 %851
        %853 = vrot.lane.b32.xlu0 %v848, 127
        %v854 = vpop.permute.xlu0 %853
        %v857 = vadd.f32 %v793, %v852
        %v858 = vadd.f32 %v794, %v854
        %s859 = sld [smem:[#allocation2 + $0x4f]]
        %v860 = vstv %s859
        %v861 = vmul.f32 %v860, %v781
        %v862 = vmul.f32 %v860, %v782
        %865 = vrot.lane.b32.xlu0 %v861, 127
        %v866 = vpop.permute.xlu0 %865
        %867 = vrot.lane.b32.xlu0 %v862, 127
        %v868 = vpop.permute.xlu0 %867
        %v871 = vadd.f32 %v799, %v866
        %v872 = vadd.f32 %v800, %v868
        %s873 = sld [smem:[#allocation2 + $0x73]]
        %v874 = vstv %s873
        %v875 = vmul.f32 %v874, %v781
        %v876 = vmul.f32 %v874, %v782
        %879 = vrot.lane.b32.xlu0 %v875, 127
        %v880 = vpop.permute.xlu0 %879
        %881 = vrot.lane.b32.xlu0 %v876, 127
        %v882 = vpop.permute.xlu0 %881
        %v885 = vadd.f32 %v805, %v880
        %v886 = vadd.f32 %v806, %v882
        %s887 = sld [smem:[#allocation2 + $0x97]]
        %v888 = vstv %s887
        %v889 = vmul.f32 %v888, %v781
        %v890 = vmul.f32 %v888, %v782
        %893 = vrot.lane.b32.xlu0 %v889, 127
        %v894 = vpop.permute.xlu0 %893
        %895 = vrot.lane.b32.xlu0 %v890, 127
        %v896 = vpop.permute.xlu0 %895
        %v899 = vadd.f32 %v811, %v894
        %v900 = vadd.f32 %v812, %v896
        %s901 = sld [smem:[#allocation2 + $0xbb]]
        %v902 = vstv %s901
        %v903 = vmul.f32 %v902, %v781
        %v904 = vmul.f32 %v902, %v782
        %907 = vrot.lane.b32.xlu0 %v903, 127
        %v908 = vpop.permute.xlu0 %907
        %909 = vrot.lane.b32.xlu0 %v904, 127
        %v910 = vpop.permute.xlu0 %909
        %v913 = vadd.f32 %v817, %v908
        %v914 = vadd.f32 %v818, %v910
        %s915 = sld [smem:[#allocation2 + $0xdf]]
        %v916 = vstv %s915
        %v917 = vmul.f32 %v916, %v781
        %v918 = vmul.f32 %v916, %v782
        %921 = vrot.lane.b32.xlu0 %v917, 127
        %v922 = vpop.permute.xlu0 %921
        %923 = vrot.lane.b32.xlu0 %v918, 127
        %v924 = vpop.permute.xlu0 %923
        %v927 = vadd.f32 %v823, %v922
        %v928 = vadd.f32 %v824, %v924
        %s929 = sld [smem:[#allocation2 + $0x103]]
        %v930 = vstv %s929
        %v931 = vmul.f32 %v930, %v781
        %v932 = vmul.f32 %v930, %v782
        %935 = vrot.lane.b32.xlu0 %v931, 127
        %v936 = vpop.permute.xlu0 %935
        %937 = vrot.lane.b32.xlu0 %v932, 127
        %v938 = vpop.permute.xlu0 %937
        %v941 = vadd.f32 %v829, %v936
        %v942 = vadd.f32 %v830, %v938
        %s943 = sld [smem:[#allocation2 + $0x8]]
        %v944 = vstv %s943
        %v945 = vmul.f32 %v944, %v781
        %v946 = vmul.f32 %v944, %v782
        %949 = vrot.lane.b32.xlu0 %v945, 126
        %v950 = vpop.permute.xlu0 %949
        %951 = vrot.lane.b32.xlu0 %v946, 126
        %v952 = vpop.permute.xlu0 %951
        %v955 = vadd.f32 %v843, %v950
        %v956 = vadd.f32 %v844, %v952
        %s957 = sld [smem:[#allocation2 + $0x2c]]
        %v958 = vstv %s957
        %v959 = vmul.f32 %v958, %v781
        %v960 = vmul.f32 %v958, %v782
        %963 = vrot.lane.b32.xlu0 %v959, 126
        %v964 = vpop.permute.xlu0 %963
        %965 = vrot.lane.b32.xlu0 %v960, 126
        %v966 = vpop.permute.xlu0 %965
        %v969 = vadd.f32 %v857, %v964
        %v970 = vadd.f32 %v858, %v966
        %s971 = sld [smem:[#allocation2 + $0x50]]
        %v972 = vstv %s971
        %v973 = vmul.f32 %v972, %v781
        %v974 = vmul.f32 %v972, %v782
        %977 = vrot.lane.b32.xlu0 %v973, 126
        %v978 = vpop.permute.xlu0 %977
        %979 = vrot.lane.b32.xlu0 %v974, 126
        %v980 = vpop.permute.xlu0 %979
        %v983 = vadd.f32 %v871, %v978
        %v984 = vadd.f32 %v872, %v980
        %s985 = sld [smem:[#allocation2 + $0x74]]
        %v986 = vstv %s985
        %v987 = vmul.f32 %v986, %v781
        %v988 = vmul.f32 %v986, %v782
        %991 = vrot.lane.b32.xlu0 %v987, 126
        %v992 = vpop.permute.xlu0 %991
        %993 = vrot.lane.b32.xlu0 %v988, 126
        %v994 = vpop.permute.xlu0 %993
        %v997 = vadd.f32 %v885, %v992
        %v998 = vadd.f32 %v886, %v994
        %s999 = sld [smem:[#allocation2 + $0x98]]
        %v1000 = vstv %s999
        %v1001 = vmul.f32 %v1000, %v781
        %v1002 = vmul.f32 %v1000, %v782
        %1005 = vrot.lane.b32.xlu0 %v1001, 126
        %v1006 = vpop.permute.xlu0 %1005
        %1007 = vrot.lane.b32.xlu0 %v1002, 126
        %v1008 = vpop.permute.xlu0 %1007
        %v1011 = vadd.f32 %v899, %v1006
        %v1012 = vadd.f32 %v900, %v1008
        %s1013 = sld [smem:[#allocation2 + $0xbc]]
        %v1014 = vstv %s1013
        %v1015 = vmul.f32 %v1014, %v781
        %v1016 = vmul.f32 %v1014, %v782
        %1019 = vrot.lane.b32.xlu0 %v1015, 126
        %v1020 = vpop.permute.xlu0 %1019
        %1021 = vrot.lane.b32.xlu0 %v1016, 126
        %v1022 = vpop.permute.xlu0 %1021
        %v1025 = vadd.f32 %v913, %v1020
        %v1026 = vadd.f32 %v914, %v1022
        %s1027 = sld [smem:[#allocation2 + $0xe0]]
        %v1028 = vstv %s1027
        %v1029 = vmul.f32 %v1028, %v781
        %v1030 = vmul.f32 %v1028, %v782
        %1033 = vrot.lane.b32.xlu0 %v1029, 126
        %v1034 = vpop.permute.xlu0 %1033
        %1035 = vrot.lane.b32.xlu0 %v1030, 126
        %v1036 = vpop.permute.xlu0 %1035
        %v1039 = vadd.f32 %v927, %v1034
        %v1040 = vadd.f32 %v928, %v1036
        %s1041 = sld [smem:[#allocation2 + $0x104]]
        %v1042 = vstv %s1041
        %v1043 = vmul.f32 %v1042, %v781
        %v1044 = vmul.f32 %v1042, %v782
        %1047 = vrot.lane.b32.xlu0 %v1043, 126
        %v1048 = vpop.permute.xlu0 %1047
        %1049 = vrot.lane.b32.xlu0 %v1044, 126
        %v1050 = vpop.permute.xlu0 %1049
        %v1053 = vadd.f32 %v941, %v1048
        %v1054 = vadd.f32 %v942, %v1050
        %s1055 = sadd.s32 %s211, 24
        %s1056 = scalar_lea.vmem %s209, %s1055
        %v1057 = vld [vmem:[%s1056] sm:$0xff]
        %v1058 = vld [vmem:[%s1056 + $0x8] sm:$0xff]
        %s1059 = sld [smem:[#allocation2 + $0x9]]
        %v1060 = vstv %s1059
        %v1061 = vmul.f32 %v1060, %v1057
        %v1062 = vmul.f32 %v1060, %v1058
        %v1063 = vadd.f32 %v955, %v1061
        %v1064 = vadd.f32 %v956, %v1062
        %s1065 = sld [smem:[#allocation2 + $0x2d]]
        %v1066 = vstv %s1065
        %v1067 = vmul.f32 %v1066, %v1057
        %v1068 = vmul.f32 %v1066, %v1058
        %v1069 = vadd.f32 %v969, %v1067
        %v1070 = vadd.f32 %v970, %v1068
        %s1071 = sld [smem:[#allocation2 + $0x51]]
        %v1072 = vstv %s1071
        %v1073 = vmul.f32 %v1072, %v1057
        %v1074 = vmul.f32 %v1072, %v1058
        %v1075 = vadd.f32 %v983, %v1073
        %v1076 = vadd.f32 %v984, %v1074
        %s1077 = sld [smem:[#allocation2 + $0x75]]
        %v1078 = vstv %s1077
        %v1079 = vmul.f32 %v1078, %v1057
        %v1080 = vmul.f32 %v1078, %v1058
        %v1081 = vadd.f32 %v997, %v1079
        %v1082 = vadd.f32 %v998, %v1080
        %s1083 = sld [smem:[#allocation2 + $0x99]]
        %v1084 = vstv %s1083
        %v1085 = vmul.f32 %v1084, %v1057
        %v1086 = vmul.f32 %v1084, %v1058
        %v1087 = vadd.f32 %v1011, %v1085
        %v1088 = vadd.f32 %v1012, %v1086
        %s1089 = sld [smem:[#allocation2 + $0xbd]]
        %v1090 = vstv %s1089
        %v1091 = vmul.f32 %v1090, %v1057
        %v1092 = vmul.f32 %v1090, %v1058
        %v1093 = vadd.f32 %v1025, %v1091
        %v1094 = vadd.f32 %v1026, %v1092
        %s1095 = sld [smem:[#allocation2 + $0xe1]]
        %v1096 = vstv %s1095
        %v1097 = vmul.f32 %v1096, %v1057
        %v1098 = vmul.f32 %v1096, %v1058
        %v1099 = vadd.f32 %v1039, %v1097
        %v1100 = vadd.f32 %v1040, %v1098
        %s1101 = sld [smem:[#allocation2 + $0x105]]
        %v1102 = vstv %s1101
        %v1103 = vmul.f32 %v1102, %v1057
        %v1104 = vmul.f32 %v1102, %v1058
        %v1105 = vadd.f32 %v1053, %v1103
        %v1106 = vadd.f32 %v1054, %v1104
        %s1107 = sld [smem:[#allocation2 + $0xa]]
        %v1108 = vstv %s1107
        %v1109 = vmul.f32 %v1108, %v1057
        %v1110 = vmul.f32 %v1108, %v1058
        %1113 = vrot.lane.b32.xlu0 %v1109, 127
        %v1114 = vpop.permute.xlu0 %1113
        %1115 = vrot.lane.b32.xlu0 %v1110, 127
        %v1116 = vpop.permute.xlu0 %1115
        %v1119 = vadd.f32 %v1063, %v1114
        %v1120 = vadd.f32 %v1064, %v1116
        %s1121 = sld [smem:[#allocation2 + $0x2e]]
        %v1122 = vstv %s1121
        %v1123 = vmul.f32 %v1122, %v1057
        %v1124 = vmul.f32 %v1122, %v1058
        %1127 = vrot.lane.b32.xlu0 %v1123, 127
        %v1128 = vpop.permute.xlu0 %1127
        %1129 = vrot.lane.b32.xlu0 %v1124, 127
        %v1130 = vpop.permute.xlu0 %1129
        %v1133 = vadd.f32 %v1069, %v1128
        %v1134 = vadd.f32 %v1070, %v1130
        %s1135 = sld [smem:[#allocation2 + $0x52]]
        %v1136 = vstv %s1135
        %v1137 = vmul.f32 %v1136, %v1057
        %v1138 = vmul.f32 %v1136, %v1058
        %1141 = vrot.lane.b32.xlu0 %v1137, 127
        %v1142 = vpop.permute.xlu0 %1141
        %1143 = vrot.lane.b32.xlu0 %v1138, 127
        %v1144 = vpop.permute.xlu0 %1143
        %v1147 = vadd.f32 %v1075, %v1142
        %v1148 = vadd.f32 %v1076, %v1144
        %s1149 = sld [smem:[#allocation2 + $0x76]]
        %v1150 = vstv %s1149
        %v1151 = vmul.f32 %v1150, %v1057
        %v1152 = vmul.f32 %v1150, %v1058
        %1155 = vrot.lane.b32.xlu0 %v1151, 127
        %v1156 = vpop.permute.xlu0 %1155
        %1157 = vrot.lane.b32.xlu0 %v1152, 127
        %v1158 = vpop.permute.xlu0 %1157
        %v1161 = vadd.f32 %v1081, %v1156
        %v1162 = vadd.f32 %v1082, %v1158
        %s1163 = sld [smem:[#allocation2 + $0x9a]]
        %v1164 = vstv %s1163
        %v1165 = vmul.f32 %v1164, %v1057
        %v1166 = vmul.f32 %v1164, %v1058
        %1169 = vrot.lane.b32.xlu0 %v1165, 127
        %v1170 = vpop.permute.xlu0 %1169
        %1171 = vrot.lane.b32.xlu0 %v1166, 127
        %v1172 = vpop.permute.xlu0 %1171
        %v1175 = vadd.f32 %v1087, %v1170
        %v1176 = vadd.f32 %v1088, %v1172
        %s1177 = sld [smem:[#allocation2 + $0xbe]]
        %v1178 = vstv %s1177
        %v1179 = vmul.f32 %v1178, %v1057
        %v1180 = vmul.f32 %v1178, %v1058
        %1183 = vrot.lane.b32.xlu0 %v1179, 127
        %v1184 = vpop.permute.xlu0 %1183
        %1185 = vrot.lane.b32.xlu0 %v1180, 127
        %v1186 = vpop.permute.xlu0 %1185
        %v1189 = vadd.f32 %v1093, %v1184
        %v1190 = vadd.f32 %v1094, %v1186
        %s1191 = sld [smem:[#allocation2 + $0xe2]]
        %v1192 = vstv %s1191
        %v1193 = vmul.f32 %v1192, %v1057
        %v1194 = vmul.f32 %v1192, %v1058
        %1197 = vrot.lane.b32.xlu0 %v1193, 127
        %v1198 = vpop.permute.xlu0 %1197
        %1199 = vrot.lane.b32.xlu0 %v1194, 127
        %v1200 = vpop.permute.xlu0 %1199
        %v1203 = vadd.f32 %v1099, %v1198
        %v1204 = vadd.f32 %v1100, %v1200
        %s1205 = sld [smem:[#allocation2 + $0x106]]
        %v1206 = vstv %s1205
        %v1207 = vmul.f32 %v1206, %v1057
        %v1208 = vmul.f32 %v1206, %v1058
        %1211 = vrot.lane.b32.xlu0 %v1207, 127
        %v1212 = vpop.permute.xlu0 %1211
        %1213 = vrot.lane.b32.xlu0 %v1208, 127
        %v1214 = vpop.permute.xlu0 %1213
        %v1217 = vadd.f32 %v1105, %v1212
        %v1218 = vadd.f32 %v1106, %v1214
        %s1219 = sld [smem:[#allocation2 + $0xb]]
        %v1220 = vstv %s1219
        %v1221 = vmul.f32 %v1220, %v1057
        %v1222 = vmul.f32 %v1220, %v1058
        %1225 = vrot.lane.b32.xlu0 %v1221, 126
        %v1226 = vpop.permute.xlu0 %1225
        %1227 = vrot.lane.b32.xlu0 %v1222, 126
        %v1228 = vpop.permute.xlu0 %1227
        %v1231 = vadd.f32 %v1119, %v1226
        %v1232 = vadd.f32 %v1120, %v1228
        %s1233 = sld [smem:[#allocation2 + $0x2f]]
        %v1234 = vstv %s1233
        %v1235 = vmul.f32 %v1234, %v1057
        %v1236 = vmul.f32 %v1234, %v1058
        %1239 = vrot.lane.b32.xlu0 %v1235, 126
        %v1240 = vpop.permute.xlu0 %1239
        %1241 = vrot.lane.b32.xlu0 %v1236, 126
        %v1242 = vpop.permute.xlu0 %1241
        %v1245 = vadd.f32 %v1133, %v1240
        %v1246 = vadd.f32 %v1134, %v1242
        %s1247 = sld [smem:[#allocation2 + $0x53]]
        %v1248 = vstv %s1247
        %v1249 = vmul.f32 %v1248, %v1057
        %v1250 = vmul.f32 %v1248, %v1058
        %1253 = vrot.lane.b32.xlu0 %v1249, 126
        %v1254 = vpop.permute.xlu0 %1253
        %1255 = vrot.lane.b32.xlu0 %v1250, 126
        %v1256 = vpop.permute.xlu0 %1255
        %v1259 = vadd.f32 %v1147, %v1254
        %v1260 = vadd.f32 %v1148, %v1256
        %s1261 = sld [smem:[#allocation2 + $0x77]]
        %v1262 = vstv %s1261
        %v1263 = vmul.f32 %v1262, %v1057
        %v1264 = vmul.f32 %v1262, %v1058
        %1267 = vrot.lane.b32.xlu0 %v1263, 126
        %v1268 = vpop.permute.xlu0 %1267
        %1269 = vrot.lane.b32.xlu0 %v1264, 126
        %v1270 = vpop.permute.xlu0 %1269
        %v1273 = vadd.f32 %v1161, %v1268
        %v1274 = vadd.f32 %v1162, %v1270
        %s1275 = sld [smem:[#allocation2 + $0x9b]]
        %v1276 = vstv %s1275
        %v1277 = vmul.f32 %v1276, %v1057
        %v1278 = vmul.f32 %v1276, %v1058
        %1281 = vrot.lane.b32.xlu0 %v1277, 126
        %v1282 = vpop.permute.xlu0 %1281
        %1283 = vrot.lane.b32.xlu0 %v1278, 126
        %v1284 = vpop.permute.xlu0 %1283
        %v1287 = vadd.f32 %v1175, %v1282
        %v1288 = vadd.f32 %v1176, %v1284
        %s1289 = sld [smem:[#allocation2 + $0xbf]]
        %v1290 = vstv %s1289
        %v1291 = vmul.f32 %v1290, %v1057
        %v1292 = vmul.f32 %v1290, %v1058
        %1295 = vrot.lane.b32.xlu0 %v1291, 126
        %v1296 = vpop.permute.xlu0 %1295
        %1297 = vrot.lane.b32.xlu0 %v1292, 126
        %v1298 = vpop.permute.xlu0 %1297
        %v1301 = vadd.f32 %v1189, %v1296
        %v1302 = vadd.f32 %v1190, %v1298
        %s1303 = sld [smem:[#allocation2 + $0xe3]]
        %v1304 = vstv %s1303
        %v1305 = vmul.f32 %v1304, %v1057
        %v1306 = vmul.f32 %v1304, %v1058
        %1309 = vrot.lane.b32.xlu0 %v1305, 126
        %v1310 = vpop.permute.xlu0 %1309
        %1311 = vrot.lane.b32.xlu0 %v1306, 126
        %v1312 = vpop.permute.xlu0 %1311
        %v1315 = vadd.f32 %v1203, %v1310
        %v1316 = vadd.f32 %v1204, %v1312
        %s1317 = sld [smem:[#allocation2 + $0x107]]
        %v1318 = vstv %s1317
        %v1319 = vmul.f32 %v1318, %v1057
        %v1320 = vmul.f32 %v1318, %v1058
        %1323 = vrot.lane.b32.xlu0 %v1319, 126
        %v1324 = vpop.permute.xlu0 %1323
        %1325 = vrot.lane.b32.xlu0 %v1320, 126
        %v1326 = vpop.permute.xlu0 %1325
        %v1329 = vadd.f32 %v1217, %v1324
        %v1330 = vadd.f32 %v1218, %v1326
        %s1331 = sadd.s32 %s503, 24
        %s1332 = scalar_lea.vmem %s209, %s1331
        %v1333 = vld [vmem:[%s1332] sm:$0xff]
        %v1334 = vld [vmem:[%s1332 + $0x8] sm:$0xff]
        %s1335 = sld [smem:[#allocation2 + $0xc]]
        %v1336 = vstv %s1335
        %v1337 = vmul.f32 %v1336, %v1333
        %v1338 = vmul.f32 %v1336, %v1334
        %v1339 = vadd.f32 %v1231, %v1337
        %v1340 = vadd.f32 %v1232, %v1338
        %s1341 = sld [smem:[#allocation2 + $0x30]]
        %v1342 = vstv %s1341
        %v1343 = vmul.f32 %v1342, %v1333
        %v1344 = vmul.f32 %v1342, %v1334
        %v1345 = vadd.f32 %v1245, %v1343
        %v1346 = vadd.f32 %v1246, %v1344
        %s1347 = sld [smem:[#allocation2 + $0x54]]
        %v1348 = vstv %s1347
        %v1349 = vmul.f32 %v1348, %v1333
        %v1350 = vmul.f32 %v1348, %v1334
        %v1351 = vadd.f32 %v1259, %v1349
        %v1352 = vadd.f32 %v1260, %v1350
        %s1353 = sld [smem:[#allocation2 + $0x78]]
        %v1354 = vstv %s1353
        %v1355 = vmul.f32 %v1354, %v1333
        %v1356 = vmul.f32 %v1354, %v1334
        %v1357 = vadd.f32 %v1273, %v1355
        %v1358 = vadd.f32 %v1274, %v1356
        %s1359 = sld [smem:[#allocation2 + $0x9c]]
        %v1360 = vstv %s1359
        %v1361 = vmul.f32 %v1360, %v1333
        %v1362 = vmul.f32 %v1360, %v1334
        %v1363 = vadd.f32 %v1287, %v1361
        %v1364 = vadd.f32 %v1288, %v1362
        %s1365 = sld [smem:[#allocation2 + $0xc0]]
        %v1366 = vstv %s1365
        %v1367 = vmul.f32 %v1366, %v1333
        %v1368 = vmul.f32 %v1366, %v1334
        %v1369 = vadd.f32 %v1301, %v1367
        %v1370 = vadd.f32 %v1302, %v1368
        %s1371 = sld [smem:[#allocation2 + $0xe4]]
        %v1372 = vstv %s1371
        %v1373 = vmul.f32 %v1372, %v1333
        %v1374 = vmul.f32 %v1372, %v1334
        %v1375 = vadd.f32 %v1315, %v1373
        %v1376 = vadd.f32 %v1316, %v1374
        %s1377 = sld [smem:[#allocation2 + $0x108]]
        %v1378 = vstv %s1377
        %v1379 = vmul.f32 %v1378, %v1333
        %v1380 = vmul.f32 %v1378, %v1334
        %v1381 = vadd.f32 %v1329, %v1379
        %v1382 = vadd.f32 %v1330, %v1380
        %s1383 = sld [smem:[#allocation2 + $0xd]]
        %v1384 = vstv %s1383
        %v1385 = vmul.f32 %v1384, %v1333
        %v1386 = vmul.f32 %v1384, %v1334
        %1389 = vrot.lane.b32.xlu0 %v1385, 127
        %v1390 = vpop.permute.xlu0 %1389
        %1391 = vrot.lane.b32.xlu0 %v1386, 127
        %v1392 = vpop.permute.xlu0 %1391
        %v1395 = vadd.f32 %v1339, %v1390
        %v1396 = vadd.f32 %v1340, %v1392
        %s1397 = sld [smem:[#allocation2 + $0x31]]
        %v1398 = vstv %s1397
        %v1399 = vmul.f32 %v1398, %v1333
        %v1400 = vmul.f32 %v1398, %v1334
        %1403 = vrot.lane.b32.xlu0 %v1399, 127
        %v1404 = vpop.permute.xlu0 %1403
        %1405 = vrot.lane.b32.xlu0 %v1400, 127
        %v1406 = vpop.permute.xlu0 %1405
        %v1409 = vadd.f32 %v1345, %v1404
        %v1410 = vadd.f32 %v1346, %v1406
        %s1411 = sld [smem:[#allocation2 + $0x55]]
        %v1412 = vstv %s1411
        %v1413 = vmul.f32 %v1412, %v1333
        %v1414 = vmul.f32 %v1412, %v1334
        %1417 = vrot.lane.b32.xlu0 %v1413, 127
        %v1418 = vpop.permute.xlu0 %1417
        %1419 = vrot.lane.b32.xlu0 %v1414, 127
        %v1420 = vpop.permute.xlu0 %1419
        %v1423 = vadd.f32 %v1351, %v1418
        %v1424 = vadd.f32 %v1352, %v1420
        %s1425 = sld [smem:[#allocation2 + $0x79]]
        %v1426 = vstv %s1425
        %v1427 = vmul.f32 %v1426, %v1333
        %v1428 = vmul.f32 %v1426, %v1334
        %1431 = vrot.lane.b32.xlu0 %v1427, 127
        %v1432 = vpop.permute.xlu0 %1431
        %1433 = vrot.lane.b32.xlu0 %v1428, 127
        %v1434 = vpop.permute.xlu0 %1433
        %v1437 = vadd.f32 %v1357, %v1432
        %v1438 = vadd.f32 %v1358, %v1434
        %s1439 = sld [smem:[#allocation2 + $0x9d]]
        %v1440 = vstv %s1439
        %v1441 = vmul.f32 %v1440, %v1333
        %v1442 = vmul.f32 %v1440, %v1334
        %1445 = vrot.lane.b32.xlu0 %v1441, 127
        %v1446 = vpop.permute.xlu0 %1445
        %1447 = vrot.lane.b32.xlu0 %v1442, 127
        %v1448 = vpop.permute.xlu0 %1447
        %v1451 = vadd.f32 %v1363, %v1446
        %v1452 = vadd.f32 %v1364, %v1448
        %s1453 = sld [smem:[#allocation2 + $0xc1]]
        %v1454 = vstv %s1453
        %v1455 = vmul.f32 %v1454, %v1333
        %v1456 = vmul.f32 %v1454, %v1334
        %1459 = vrot.lane.b32.xlu0 %v1455, 127
        %v1460 = vpop.permute.xlu0 %1459
        %1461 = vrot.lane.b32.xlu0 %v1456, 127
        %v1462 = vpop.permute.xlu0 %1461
        %v1465 = vadd.f32 %v1369, %v1460
        %v1466 = vadd.f32 %v1370, %v1462
        %s1467 = sld [smem:[#allocation2 + $0xe5]]
        %v1468 = vstv %s1467
        %v1469 = vmul.f32 %v1468, %v1333
        %v1470 = vmul.f32 %v1468, %v1334
        %1473 = vrot.lane.b32.xlu0 %v1469, 127
        %v1474 = vpop.permute.xlu0 %1473
        %1475 = vrot.lane.b32.xlu0 %v1470, 127
        %v1476 = vpop.permute.xlu0 %1475
        %v1479 = vadd.f32 %v1375, %v1474
        %v1480 = vadd.f32 %v1376, %v1476
        %s1481 = sld [smem:[#allocation2 + $0x109]]
        %v1482 = vstv %s1481
        %v1483 = vmul.f32 %v1482, %v1333
        %v1484 = vmul.f32 %v1482, %v1334
        %1487 = vrot.lane.b32.xlu0 %v1483, 127
        %v1488 = vpop.permute.xlu0 %1487
        %1489 = vrot.lane.b32.xlu0 %v1484, 127
        %v1490 = vpop.permute.xlu0 %1489
        %v1493 = vadd.f32 %v1381, %v1488
        %v1494 = vadd.f32 %v1382, %v1490
        %s1495 = sld [smem:[#allocation2 + $0xe]]
        %v1496 = vstv %s1495
        %v1497 = vmul.f32 %v1496, %v1333
        %v1498 = vmul.f32 %v1496, %v1334
        %1501 = vrot.lane.b32.xlu0 %v1497, 126
        %v1502 = vpop.permute.xlu0 %1501
        %1503 = vrot.lane.b32.xlu0 %v1498, 126
        %v1504 = vpop.permute.xlu0 %1503
        %v1507 = vadd.f32 %v1395, %v1502
        %v1508 = vadd.f32 %v1396, %v1504
        %s1509 = sld [smem:[#allocation2 + $0x32]]
        %v1510 = vstv %s1509
        %v1511 = vmul.f32 %v1510, %v1333
        %v1512 = vmul.f32 %v1510, %v1334
        %1515 = vrot.lane.b32.xlu0 %v1511, 126
        %v1516 = vpop.permute.xlu0 %1515
        %1517 = vrot.lane.b32.xlu0 %v1512, 126
        %v1518 = vpop.permute.xlu0 %1517
        %v1521 = vadd.f32 %v1409, %v1516
        %v1522 = vadd.f32 %v1410, %v1518
        %s1523 = sld [smem:[#allocation2 + $0x56]]
        %v1524 = vstv %s1523
        %v1525 = vmul.f32 %v1524, %v1333
        %v1526 = vmul.f32 %v1524, %v1334
        %1529 = vrot.lane.b32.xlu0 %v1525, 126
        %v1530 = vpop.permute.xlu0 %1529
        %1531 = vrot.lane.b32.xlu0 %v1526, 126
        %v1532 = vpop.permute.xlu0 %1531
        %v1535 = vadd.f32 %v1423, %v1530
        %v1536 = vadd.f32 %v1424, %v1532
        %s1537 = sld [smem:[#allocation2 + $0x7a]]
        %v1538 = vstv %s1537
        %v1539 = vmul.f32 %v1538, %v1333
        %v1540 = vmul.f32 %v1538, %v1334
        %1543 = vrot.lane.b32.xlu0 %v1539, 126
        %v1544 = vpop.permute.xlu0 %1543
        %1545 = vrot.lane.b32.xlu0 %v1540, 126
        %v1546 = vpop.permute.xlu0 %1545
        %v1549 = vadd.f32 %v1437, %v1544
        %v1550 = vadd.f32 %v1438, %v1546
        %s1551 = sld [smem:[#allocation2 + $0x9e]]
        %v1552 = vstv %s1551
        %v1553 = vmul.f32 %v1552, %v1333
        %v1554 = vmul.f32 %v1552, %v1334
        %1557 = vrot.lane.b32.xlu0 %v1553, 126
        %v1558 = vpop.permute.xlu0 %1557
        %1559 = vrot.lane.b32.xlu0 %v1554, 126
        %v1560 = vpop.permute.xlu0 %1559
        %v1563 = vadd.f32 %v1451, %v1558
        %v1564 = vadd.f32 %v1452, %v1560
        %s1565 = sld [smem:[#allocation2 + $0xc2]]
        %v1566 = vstv %s1565
        %v1567 = vmul.f32 %v1566, %v1333
        %v1568 = vmul.f32 %v1566, %v1334
        %1571 = vrot.lane.b32.xlu0 %v1567, 126
        %v1572 = vpop.permute.xlu0 %1571
        %1573 = vrot.lane.b32.xlu0 %v1568, 126
        %v1574 = vpop.permute.xlu0 %1573
        %v1577 = vadd.f32 %v1465, %v1572
        %v1578 = vadd.f32 %v1466, %v1574
        %s1579 = sld [smem:[#allocation2 + $0xe6]]
        %v1580 = vstv %s1579
        %v1581 = vmul.f32 %v1580, %v1333
        %v1582 = vmul.f32 %v1580, %v1334
        %1585 = vrot.lane.b32.xlu0 %v1581, 126
        %v1586 = vpop.permute.xlu0 %1585
        %1587 = vrot.lane.b32.xlu0 %v1582, 126
        %v1588 = vpop.permute.xlu0 %1587
        %v1591 = vadd.f32 %v1479, %v1586
        %v1592 = vadd.f32 %v1480, %v1588
        %s1593 = sld [smem:[#allocation2 + $0x10a]]
        %v1594 = vstv %s1593
        %v1595 = vmul.f32 %v1594, %v1333
        %v1596 = vmul.f32 %v1594, %v1334
        %1599 = vrot.lane.b32.xlu0 %v1595, 126
        %v1600 = vpop.permute.xlu0 %1599
        %1601 = vrot.lane.b32.xlu0 %v1596, 126
        %v1602 = vpop.permute.xlu0 %1601
        %v1605 = vadd.f32 %v1493, %v1600
        %v1606 = vadd.f32 %v1494, %v1602
        %s1607 = sadd.s32 %s779, 24
        %s1608 = scalar_lea.vmem %s209, %s1607
        %v1609 = vld [vmem:[%s1608] sm:$0xff]
        %v1610 = vld [vmem:[%s1608 + $0x8] sm:$0xff]
        %s1611 = sld [smem:[#allocation2 + $0xf]]
        %v1612 = vstv %s1611
        %v1613 = vmul.f32 %v1612, %v1609
        %v1614 = vmul.f32 %v1612, %v1610
        %v1615 = vadd.f32 %v1507, %v1613
        %v1616 = vadd.f32 %v1508, %v1614
        %s1617 = sld [smem:[#allocation2 + $0x33]]
        %v1618 = vstv %s1617
        %v1619 = vmul.f32 %v1618, %v1609
        %v1620 = vmul.f32 %v1618, %v1610
        %v1621 = vadd.f32 %v1521, %v1619
        %v1622 = vadd.f32 %v1522, %v1620
        %s1623 = sld [smem:[#allocation2 + $0x57]]
        %v1624 = vstv %s1623
        %v1625 = vmul.f32 %v1624, %v1609
        %v1626 = vmul.f32 %v1624, %v1610
        %v1627 = vadd.f32 %v1535, %v1625
        %v1628 = vadd.f32 %v1536, %v1626
        %s1629 = sld [smem:[#allocation2 + $0x7b]]
        %v1630 = vstv %s1629
        %v1631 = vmul.f32 %v1630, %v1609
        %v1632 = vmul.f32 %v1630, %v1610
        %v1633 = vadd.f32 %v1549, %v1631
        %v1634 = vadd.f32 %v1550, %v1632
        %s1635 = sld [smem:[#allocation2 + $0x9f]]
        %v1636 = vstv %s1635
        %v1637 = vmul.f32 %v1636, %v1609
        %v1638 = vmul.f32 %v1636, %v1610
        %v1639 = vadd.f32 %v1563, %v1637
        %v1640 = vadd.f32 %v1564, %v1638
        %s1641 = sld [smem:[#allocation2 + $0xc3]]
        %v1642 = vstv %s1641
        %v1643 = vmul.f32 %v1642, %v1609
        %v1644 = vmul.f32 %v1642, %v1610
        %v1645 = vadd.f32 %v1577, %v1643
        %v1646 = vadd.f32 %v1578, %v1644
        %s1647 = sld [smem:[#allocation2 + $0xe7]]
        %v1648 = vstv %s1647
        %v1649 = vmul.f32 %v1648, %v1609
        %v1650 = vmul.f32 %v1648, %v1610
        %v1651 = vadd.f32 %v1591, %v1649
        %v1652 = vadd.f32 %v1592, %v1650
        %s1653 = sld [smem:[#allocation2 + $0x10b]]
        %v1654 = vstv %s1653
        %v1655 = vmul.f32 %v1654, %v1609
        %v1656 = vmul.f32 %v1654, %v1610
        %v1657 = vadd.f32 %v1605, %v1655
        %v1658 = vadd.f32 %v1606, %v1656
        %s1659 = sld [smem:[#allocation2 + $0x10]]
        %v1660 = vstv %s1659
        %v1661 = vmul.f32 %v1660, %v1609
        %v1662 = vmul.f32 %v1660, %v1610
        %1665 = vrot.lane.b32.xlu0 %v1661, 127
        %v1666 = vpop.permute.xlu0 %1665
        %1667 = vrot.lane.b32.xlu0 %v1662, 127
        %v1668 = vpop.permute.xlu0 %1667
        %v1671 = vadd.f32 %v1615, %v1666
        %v1672 = vadd.f32 %v1616, %v1668
        %s1673 = sld [smem:[#allocation2 + $0x34]]
        %v1674 = vstv %s1673
        %v1675 = vmul.f32 %v1674, %v1609
        %v1676 = vmul.f32 %v1674, %v1610
        %1679 = vrot.lane.b32.xlu0 %v1675, 127
        %v1680 = vpop.permute.xlu0 %1679
        %1681 = vrot.lane.b32.xlu0 %v1676, 127
        %v1682 = vpop.permute.xlu0 %1681
        %v1685 = vadd.f32 %v1621, %v1680
        %v1686 = vadd.f32 %v1622, %v1682
        %s1687 = sld [smem:[#allocation2 + $0x58]]
        %v1688 = vstv %s1687
        %v1689 = vmul.f32 %v1688, %v1609
        %v1690 = vmul.f32 %v1688, %v1610
        %1693 = vrot.lane.b32.xlu0 %v1689, 127
        %v1694 = vpop.permute.xlu0 %1693
        %1695 = vrot.lane.b32.xlu0 %v1690, 127
        %v1696 = vpop.permute.xlu0 %1695
        %v1699 = vadd.f32 %v1627, %v1694
        %v1700 = vadd.f32 %v1628, %v1696
        %s1701 = sld [smem:[#allocation2 + $0x7c]]
        %v1702 = vstv %s1701
        %v1703 = vmul.f32 %v1702, %v1609
        %v1704 = vmul.f32 %v1702, %v1610
        %1707 = vrot.lane.b32.xlu0 %v1703, 127
        %v1708 = vpop.permute.xlu0 %1707
        %1709 = vrot.lane.b32.xlu0 %v1704, 127
        %v1710 = vpop.permute.xlu0 %1709
        %v1713 = vadd.f32 %v1633, %v1708
        %v1714 = vadd.f32 %v1634, %v1710
        %s1715 = sld [smem:[#allocation2 + $0xa0]]
        %v1716 = vstv %s1715
        %v1717 = vmul.f32 %v1716, %v1609
        %v1718 = vmul.f32 %v1716, %v1610
        %1721 = vrot.lane.b32.xlu0 %v1717, 127
        %v1722 = vpop.permute.xlu0 %1721
        %1723 = vrot.lane.b32.xlu0 %v1718, 127
        %v1724 = vpop.permute.xlu0 %1723
        %v1727 = vadd.f32 %v1639, %v1722
        %v1728 = vadd.f32 %v1640, %v1724
        %s1729 = sld [smem:[#allocation2 + $0xc4]]
        %v1730 = vstv %s1729
        %v1731 = vmul.f32 %v1730, %v1609
        %v1732 = vmul.f32 %v1730, %v1610
        %1735 = vrot.lane.b32.xlu0 %v1731, 127
        %v1736 = vpop.permute.xlu0 %1735
        %1737 = vrot.lane.b32.xlu0 %v1732, 127
        %v1738 = vpop.permute.xlu0 %1737
        %v1741 = vadd.f32 %v1645, %v1736
        %v1742 = vadd.f32 %v1646, %v1738
        %s1743 = sld [smem:[#allocation2 + $0xe8]]
        %v1744 = vstv %s1743
        %v1745 = vmul.f32 %v1744, %v1609
        %v1746 = vmul.f32 %v1744, %v1610
        %1749 = vrot.lane.b32.xlu0 %v1745, 127
        %v1750 = vpop.permute.xlu0 %1749
        %1751 = vrot.lane.b32.xlu0 %v1746, 127
        %v1752 = vpop.permute.xlu0 %1751
        %v1755 = vadd.f32 %v1651, %v1750
        %v1756 = vadd.f32 %v1652, %v1752
        %s1757 = sld [smem:[#allocation2 + $0x10c]]
        %v1758 = vstv %s1757
        %v1759 = vmul.f32 %v1758, %v1609
        %v1760 = vmul.f32 %v1758, %v1610
        %1763 = vrot.lane.b32.xlu0 %v1759, 127
        %v1764 = vpop.permute.xlu0 %1763
        %1765 = vrot.lane.b32.xlu0 %v1760, 127
        %v1766 = vpop.permute.xlu0 %1765
        %v1769 = vadd.f32 %v1657, %v1764
        %v1770 = vadd.f32 %v1658, %v1766
        %s1771 = sld [smem:[#allocation2 + $0x11]]
        %v1772 = vstv %s1771
        %v1773 = vmul.f32 %v1772, %v1609
        %v1774 = vmul.f32 %v1772, %v1610
        %1777 = vrot.lane.b32.xlu0 %v1773, 126
        %v1778 = vpop.permute.xlu0 %1777
        %1779 = vrot.lane.b32.xlu0 %v1774, 126
        %v1780 = vpop.permute.xlu0 %1779
        %v1783 = vadd.f32 %v1671, %v1778
        %v1784 = vadd.f32 %v1672, %v1780
        %s1785 = sld [smem:[#allocation2 + $0x35]]
        %v1786 = vstv %s1785
        %v1787 = vmul.f32 %v1786, %v1609
        %v1788 = vmul.f32 %v1786, %v1610
        %1791 = vrot.lane.b32.xlu0 %v1787, 126
        %v1792 = vpop.permute.xlu0 %1791
        %1793 = vrot.lane.b32.xlu0 %v1788, 126
        %v1794 = vpop.permute.xlu0 %1793
        %v1797 = vadd.f32 %v1685, %v1792
        %v1798 = vadd.f32 %v1686, %v1794
        %s1799 = sld [smem:[#allocation2 + $0x59]]
        %v1800 = vstv %s1799
        %v1801 = vmul.f32 %v1800, %v1609
        %v1802 = vmul.f32 %v1800, %v1610
        %1805 = vrot.lane.b32.xlu0 %v1801, 126
        %v1806 = vpop.permute.xlu0 %1805
        %1807 = vrot.lane.b32.xlu0 %v1802, 126
        %v1808 = vpop.permute.xlu0 %1807
        %v1811 = vadd.f32 %v1699, %v1806
        %v1812 = vadd.f32 %v1700, %v1808
        %s1813 = sld [smem:[#allocation2 + $0x7d]]
        %v1814 = vstv %s1813
        %v1815 = vmul.f32 %v1814, %v1609
        %v1816 = vmul.f32 %v1814, %v1610
        %1819 = vrot.lane.b32.xlu0 %v1815, 126
        %v1820 = vpop.permute.xlu0 %1819
        %1821 = vrot.lane.b32.xlu0 %v1816, 126
        %v1822 = vpop.permute.xlu0 %1821
        %v1825 = vadd.f32 %v1713, %v1820
        %v1826 = vadd.f32 %v1714, %v1822
        %s1827 = sld [smem:[#allocation2 + $0xa1]]
        %v1828 = vstv %s1827
        %v1829 = vmul.f32 %v1828, %v1609
        %v1830 = vmul.f32 %v1828, %v1610
        %1833 = vrot.lane.b32.xlu0 %v1829, 126
        %v1834 = vpop.permute.xlu0 %1833
        %1835 = vrot.lane.b32.xlu0 %v1830, 126
        %v1836 = vpop.permute.xlu0 %1835
        %v1839 = vadd.f32 %v1727, %v1834
        %v1840 = vadd.f32 %v1728, %v1836
        %s1841 = sld [smem:[#allocation2 + $0xc5]]
        %v1842 = vstv %s1841
        %v1843 = vmul.f32 %v1842, %v1609
        %v1844 = vmul.f32 %v1842, %v1610
        %1847 = vrot.lane.b32.xlu0 %v1843, 126
        %v1848 = vpop.permute.xlu0 %1847
        %1849 = vrot.lane.b32.xlu0 %v1844, 126
        %v1850 = vpop.permute.xlu0 %1849
        %v1853 = vadd.f32 %v1741, %v1848
        %v1854 = vadd.f32 %v1742, %v1850
        %s1855 = sld [smem:[#allocation2 + $0xe9]]
        %v1856 = vstv %s1855
        %v1857 = vmul.f32 %v1856, %v1609
        %v1858 = vmul.f32 %v1856, %v1610
        %1861 = vrot.lane.b32.xlu0 %v1857, 126
        %v1862 = vpop.permute.xlu0 %1861
        %1863 = vrot.lane.b32.xlu0 %v1858, 126
        %v1864 = vpop.permute.xlu0 %1863
        %v1867 = vadd.f32 %v1755, %v1862
        %v1868 = vadd.f32 %v1756, %v1864
        %s1869 = sld [smem:[#allocation2 + $0x10d]]
        %v1870 = vstv %s1869
        %v1871 = vmul.f32 %v1870, %v1609
        %v1872 = vmul.f32 %v1870, %v1610
        %1875 = vrot.lane.b32.xlu0 %v1871, 126
        %v1876 = vpop.permute.xlu0 %1875
        %1877 = vrot.lane.b32.xlu0 %v1872, 126
        %v1878 = vpop.permute.xlu0 %1877
        %v1881 = vadd.f32 %v1769, %v1876
        %v1882 = vadd.f32 %v1770, %v1878
        %s1883 = sadd.s32 %s211, 48
        %s1884 = scalar_lea.vmem %s209, %s1883
        %v1885 = vld [vmem:[%s1884] sm:$0xff]
        %v1886 = vld [vmem:[%s1884 + $0x8] sm:$0xff]
        %s1887 = sld [smem:[#allocation2 + $0x12]]
        %v1888 = vstv %s1887
        %v1889 = vmul.f32 %v1888, %v1885
        %v1890 = vmul.f32 %v1888, %v1886
        %v1891 = vadd.f32 %v1783, %v1889
        %v1892 = vadd.f32 %v1784, %v1890
        %s1893 = sld [smem:[#allocation2 + $0x36]]
        %v1894 = vstv %s1893
        %v1895 = vmul.f32 %v1894, %v1885
        %v1896 = vmul.f32 %v1894, %v1886
        %v1897 = vadd.f32 %v1797, %v1895
        %v1898 = vadd.f32 %v1798, %v1896
        %s1899 = sld [smem:[#allocation2 + $0x5a]]
        %v1900 = vstv %s1899
        %v1901 = vmul.f32 %v1900, %v1885
        %v1902 = vmul.f32 %v1900, %v1886
        %v1903 = vadd.f32 %v1811, %v1901
        %v1904 = vadd.f32 %v1812, %v1902
        %s1905 = sld [smem:[#allocation2 + $0x7e]]
        %v1906 = vstv %s1905
        %v1907 = vmul.f32 %v1906, %v1885
        %v1908 = vmul.f32 %v1906, %v1886
        %v1909 = vadd.f32 %v1825, %v1907
        %v1910 = vadd.f32 %v1826, %v1908
        %s1911 = sld [smem:[#allocation2 + $0xa2]]
        %v1912 = vstv %s1911
        %v1913 = vmul.f32 %v1912, %v1885
        %v1914 = vmul.f32 %v1912, %v1886
        %v1915 = vadd.f32 %v1839, %v1913
        %v1916 = vadd.f32 %v1840, %v1914
        %s1917 = sld [smem:[#allocation2 + $0xc6]]
        %v1918 = vstv %s1917
        %v1919 = vmul.f32 %v1918, %v1885
        %v1920 = vmul.f32 %v1918, %v1886
        %v1921 = vadd.f32 %v1853, %v1919
        %v1922 = vadd.f32 %v1854, %v1920
        %s1923 = sld [smem:[#allocation2 + $0xea]]
        %v1924 = vstv %s1923
        %v1925 = vmul.f32 %v1924, %v1885
        %v1926 = vmul.f32 %v1924, %v1886
        %v1927 = vadd.f32 %v1867, %v1925
        %v1928 = vadd.f32 %v1868, %v1926
        %s1929 = sld [smem:[#allocation2 + $0x10e]]
        %v1930 = vstv %s1929
        %v1931 = vmul.f32 %v1930, %v1885
        %v1932 = vmul.f32 %v1930, %v1886
        %v1933 = vadd.f32 %v1881, %v1931
        %v1934 = vadd.f32 %v1882, %v1932
        %s1935 = sld [smem:[#allocation2 + $0x13]]
        %v1936 = vstv %s1935
        %v1937 = vmul.f32 %v1936, %v1885
        %v1938 = vmul.f32 %v1936, %v1886
        %1941 = vrot.lane.b32.xlu0 %v1937, 127
        %v1942 = vpop.permute.xlu0 %1941
        %1943 = vrot.lane.b32.xlu0 %v1938, 127
        %v1944 = vpop.permute.xlu0 %1943
        %v1947 = vadd.f32 %v1891, %v1942
        %v1948 = vadd.f32 %v1892, %v1944
        %s1949 = sld [smem:[#allocation2 + $0x37]]
        %v1950 = vstv %s1949
        %v1951 = vmul.f32 %v1950, %v1885
        %v1952 = vmul.f32 %v1950, %v1886
        %1955 = vrot.lane.b32.xlu0 %v1951, 127
        %v1956 = vpop.permute.xlu0 %1955
        %1957 = vrot.lane.b32.xlu0 %v1952, 127
        %v1958 = vpop.permute.xlu0 %1957
        %v1961 = vadd.f32 %v1897, %v1956
        %v1962 = vadd.f32 %v1898, %v1958
        %s1963 = sld [smem:[#allocation2 + $0x5b]]
        %v1964 = vstv %s1963
        %v1965 = vmul.f32 %v1964, %v1885
        %v1966 = vmul.f32 %v1964, %v1886
        %1969 = vrot.lane.b32.xlu0 %v1965, 127
        %v1970 = vpop.permute.xlu0 %1969
        %1971 = vrot.lane.b32.xlu0 %v1966, 127
        %v1972 = vpop.permute.xlu0 %1971
        %v1975 = vadd.f32 %v1903, %v1970
        %v1976 = vadd.f32 %v1904, %v1972
        %s1977 = sld [smem:[#allocation2 + $0x7f]]
        %v1978 = vstv %s1977
        %v1979 = vmul.f32 %v1978, %v1885
        %v1980 = vmul.f32 %v1978, %v1886
        %1983 = vrot.lane.b32.xlu0 %v1979, 127
        %v1984 = vpop.permute.xlu0 %1983
        %1985 = vrot.lane.b32.xlu0 %v1980, 127
        %v1986 = vpop.permute.xlu0 %1985
        %v1989 = vadd.f32 %v1909, %v1984
        %v1990 = vadd.f32 %v1910, %v1986
        %s1991 = sld [smem:[#allocation2 + $0xa3]]
        %v1992 = vstv %s1991
        %v1993 = vmul.f32 %v1992, %v1885
        %v1994 = vmul.f32 %v1992, %v1886
        %1997 = vrot.lane.b32.xlu0 %v1993, 127
        %v1998 = vpop.permute.xlu0 %1997
        %1999 = vrot.lane.b32.xlu0 %v1994, 127
        %v2000 = vpop.permute.xlu0 %1999
        %v2003 = vadd.f32 %v1915, %v1998
        %v2004 = vadd.f32 %v1916, %v2000
        %s2005 = sld [smem:[#allocation2 + $0xc7]]
        %v2006 = vstv %s2005
        %v2007 = vmul.f32 %v2006, %v1885
        %v2008 = vmul.f32 %v2006, %v1886
        %2011 = vrot.lane.b32.xlu0 %v2007, 127
        %v2012 = vpop.permute.xlu0 %2011
        %2013 = vrot.lane.b32.xlu0 %v2008, 127
        %v2014 = vpop.permute.xlu0 %2013
        %v2017 = vadd.f32 %v1921, %v2012
        %v2018 = vadd.f32 %v1922, %v2014
        %s2019 = sld [smem:[#allocation2 + $0xeb]]
        %v2020 = vstv %s2019
        %v2021 = vmul.f32 %v2020, %v1885
        %v2022 = vmul.f32 %v2020, %v1886
        %2025 = vrot.lane.b32.xlu0 %v2021, 127
        %v2026 = vpop.permute.xlu0 %2025
        %2027 = vrot.lane.b32.xlu0 %v2022, 127
        %v2028 = vpop.permute.xlu0 %2027
        %v2031 = vadd.f32 %v1927, %v2026
        %v2032 = vadd.f32 %v1928, %v2028
        %s2033 = sld [smem:[#allocation2 + $0x10f]]
        %v2034 = vstv %s2033
        %v2035 = vmul.f32 %v2034, %v1885
        %v2036 = vmul.f32 %v2034, %v1886
        %2039 = vrot.lane.b32.xlu0 %v2035, 127
        %v2040 = vpop.permute.xlu0 %2039
        %2041 = vrot.lane.b32.xlu0 %v2036, 127
        %v2042 = vpop.permute.xlu0 %2041
        %v2045 = vadd.f32 %v1933, %v2040
        %v2046 = vadd.f32 %v1934, %v2042
        %s2047 = sld [smem:[#allocation2 + $0x14]]
        %v2048 = vstv %s2047
        %v2049 = vmul.f32 %v2048, %v1885
        %v2050 = vmul.f32 %v2048, %v1886
        %2053 = vrot.lane.b32.xlu0 %v2049, 126
        %v2054 = vpop.permute.xlu0 %2053
        %2055 = vrot.lane.b32.xlu0 %v2050, 126
        %v2056 = vpop.permute.xlu0 %2055
        %v2059 = vadd.f32 %v1947, %v2054
        %v2060 = vadd.f32 %v1948, %v2056
        %s2061 = sld [smem:[#allocation2 + $0x38]]
        %v2062 = vstv %s2061
        %v2063 = vmul.f32 %v2062, %v1885
        %v2064 = vmul.f32 %v2062, %v1886
        %2067 = vrot.lane.b32.xlu0 %v2063, 126
        %v2068 = vpop.permute.xlu0 %2067
        %2069 = vrot.lane.b32.xlu0 %v2064, 126
        %v2070 = vpop.permute.xlu0 %2069
        %v2073 = vadd.f32 %v1961, %v2068
        %v2074 = vadd.f32 %v1962, %v2070
        %s2075 = sld [smem:[#allocation2 + $0x5c]]
        %v2076 = vstv %s2075
        %v2077 = vmul.f32 %v2076, %v1885
        %v2078 = vmul.f32 %v2076, %v1886
        %2081 = vrot.lane.b32.xlu0 %v2077, 126
        %v2082 = vpop.permute.xlu0 %2081
        %2083 = vrot.lane.b32.xlu0 %v2078, 126
        %v2084 = vpop.permute.xlu0 %2083
        %v2087 = vadd.f32 %v1975, %v2082
        %v2088 = vadd.f32 %v1976, %v2084
        %s2089 = sld [smem:[#allocation2 + $0x80]]
        %v2090 = vstv %s2089
        %v2091 = vmul.f32 %v2090, %v1885
        %v2092 = vmul.f32 %v2090, %v1886
        %2095 = vrot.lane.b32.xlu0 %v2091, 126
        %v2096 = vpop.permute.xlu0 %2095
        %2097 = vrot.lane.b32.xlu0 %v2092, 126
        %v2098 = vpop.permute.xlu0 %2097
        %v2101 = vadd.f32 %v1989, %v2096
        %v2102 = vadd.f32 %v1990, %v2098
        %s2103 = sld [smem:[#allocation2 + $0xa4]]
        %v2104 = vstv %s2103
        %v2105 = vmul.f32 %v2104, %v1885
        %v2106 = vmul.f32 %v2104, %v1886
        %2109 = vrot.lane.b32.xlu0 %v2105, 126
        %v2110 = vpop.permute.xlu0 %2109
        %2111 = vrot.lane.b32.xlu0 %v2106, 126
        %v2112 = vpop.permute.xlu0 %2111
        %v2115 = vadd.f32 %v2003, %v2110
        %v2116 = vadd.f32 %v2004, %v2112
        %s2117 = sld [smem:[#allocation2 + $0xc8]]
        %v2118 = vstv %s2117
        %v2119 = vmul.f32 %v2118, %v1885
        %v2120 = vmul.f32 %v2118, %v1886
        %2123 = vrot.lane.b32.xlu0 %v2119, 126
        %v2124 = vpop.permute.xlu0 %2123
        %2125 = vrot.lane.b32.xlu0 %v2120, 126
        %v2126 = vpop.permute.xlu0 %2125
        %v2129 = vadd.f32 %v2017, %v2124
        %v2130 = vadd.f32 %v2018, %v2126
        %s2131 = sld [smem:[#allocation2 + $0xec]]
        %v2132 = vstv %s2131
        %v2133 = vmul.f32 %v2132, %v1885
        %v2134 = vmul.f32 %v2132, %v1886
        %2137 = vrot.lane.b32.xlu0 %v2133, 126
        %v2138 = vpop.permute.xlu0 %2137
        %2139 = vrot.lane.b32.xlu0 %v2134, 126
        %v2140 = vpop.permute.xlu0 %2139
        %v2143 = vadd.f32 %v2031, %v2138
        %v2144 = vadd.f32 %v2032, %v2140
        %s2145 = sld [smem:[#allocation2 + $0x110]]
        %v2146 = vstv %s2145
        %v2147 = vmul.f32 %v2146, %v1885
        %v2148 = vmul.f32 %v2146, %v1886
        %2151 = vrot.lane.b32.xlu0 %v2147, 126
        %v2152 = vpop.permute.xlu0 %2151
        %2153 = vrot.lane.b32.xlu0 %v2148, 126
        %v2154 = vpop.permute.xlu0 %2153
        %v2157 = vadd.f32 %v2045, %v2152
        %v2158 = vadd.f32 %v2046, %v2154
        %s2159 = sadd.s32 %s503, 48
        %s2160 = scalar_lea.vmem %s209, %s2159
        %v2161 = vld [vmem:[%s2160] sm:$0xff]
        %v2162 = vld [vmem:[%s2160 + $0x8] sm:$0xff]
        %s2163 = sld [smem:[#allocation2 + $0x15]]
        %v2164 = vstv %s2163
        %v2165 = vmul.f32 %v2164, %v2161
        %v2166 = vmul.f32 %v2164, %v2162
        %v2167 = vadd.f32 %v2059, %v2165
        %v2168 = vadd.f32 %v2060, %v2166
        %s2169 = sld [smem:[#allocation2 + $0x39]]
        %v2170 = vstv %s2169
        %v2171 = vmul.f32 %v2170, %v2161
        %v2172 = vmul.f32 %v2170, %v2162
        %v2173 = vadd.f32 %v2073, %v2171
        %v2174 = vadd.f32 %v2074, %v2172
        %s2175 = sld [smem:[#allocation2 + $0x5d]]
        %v2176 = vstv %s2175
        %v2177 = vmul.f32 %v2176, %v2161
        %v2178 = vmul.f32 %v2176, %v2162
        %v2179 = vadd.f32 %v2087, %v2177
        %v2180 = vadd.f32 %v2088, %v2178
        %s2181 = sld [smem:[#allocation2 + $0x81]]
        %v2182 = vstv %s2181
        %v2183 = vmul.f32 %v2182, %v2161
        %v2184 = vmul.f32 %v2182, %v2162
        %v2185 = vadd.f32 %v2101, %v2183
        %v2186 = vadd.f32 %v2102, %v2184
        %s2187 = sld [smem:[#allocation2 + $0xa5]]
        %v2188 = vstv %s2187
        %v2189 = vmul.f32 %v2188, %v2161
        %v2190 = vmul.f32 %v2188, %v2162
        %v2191 = vadd.f32 %v2115, %v2189
        %v2192 = vadd.f32 %v2116, %v2190
        %s2193 = sld [smem:[#allocation2 + $0xc9]]
        %v2194 = vstv %s2193
        %v2195 = vmul.f32 %v2194, %v2161
        %v2196 = vmul.f32 %v2194, %v2162
        %v2197 = vadd.f32 %v2129, %v2195
        %v2198 = vadd.f32 %v2130, %v2196
        %s2199 = sld [smem:[#allocation2 + $0xed]]
        %v2200 = vstv %s2199
        %v2201 = vmul.f32 %v2200, %v2161
        %v2202 = vmul.f32 %v2200, %v2162
        %v2203 = vadd.f32 %v2143, %v2201
        %v2204 = vadd.f32 %v2144, %v2202
        %s2205 = sld [smem:[#allocation2 + $0x111]]
        %v2206 = vstv %s2205
        %v2207 = vmul.f32 %v2206, %v2161
        %v2208 = vmul.f32 %v2206, %v2162
        %v2209 = vadd.f32 %v2157, %v2207
        %v2210 = vadd.f32 %v2158, %v2208
        %s2211 = sld [smem:[#allocation2 + $0x16]]
        %v2212 = vstv %s2211
        %v2213 = vmul.f32 %v2212, %v2161
        %v2214 = vmul.f32 %v2212, %v2162
        %2217 = vrot.lane.b32.xlu0 %v2213, 127
        %v2218 = vpop.permute.xlu0 %2217
        %2219 = vrot.lane.b32.xlu0 %v2214, 127
        %v2220 = vpop.permute.xlu0 %2219
        %v2223 = vadd.f32 %v2167, %v2218
        %v2224 = vadd.f32 %v2168, %v2220
        %s2225 = sld [smem:[#allocation2 + $0x3a]]
        %v2226 = vstv %s2225
        %v2227 = vmul.f32 %v2226, %v2161
        %v2228 = vmul.f32 %v2226, %v2162
        %2231 = vrot.lane.b32.xlu0 %v2227, 127
        %v2232 = vpop.permute.xlu0 %2231
        %2233 = vrot.lane.b32.xlu0 %v2228, 127
        %v2234 = vpop.permute.xlu0 %2233
        %v2237 = vadd.f32 %v2173, %v2232
        %v2238 = vadd.f32 %v2174, %v2234
        %s2239 = sld [smem:[#allocation2 + $0x5e]]
        %v2240 = vstv %s2239
        %v2241 = vmul.f32 %v2240, %v2161
        %v2242 = vmul.f32 %v2240, %v2162
        %2245 = vrot.lane.b32.xlu0 %v2241, 127
        %v2246 = vpop.permute.xlu0 %2245
        %2247 = vrot.lane.b32.xlu0 %v2242, 127
        %v2248 = vpop.permute.xlu0 %2247
        %v2251 = vadd.f32 %v2179, %v2246
        %v2252 = vadd.f32 %v2180, %v2248
        %s2253 = sld [smem:[#allocation2 + $0x82]]
        %v2254 = vstv %s2253
        %v2255 = vmul.f32 %v2254, %v2161
        %v2256 = vmul.f32 %v2254, %v2162
        %2259 = vrot.lane.b32.xlu0 %v2255, 127
        %v2260 = vpop.permute.xlu0 %2259
        %2261 = vrot.lane.b32.xlu0 %v2256, 127
        %v2262 = vpop.permute.xlu0 %2261
        %v2265 = vadd.f32 %v2185, %v2260
        %v2266 = vadd.f32 %v2186, %v2262
        %s2267 = sld [smem:[#allocation2 + $0xa6]]
        %v2268 = vstv %s2267
        %v2269 = vmul.f32 %v2268, %v2161
        %v2270 = vmul.f32 %v2268, %v2162
        %2273 = vrot.lane.b32.xlu0 %v2269, 127
        %v2274 = vpop.permute.xlu0 %2273
        %2275 = vrot.lane.b32.xlu0 %v2270, 127
        %v2276 = vpop.permute.xlu0 %2275
        %v2279 = vadd.f32 %v2191, %v2274
        %v2280 = vadd.f32 %v2192, %v2276
        %s2281 = sld [smem:[#allocation2 + $0xca]]
        %v2282 = vstv %s2281
        %v2283 = vmul.f32 %v2282, %v2161
        %v2284 = vmul.f32 %v2282, %v2162
        %2287 = vrot.lane.b32.xlu0 %v2283, 127
        %v2288 = vpop.permute.xlu0 %2287
        %2289 = vrot.lane.b32.xlu0 %v2284, 127
        %v2290 = vpop.permute.xlu0 %2289
        %v2293 = vadd.f32 %v2197, %v2288
        %v2294 = vadd.f32 %v2198, %v2290
        %s2295 = sld [smem:[#allocation2 + $0xee]]
        %v2296 = vstv %s2295
        %v2297 = vmul.f32 %v2296, %v2161
        %v2298 = vmul.f32 %v2296, %v2162
        %2301 = vrot.lane.b32.xlu0 %v2297, 127
        %v2302 = vpop.permute.xlu0 %2301
        %2303 = vrot.lane.b32.xlu0 %v2298, 127
        %v2304 = vpop.permute.xlu0 %2303
        %v2307 = vadd.f32 %v2203, %v2302
        %v2308 = vadd.f32 %v2204, %v2304
        %s2309 = sld [smem:[#allocation2 + $0x112]]
        %v2310 = vstv %s2309
        %v2311 = vmul.f32 %v2310, %v2161
        %v2312 = vmul.f32 %v2310, %v2162
        %2315 = vrot.lane.b32.xlu0 %v2311, 127
        %v2316 = vpop.permute.xlu0 %2315
        %2317 = vrot.lane.b32.xlu0 %v2312, 127
        %v2318 = vpop.permute.xlu0 %2317
        %v2321 = vadd.f32 %v2209, %v2316
        %v2322 = vadd.f32 %v2210, %v2318
        %s2323 = sld [smem:[#allocation2 + $0x17]]
        %v2324 = vstv %s2323
        %v2325 = vmul.f32 %v2324, %v2161
        %v2326 = vmul.f32 %v2324, %v2162
        %2329 = vrot.lane.b32.xlu0 %v2325, 126
        %v2330 = vpop.permute.xlu0 %2329
        %2331 = vrot.lane.b32.xlu0 %v2326, 126
        %v2332 = vpop.permute.xlu0 %2331
        %v2335 = vadd.f32 %v2223, %v2330
        %v2336 = vadd.f32 %v2224, %v2332
        %s2337 = sld [smem:[#allocation2 + $0x3b]]
        %v2338 = vstv %s2337
        %v2339 = vmul.f32 %v2338, %v2161
        %v2340 = vmul.f32 %v2338, %v2162
        %2343 = vrot.lane.b32.xlu0 %v2339, 126
        %v2344 = vpop.permute.xlu0 %2343
        %2345 = vrot.lane.b32.xlu0 %v2340, 126
        %v2346 = vpop.permute.xlu0 %2345
        %v2349 = vadd.f32 %v2237, %v2344
        %v2350 = vadd.f32 %v2238, %v2346
        %s2351 = sld [smem:[#allocation2 + $0x5f]]
        %v2352 = vstv %s2351
        %v2353 = vmul.f32 %v2352, %v2161
        %v2354 = vmul.f32 %v2352, %v2162
        %2357 = vrot.lane.b32.xlu0 %v2353, 126
        %v2358 = vpop.permute.xlu0 %2357
        %2359 = vrot.lane.b32.xlu0 %v2354, 126
        %v2360 = vpop.permute.xlu0 %2359
        %v2363 = vadd.f32 %v2251, %v2358
        %v2364 = vadd.f32 %v2252, %v2360
        %s2365 = sld [smem:[#allocation2 + $0x83]]
        %v2366 = vstv %s2365
        %v2367 = vmul.f32 %v2366, %v2161
        %v2368 = vmul.f32 %v2366, %v2162
        %2371 = vrot.lane.b32.xlu0 %v2367, 126
        %v2372 = vpop.permute.xlu0 %2371
        %2373 = vrot.lane.b32.xlu0 %v2368, 126
        %v2374 = vpop.permute.xlu0 %2373
        %v2377 = vadd.f32 %v2265, %v2372
        %v2378 = vadd.f32 %v2266, %v2374
        %s2379 = sld [smem:[#allocation2 + $0xa7]]
        %v2380 = vstv %s2379
        %v2381 = vmul.f32 %v2380, %v2161
        %v2382 = vmul.f32 %v2380, %v2162
        %2385 = vrot.lane.b32.xlu0 %v2381, 126
        %v2386 = vpop.permute.xlu0 %2385
        %2387 = vrot.lane.b32.xlu0 %v2382, 126
        %v2388 = vpop.permute.xlu0 %2387
        %v2391 = vadd.f32 %v2279, %v2386
        %v2392 = vadd.f32 %v2280, %v2388
        %s2393 = sld [smem:[#allocation2 + $0xcb]]
        %v2394 = vstv %s2393
        %v2395 = vmul.f32 %v2394, %v2161
        %v2396 = vmul.f32 %v2394, %v2162
        %2399 = vrot.lane.b32.xlu0 %v2395, 126
        %v2400 = vpop.permute.xlu0 %2399
        %2401 = vrot.lane.b32.xlu0 %v2396, 126
        %v2402 = vpop.permute.xlu0 %2401
        %v2405 = vadd.f32 %v2293, %v2400
        %v2406 = vadd.f32 %v2294, %v2402
        %s2407 = sld [smem:[#allocation2 + $0xef]]
        %v2408 = vstv %s2407
        %v2409 = vmul.f32 %v2408, %v2161
        %v2410 = vmul.f32 %v2408, %v2162
        %2413 = vrot.lane.b32.xlu0 %v2409, 126
        %v2414 = vpop.permute.xlu0 %2413
        %2415 = vrot.lane.b32.xlu0 %v2410, 126
        %v2416 = vpop.permute.xlu0 %2415
        %v2419 = vadd.f32 %v2307, %v2414
        %v2420 = vadd.f32 %v2308, %v2416
        %s2421 = sld [smem:[#allocation2 + $0x113]]
        %v2422 = vstv %s2421
        %v2423 = vmul.f32 %v2422, %v2161
        %v2424 = vmul.f32 %v2422, %v2162
        %2427 = vrot.lane.b32.xlu0 %v2423, 126
        %v2428 = vpop.permute.xlu0 %2427
        %2429 = vrot.lane.b32.xlu0 %v2424, 126
        %v2430 = vpop.permute.xlu0 %2429
        %v2433 = vadd.f32 %v2321, %v2428
        %v2434 = vadd.f32 %v2322, %v2430
        %s2435 = sadd.s32 %s779, 48
        %s2436 = scalar_lea.vmem %s209, %s2435
        %v2437 = vld [vmem:[%s2436] sm:$0xff]
        %v2438 = vld [vmem:[%s2436 + $0x8] sm:$0xff]
        %s2439 = sld [smem:[#allocation2 + $0x18]]
        %v2440 = vstv %s2439
        %v2441 = vmul.f32 %v2440, %v2437
        %v2442 = vmul.f32 %v2440, %v2438
        %v2443 = vadd.f32 %v2335, %v2441
        %v2444 = vadd.f32 %v2336, %v2442
        %s2445 = sld [smem:[#allocation2 + $0x3c]]
        %v2446 = vstv %s2445
        %v2447 = vmul.f32 %v2446, %v2437
        %v2448 = vmul.f32 %v2446, %v2438
        %v2449 = vadd.f32 %v2349, %v2447
        %v2450 = vadd.f32 %v2350, %v2448
        %s2451 = sld [smem:[#allocation2 + $0x60]]
        %v2452 = vstv %s2451
        %v2453 = vmul.f32 %v2452, %v2437
        %v2454 = vmul.f32 %v2452, %v2438
        %v2455 = vadd.f32 %v2363, %v2453
        %v2456 = vadd.f32 %v2364, %v2454
        %s2457 = sld [smem:[#allocation2 + $0x84]]
        %v2458 = vstv %s2457
        %v2459 = vmul.f32 %v2458, %v2437
        %v2460 = vmul.f32 %v2458, %v2438
        %v2461 = vadd.f32 %v2377, %v2459
        %v2462 = vadd.f32 %v2378, %v2460
        %s2463 = sld [smem:[#allocation2 + $0xa8]]
        %v2464 = vstv %s2463
        %v2465 = vmul.f32 %v2464, %v2437
        %v2466 = vmul.f32 %v2464, %v2438
        %v2467 = vadd.f32 %v2391, %v2465
        %v2468 = vadd.f32 %v2392, %v2466
        %s2469 = sld [smem:[#allocation2 + $0xcc]]
        %v2470 = vstv %s2469
        %v2471 = vmul.f32 %v2470, %v2437
        %v2472 = vmul.f32 %v2470, %v2438
        %v2473 = vadd.f32 %v2405, %v2471
        %v2474 = vadd.f32 %v2406, %v2472
        %s2475 = sld [smem:[#allocation2 + $0xf0]]
        %v2476 = vstv %s2475
        %v2477 = vmul.f32 %v2476, %v2437
        %v2478 = vmul.f32 %v2476, %v2438
        %v2479 = vadd.f32 %v2419, %v2477
        %v2480 = vadd.f32 %v2420, %v2478
        %s2481 = sld [smem:[#allocation2 + $0x114]]
        %v2482 = vstv %s2481
        %v2483 = vmul.f32 %v2482, %v2437
        %v2484 = vmul.f32 %v2482, %v2438
        %v2485 = vadd.f32 %v2433, %v2483
        %v2486 = vadd.f32 %v2434, %v2484
        %s2487 = sld [smem:[#allocation2 + $0x19]]
        %v2488 = vstv %s2487
        %v2489 = vmul.f32 %v2488, %v2437
        %v2490 = vmul.f32 %v2488, %v2438
        %2493 = vrot.lane.b32.xlu0 %v2489, 127
        %v2494 = vpop.permute.xlu0 %2493
        %2495 = vrot.lane.b32.xlu0 %v2490, 127
        %v2496 = vpop.permute.xlu0 %2495
        %v2499 = vadd.f32 %v2443, %v2494
        %v2500 = vadd.f32 %v2444, %v2496
        %s2501 = sld [smem:[#allocation2 + $0x3d]]
        %v2502 = vstv %s2501
        %v2503 = vmul.f32 %v2502, %v2437
        %v2504 = vmul.f32 %v2502, %v2438
        %2507 = vrot.lane.b32.xlu0 %v2503, 127
        %v2508 = vpop.permute.xlu0 %2507
        %2509 = vrot.lane.b32.xlu0 %v2504, 127
        %v2510 = vpop.permute.xlu0 %2509
        %v2513 = vadd.f32 %v2449, %v2508
        %v2514 = vadd.f32 %v2450, %v2510
        %s2515 = sld [smem:[#allocation2 + $0x61]]
        %v2516 = vstv %s2515
        %v2517 = vmul.f32 %v2516, %v2437
        %v2518 = vmul.f32 %v2516, %v2438
        %2521 = vrot.lane.b32.xlu0 %v2517, 127
        %v2522 = vpop.permute.xlu0 %2521
        %2523 = vrot.lane.b32.xlu0 %v2518, 127
        %v2524 = vpop.permute.xlu0 %2523
        %v2527 = vadd.f32 %v2455, %v2522
        %v2528 = vadd.f32 %v2456, %v2524
        %s2529 = sld [smem:[#allocation2 + $0x85]]
        %v2530 = vstv %s2529
        %v2531 = vmul.f32 %v2530, %v2437
        %v2532 = vmul.f32 %v2530, %v2438
        %2535 = vrot.lane.b32.xlu0 %v2531, 127
        %v2536 = vpop.permute.xlu0 %2535
        %2537 = vrot.lane.b32.xlu0 %v2532, 127
        %v2538 = vpop.permute.xlu0 %2537
        %v2541 = vadd.f32 %v2461, %v2536
        %v2542 = vadd.f32 %v2462, %v2538
        %s2543 = sld [smem:[#allocation2 + $0xa9]]
        %v2544 = vstv %s2543
        %v2545 = vmul.f32 %v2544, %v2437
        %v2546 = vmul.f32 %v2544, %v2438
        %2549 = vrot.lane.b32.xlu0 %v2545, 127
        %v2550 = vpop.permute.xlu0 %2549
        %2551 = vrot.lane.b32.xlu0 %v2546, 127
        %v2552 = vpop.permute.xlu0 %2551
        %v2555 = vadd.f32 %v2467, %v2550
        %v2556 = vadd.f32 %v2468, %v2552
        %s2557 = sld [smem:[#allocation2 + $0xcd]]
        %v2558 = vstv %s2557
        %v2559 = vmul.f32 %v2558, %v2437
        %v2560 = vmul.f32 %v2558, %v2438
        %2563 = vrot.lane.b32.xlu0 %v2559, 127
        %v2564 = vpop.permute.xlu0 %2563
        %2565 = vrot.lane.b32.xlu0 %v2560, 127
        %v2566 = vpop.permute.xlu0 %2565
        %v2569 = vadd.f32 %v2473, %v2564
        %v2570 = vadd.f32 %v2474, %v2566
        %s2571 = sld [smem:[#allocation2 + $0xf1]]
        %v2572 = vstv %s2571
        %v2573 = vmul.f32 %v2572, %v2437
        %v2574 = vmul.f32 %v2572, %v2438
        %2577 = vrot.lane.b32.xlu0 %v2573, 127
        %v2578 = vpop.permute.xlu0 %2577
        %2579 = vrot.lane.b32.xlu0 %v2574, 127
        %v2580 = vpop.permute.xlu0 %2579
        %v2583 = vadd.f32 %v2479, %v2578
        %v2584 = vadd.f32 %v2480, %v2580
        %s2585 = sld [smem:[#allocation2 + $0x115]]
        %v2586 = vstv %s2585
        %v2587 = vmul.f32 %v2586, %v2437
        %v2588 = vmul.f32 %v2586, %v2438
        %2591 = vrot.lane.b32.xlu0 %v2587, 127
        %v2592 = vpop.permute.xlu0 %2591
        %2593 = vrot.lane.b32.xlu0 %v2588, 127
        %v2594 = vpop.permute.xlu0 %2593
        %v2597 = vadd.f32 %v2485, %v2592
        %v2598 = vadd.f32 %v2486, %v2594
        %s2599 = sld [smem:[#allocation2 + $0x1a]]
        %v2600 = vstv %s2599
        %v2601 = vmul.f32 %v2600, %v2437
        %v2602 = vmul.f32 %v2600, %v2438
        %2605 = vrot.lane.b32.xlu0 %v2601, 126
        %v2606 = vpop.permute.xlu0 %2605
        %2607 = vrot.lane.b32.xlu0 %v2602, 126
        %v2608 = vpop.permute.xlu0 %2607
        %v2611 = vadd.f32 %v2499, %v2606
        %v2612 = vadd.f32 %v2500, %v2608
        %s2613 = sld [smem:[#allocation2 + $0x3e]]
        %v2614 = vstv %s2613
        %v2615 = vmul.f32 %v2614, %v2437
        %v2616 = vmul.f32 %v2614, %v2438
        %2619 = vrot.lane.b32.xlu0 %v2615, 126
        %v2620 = vpop.permute.xlu0 %2619
        %2621 = vrot.lane.b32.xlu0 %v2616, 126
        %v2622 = vpop.permute.xlu0 %2621
        %v2625 = vadd.f32 %v2513, %v2620
        %v2626 = vadd.f32 %v2514, %v2622
        %s2627 = sld [smem:[#allocation2 + $0x62]]
        %v2628 = vstv %s2627
        %v2629 = vmul.f32 %v2628, %v2437
        %v2630 = vmul.f32 %v2628, %v2438
        %2633 = vrot.lane.b32.xlu0 %v2629, 126
        %v2634 = vpop.permute.xlu0 %2633
        %2635 = vrot.lane.b32.xlu0 %v2630, 126
        %v2636 = vpop.permute.xlu0 %2635
        %v2639 = vadd.f32 %v2527, %v2634
        %v2640 = vadd.f32 %v2528, %v2636
        %s2641 = sld [smem:[#allocation2 + $0x86]]
        %v2642 = vstv %s2641
        %v2643 = vmul.f32 %v2642, %v2437
        %v2644 = vmul.f32 %v2642, %v2438
        %2647 = vrot.lane.b32.xlu0 %v2643, 126
        %v2648 = vpop.permute.xlu0 %2647
        %2649 = vrot.lane.b32.xlu0 %v2644, 126
        %v2650 = vpop.permute.xlu0 %2649
        %v2653 = vadd.f32 %v2541, %v2648
        %v2654 = vadd.f32 %v2542, %v2650
        %s2655 = sld [smem:[#allocation2 + $0xaa]]
        %v2656 = vstv %s2655
        %v2657 = vmul.f32 %v2656, %v2437
        %v2658 = vmul.f32 %v2656, %v2438
        %2661 = vrot.lane.b32.xlu0 %v2657, 126
        %v2662 = vpop.permute.xlu0 %2661
        %2663 = vrot.lane.b32.xlu0 %v2658, 126
        %v2664 = vpop.permute.xlu0 %2663
        %v2667 = vadd.f32 %v2555, %v2662
        %v2668 = vadd.f32 %v2556, %v2664
        %s2669 = sld [smem:[#allocation2 + $0xce]]
        %v2670 = vstv %s2669
        %v2671 = vmul.f32 %v2670, %v2437
        %v2672 = vmul.f32 %v2670, %v2438
        %2675 = vrot.lane.b32.xlu0 %v2671, 126
        %v2676 = vpop.permute.xlu0 %2675
        %2677 = vrot.lane.b32.xlu0 %v2672, 126
        %v2678 = vpop.permute.xlu0 %2677
        %v2681 = vadd.f32 %v2569, %v2676
        %v2682 = vadd.f32 %v2570, %v2678
        %s2683 = sld [smem:[#allocation2 + $0xf2]]
        %v2684 = vstv %s2683
        %v2685 = vmul.f32 %v2684, %v2437
        %v2686 = vmul.f32 %v2684, %v2438
        %2689 = vrot.lane.b32.xlu0 %v2685, 126
        %v2690 = vpop.permute.xlu0 %2689
        %2691 = vrot.lane.b32.xlu0 %v2686, 126
        %v2692 = vpop.permute.xlu0 %2691
        %v2695 = vadd.f32 %v2583, %v2690
        %v2696 = vadd.f32 %v2584, %v2692
        %s2697 = sld [smem:[#allocation2 + $0x116]]
        %v2698 = vstv %s2697
        %v2699 = vmul.f32 %v2698, %v2437
        %v2700 = vmul.f32 %v2698, %v2438
        %2703 = vrot.lane.b32.xlu0 %v2699, 126
        %v2704 = vpop.permute.xlu0 %2703
        %2705 = vrot.lane.b32.xlu0 %v2700, 126
        %v2706 = vpop.permute.xlu0 %2705
        %v2709 = vadd.f32 %v2597, %v2704
        %v2710 = vadd.f32 %v2598, %v2706
        %s2711 = sadd.s32 %s211, 72
        %s2712 = scalar_lea.vmem %s209, %s2711
        %v2713 = vld [vmem:[%s2712] sm:$0xff]
        %v2714 = vld [vmem:[%s2712 + $0x8] sm:$0xff]
        %s2715 = sld [smem:[#allocation2 + $0x1b]]
        %v2716 = vstv %s2715
        %v2717 = vmul.f32 %v2716, %v2713
        %v2718 = vmul.f32 %v2716, %v2714
        %v2719 = vadd.f32 %v2611, %v2717
        %v2720 = vadd.f32 %v2612, %v2718
        %s2721 = sld [smem:[#allocation2 + $0x3f]]
        %v2722 = vstv %s2721
        %v2723 = vmul.f32 %v2722, %v2713
        %v2724 = vmul.f32 %v2722, %v2714
        %v2725 = vadd.f32 %v2625, %v2723
        %v2726 = vadd.f32 %v2626, %v2724
        %s2727 = sld [smem:[#allocation2 + $0x63]]
        %v2728 = vstv %s2727
        %v2729 = vmul.f32 %v2728, %v2713
        %v2730 = vmul.f32 %v2728, %v2714
        %v2731 = vadd.f32 %v2639, %v2729
        %v2732 = vadd.f32 %v2640, %v2730
        %s2733 = sld [smem:[#allocation2 + $0x87]]
        %v2734 = vstv %s2733
        %v2735 = vmul.f32 %v2734, %v2713
        %v2736 = vmul.f32 %v2734, %v2714
        %v2737 = vadd.f32 %v2653, %v2735
        %v2738 = vadd.f32 %v2654, %v2736
        %s2739 = sld [smem:[#allocation2 + $0xab]]
        %v2740 = vstv %s2739
        %v2741 = vmul.f32 %v2740, %v2713
        %v2742 = vmul.f32 %v2740, %v2714
        %v2743 = vadd.f32 %v2667, %v2741
        %v2744 = vadd.f32 %v2668, %v2742
        %s2745 = sld [smem:[#allocation2 + $0xcf]]
        %v2746 = vstv %s2745
        %v2747 = vmul.f32 %v2746, %v2713
        %v2748 = vmul.f32 %v2746, %v2714
        %v2749 = vadd.f32 %v2681, %v2747
        %v2750 = vadd.f32 %v2682, %v2748
        %s2751 = sld [smem:[#allocation2 + $0xf3]]
        %v2752 = vstv %s2751
        %v2753 = vmul.f32 %v2752, %v2713
        %v2754 = vmul.f32 %v2752, %v2714
        %v2755 = vadd.f32 %v2695, %v2753
        %v2756 = vadd.f32 %v2696, %v2754
        %s2757 = sld [smem:[#allocation2 + $0x117]]
        %v2758 = vstv %s2757
        %v2759 = vmul.f32 %v2758, %v2713
        %v2760 = vmul.f32 %v2758, %v2714
        %v2761 = vadd.f32 %v2709, %v2759
        %v2762 = vadd.f32 %v2710, %v2760
        %s2763 = sld [smem:[#allocation2 + $0x1c]]
        %v2764 = vstv %s2763
        %v2765 = vmul.f32 %v2764, %v2713
        %v2766 = vmul.f32 %v2764, %v2714
        %2769 = vrot.lane.b32.xlu0 %v2765, 127
        %v2770 = vpop.permute.xlu0 %2769
        %2771 = vrot.lane.b32.xlu0 %v2766, 127
        %v2772 = vpop.permute.xlu0 %2771
        %v2775 = vadd.f32 %v2719, %v2770
        %v2776 = vadd.f32 %v2720, %v2772
        %s2777 = sld [smem:[#allocation2 + $0x40]]
        %v2778 = vstv %s2777
        %v2779 = vmul.f32 %v2778, %v2713
        %v2780 = vmul.f32 %v2778, %v2714
        %2783 = vrot.lane.b32.xlu0 %v2779, 127
        %v2784 = vpop.permute.xlu0 %2783
        %2785 = vrot.lane.b32.xlu0 %v2780, 127
        %v2786 = vpop.permute.xlu0 %2785
        %v2789 = vadd.f32 %v2725, %v2784
        %v2790 = vadd.f32 %v2726, %v2786
        %s2791 = sld [smem:[#allocation2 + $0x64]]
        %v2792 = vstv %s2791
        %v2793 = vmul.f32 %v2792, %v2713
        %v2794 = vmul.f32 %v2792, %v2714
        %2797 = vrot.lane.b32.xlu0 %v2793, 127
        %v2798 = vpop.permute.xlu0 %2797
        %2799 = vrot.lane.b32.xlu0 %v2794, 127
        %v2800 = vpop.permute.xlu0 %2799
        %v2803 = vadd.f32 %v2731, %v2798
        %v2804 = vadd.f32 %v2732, %v2800
        %s2805 = sld [smem:[#allocation2 + $0x88]]
        %v2806 = vstv %s2805
        %v2807 = vmul.f32 %v2806, %v2713
        %v2808 = vmul.f32 %v2806, %v2714
        %2811 = vrot.lane.b32.xlu0 %v2807, 127
        %v2812 = vpop.permute.xlu0 %2811
        %2813 = vrot.lane.b32.xlu0 %v2808, 127
        %v2814 = vpop.permute.xlu0 %2813
        %v2817 = vadd.f32 %v2737, %v2812
        %v2818 = vadd.f32 %v2738, %v2814
        %s2819 = sld [smem:[#allocation2 + $0xac]]
        %v2820 = vstv %s2819
        %v2821 = vmul.f32 %v2820, %v2713
        %v2822 = vmul.f32 %v2820, %v2714
        %2825 = vrot.lane.b32.xlu0 %v2821, 127
        %v2826 = vpop.permute.xlu0 %2825
        %2827 = vrot.lane.b32.xlu0 %v2822, 127
        %v2828 = vpop.permute.xlu0 %2827
        %v2831 = vadd.f32 %v2743, %v2826
        %v2832 = vadd.f32 %v2744, %v2828
        %s2833 = sld [smem:[#allocation2 + $0xd0]]
        %v2834 = vstv %s2833
        %v2835 = vmul.f32 %v2834, %v2713
        %v2836 = vmul.f32 %v2834, %v2714
        %2839 = vrot.lane.b32.xlu0 %v2835, 127
        %v2840 = vpop.permute.xlu0 %2839
        %2841 = vrot.lane.b32.xlu0 %v2836, 127
        %v2842 = vpop.permute.xlu0 %2841
        %v2845 = vadd.f32 %v2749, %v2840
        %v2846 = vadd.f32 %v2750, %v2842
        %s2847 = sld [smem:[#allocation2 + $0xf4]]
        %v2848 = vstv %s2847
        %v2849 = vmul.f32 %v2848, %v2713
        %v2850 = vmul.f32 %v2848, %v2714
        %2853 = vrot.lane.b32.xlu0 %v2849, 127
        %v2854 = vpop.permute.xlu0 %2853
        %2855 = vrot.lane.b32.xlu0 %v2850, 127
        %v2856 = vpop.permute.xlu0 %2855
        %v2859 = vadd.f32 %v2755, %v2854
        %v2860 = vadd.f32 %v2756, %v2856
        %s2861 = sld [smem:[#allocation2 + $0x118]]
        %v2862 = vstv %s2861
        %v2863 = vmul.f32 %v2862, %v2713
        %v2864 = vmul.f32 %v2862, %v2714
        %2867 = vrot.lane.b32.xlu0 %v2863, 127
        %v2868 = vpop.permute.xlu0 %2867
        %2869 = vrot.lane.b32.xlu0 %v2864, 127
        %v2870 = vpop.permute.xlu0 %2869
        %v2873 = vadd.f32 %v2761, %v2868
        %v2874 = vadd.f32 %v2762, %v2870
        %s2875 = sld [smem:[#allocation2 + $0x1d]]
        %v2876 = vstv %s2875
        %v2877 = vmul.f32 %v2876, %v2713
        %v2878 = vmul.f32 %v2876, %v2714
        %2881 = vrot.lane.b32.xlu0 %v2877, 126
        %v2882 = vpop.permute.xlu0 %2881
        %2883 = vrot.lane.b32.xlu0 %v2878, 126
        %v2884 = vpop.permute.xlu0 %2883
        %v2887 = vadd.f32 %v2775, %v2882
        %v2888 = vadd.f32 %v2776, %v2884
        %s2889 = sld [smem:[#allocation2 + $0x41]]
        %v2890 = vstv %s2889
        %v2891 = vmul.f32 %v2890, %v2713
        %v2892 = vmul.f32 %v2890, %v2714
        %2895 = vrot.lane.b32.xlu0 %v2891, 126
        %v2896 = vpop.permute.xlu0 %2895
        %2897 = vrot.lane.b32.xlu0 %v2892, 126
        %v2898 = vpop.permute.xlu0 %2897
        %v2901 = vadd.f32 %v2789, %v2896
        %v2902 = vadd.f32 %v2790, %v2898
        %s2903 = sld [smem:[#allocation2 + $0x65]]
        %v2904 = vstv %s2903
        %v2905 = vmul.f32 %v2904, %v2713
        %v2906 = vmul.f32 %v2904, %v2714
        %2909 = vrot.lane.b32.xlu0 %v2905, 126
        %v2910 = vpop.permute.xlu0 %2909
        %2911 = vrot.lane.b32.xlu0 %v2906, 126
        %v2912 = vpop.permute.xlu0 %2911
        %v2915 = vadd.f32 %v2803, %v2910
        %v2916 = vadd.f32 %v2804, %v2912
        %s2917 = sld [smem:[#allocation2 + $0x89]]
        %v2918 = vstv %s2917
        %v2919 = vmul.f32 %v2918, %v2713
        %v2920 = vmul.f32 %v2918, %v2714
        %2923 = vrot.lane.b32.xlu0 %v2919, 126
        %v2924 = vpop.permute.xlu0 %2923
        %2925 = vrot.lane.b32.xlu0 %v2920, 126
        %v2926 = vpop.permute.xlu0 %2925
        %v2929 = vadd.f32 %v2817, %v2924
        %v2930 = vadd.f32 %v2818, %v2926
        %s2931 = sld [smem:[#allocation2 + $0xad]]
        %v2932 = vstv %s2931
        %v2933 = vmul.f32 %v2932, %v2713
        %v2934 = vmul.f32 %v2932, %v2714
        %2937 = vrot.lane.b32.xlu0 %v2933, 126
        %v2938 = vpop.permute.xlu0 %2937
        %2939 = vrot.lane.b32.xlu0 %v2934, 126
        %v2940 = vpop.permute.xlu0 %2939
        %v2943 = vadd.f32 %v2831, %v2938
        %v2944 = vadd.f32 %v2832, %v2940
        %s2945 = sld [smem:[#allocation2 + $0xd1]]
        %v2946 = vstv %s2945
        %v2947 = vmul.f32 %v2946, %v2713
        %v2948 = vmul.f32 %v2946, %v2714
        %2951 = vrot.lane.b32.xlu0 %v2947, 126
        %v2952 = vpop.permute.xlu0 %2951
        %2953 = vrot.lane.b32.xlu0 %v2948, 126
        %v2954 = vpop.permute.xlu0 %2953
        %v2957 = vadd.f32 %v2845, %v2952
        %v2958 = vadd.f32 %v2846, %v2954
        %s2959 = sld [smem:[#allocation2 + $0xf5]]
        %v2960 = vstv %s2959
        %v2961 = vmul.f32 %v2960, %v2713
        %v2962 = vmul.f32 %v2960, %v2714
        %2965 = vrot.lane.b32.xlu0 %v2961, 126
        %v2966 = vpop.permute.xlu0 %2965
        %2967 = vrot.lane.b32.xlu0 %v2962, 126
        %v2968 = vpop.permute.xlu0 %2967
        %v2971 = vadd.f32 %v2859, %v2966
        %v2972 = vadd.f32 %v2860, %v2968
        %s2973 = sld [smem:[#allocation2 + $0x119]]
        %v2974 = vstv %s2973
        %v2975 = vmul.f32 %v2974, %v2713
        %v2976 = vmul.f32 %v2974, %v2714
        %2979 = vrot.lane.b32.xlu0 %v2975, 126
        %v2980 = vpop.permute.xlu0 %2979
        %2981 = vrot.lane.b32.xlu0 %v2976, 126
        %v2982 = vpop.permute.xlu0 %2981
        %v2985 = vadd.f32 %v2873, %v2980
        %v2986 = vadd.f32 %v2874, %v2982
        %s2987 = sadd.s32 %s503, 72
        %s2988 = scalar_lea.vmem %s209, %s2987
        %v2989 = vld [vmem:[%s2988] sm:$0xff]
        %v2990 = vld [vmem:[%s2988 + $0x8] sm:$0xff]
        %s2991 = sld [smem:[#allocation2 + $0x1e]]
        %v2992 = vstv %s2991
        %v2993 = vmul.f32 %v2992, %v2989
        %v2994 = vmul.f32 %v2992, %v2990
        %v2995 = vadd.f32 %v2887, %v2993
        %v2996 = vadd.f32 %v2888, %v2994
        %s2997 = sld [smem:[#allocation2 + $0x42]]
        %v2998 = vstv %s2997
        %v2999 = vmul.f32 %v2998, %v2989
        %v3000 = vmul.f32 %v2998, %v2990
        %v3001 = vadd.f32 %v2901, %v2999
        %v3002 = vadd.f32 %v2902, %v3000
        %s3003 = sld [smem:[#allocation2 + $0x66]]
        %v3004 = vstv %s3003
        %v3005 = vmul.f32 %v3004, %v2989
        %v3006 = vmul.f32 %v3004, %v2990
        %v3007 = vadd.f32 %v2915, %v3005
        %v3008 = vadd.f32 %v2916, %v3006
        %s3009 = sld [smem:[#allocation2 + $0x8a]]
        %v3010 = vstv %s3009
        %v3011 = vmul.f32 %v3010, %v2989
        %v3012 = vmul.f32 %v3010, %v2990
        %v3013 = vadd.f32 %v2929, %v3011
        %v3014 = vadd.f32 %v2930, %v3012
        %s3015 = sld [smem:[#allocation2 + $0xae]]
        %v3016 = vstv %s3015
        %v3017 = vmul.f32 %v3016, %v2989
        %v3018 = vmul.f32 %v3016, %v2990
        %v3019 = vadd.f32 %v2943, %v3017
        %v3020 = vadd.f32 %v2944, %v3018
        %s3021 = sld [smem:[#allocation2 + $0xd2]]
        %v3022 = vstv %s3021
        %v3023 = vmul.f32 %v3022, %v2989
        %v3024 = vmul.f32 %v3022, %v2990
        %v3025 = vadd.f32 %v2957, %v3023
        %v3026 = vadd.f32 %v2958, %v3024
        %s3027 = sld [smem:[#allocation2 + $0xf6]]
        %v3028 = vstv %s3027
        %v3029 = vmul.f32 %v3028, %v2989
        %v3030 = vmul.f32 %v3028, %v2990
        %v3031 = vadd.f32 %v2971, %v3029
        %v3032 = vadd.f32 %v2972, %v3030
        %s3033 = sld [smem:[#allocation2 + $0x11a]]
        %v3034 = vstv %s3033
        %v3035 = vmul.f32 %v3034, %v2989
        %v3036 = vmul.f32 %v3034, %v2990
        %v3037 = vadd.f32 %v2985, %v3035
        %v3038 = vadd.f32 %v2986, %v3036
        %s3039 = sld [smem:[#allocation2 + $0x1f]]
        %v3040 = vstv %s3039
        %v3041 = vmul.f32 %v3040, %v2989
        %v3042 = vmul.f32 %v3040, %v2990
        %3045 = vrot.lane.b32.xlu0 %v3041, 127
        %v3046 = vpop.permute.xlu0 %3045
        %3047 = vrot.lane.b32.xlu0 %v3042, 127
        %v3048 = vpop.permute.xlu0 %3047
        %v3051 = vadd.f32 %v2995, %v3046
        %v3052 = vadd.f32 %v2996, %v3048
        %s3053 = sld [smem:[#allocation2 + $0x43]]
        %v3054 = vstv %s3053
        %v3055 = vmul.f32 %v3054, %v2989
        %v3056 = vmul.f32 %v3054, %v2990
        %3059 = vrot.lane.b32.xlu0 %v3055, 127
        %v3060 = vpop.permute.xlu0 %3059
        %3061 = vrot.lane.b32.xlu0 %v3056, 127
        %v3062 = vpop.permute.xlu0 %3061
        %v3065 = vadd.f32 %v3001, %v3060
        %v3066 = vadd.f32 %v3002, %v3062
        %s3067 = sld [smem:[#allocation2 + $0x67]]
        %v3068 = vstv %s3067
        %v3069 = vmul.f32 %v3068, %v2989
        %v3070 = vmul.f32 %v3068, %v2990
        %3073 = vrot.lane.b32.xlu0 %v3069, 127
        %v3074 = vpop.permute.xlu0 %3073
        %3075 = vrot.lane.b32.xlu0 %v3070, 127
        %v3076 = vpop.permute.xlu0 %3075
        %v3079 = vadd.f32 %v3007, %v3074
        %v3080 = vadd.f32 %v3008, %v3076
        %s3081 = sld [smem:[#allocation2 + $0x8b]]
        %v3082 = vstv %s3081
        %v3083 = vmul.f32 %v3082, %v2989
        %v3084 = vmul.f32 %v3082, %v2990
        %3087 = vrot.lane.b32.xlu0 %v3083, 127
        %v3088 = vpop.permute.xlu0 %3087
        %3089 = vrot.lane.b32.xlu0 %v3084, 127
        %v3090 = vpop.permute.xlu0 %3089
        %v3093 = vadd.f32 %v3013, %v3088
        %v3094 = vadd.f32 %v3014, %v3090
        %s3095 = sld [smem:[#allocation2 + $0xaf]]
        %v3096 = vstv %s3095
        %v3097 = vmul.f32 %v3096, %v2989
        %v3098 = vmul.f32 %v3096, %v2990
        %3101 = vrot.lane.b32.xlu0 %v3097, 127
        %v3102 = vpop.permute.xlu0 %3101
        %3103 = vrot.lane.b32.xlu0 %v3098, 127
        %v3104 = vpop.permute.xlu0 %3103
        %v3107 = vadd.f32 %v3019, %v3102
        %v3108 = vadd.f32 %v3020, %v3104
        %s3109 = sld [smem:[#allocation2 + $0xd3]]
        %v3110 = vstv %s3109
        %v3111 = vmul.f32 %v3110, %v2989
        %v3112 = vmul.f32 %v3110, %v2990
        %3115 = vrot.lane.b32.xlu0 %v3111, 127
        %v3116 = vpop.permute.xlu0 %3115
        %3117 = vrot.lane.b32.xlu0 %v3112, 127
        %v3118 = vpop.permute.xlu0 %3117
        %v3121 = vadd.f32 %v3025, %v3116
        %v3122 = vadd.f32 %v3026, %v3118
        %s3123 = sld [smem:[#allocation2 + $0xf7]]
        %v3124 = vstv %s3123
        %v3125 = vmul.f32 %v3124, %v2989
        %v3126 = vmul.f32 %v3124, %v2990
        %3129 = vrot.lane.b32.xlu0 %v3125, 127
        %v3130 = vpop.permute.xlu0 %3129
        %3131 = vrot.lane.b32.xlu0 %v3126, 127
        %v3132 = vpop.permute.xlu0 %3131
        %v3135 = vadd.f32 %v3031, %v3130
        %v3136 = vadd.f32 %v3032, %v3132
        %s3137 = sld [smem:[#allocation2 + $0x11b]]
        %v3138 = vstv %s3137
        %v3139 = vmul.f32 %v3138, %v2989
        %v3140 = vmul.f32 %v3138, %v2990
        %3143 = vrot.lane.b32.xlu0 %v3139, 127
        %v3144 = vpop.permute.xlu0 %3143
        %3145 = vrot.lane.b32.xlu0 %v3140, 127
        %v3146 = vpop.permute.xlu0 %3145
        %v3149 = vadd.f32 %v3037, %v3144
        %v3150 = vadd.f32 %v3038, %v3146
        %s3151 = sld [smem:[#allocation2 + $0x20]]
        %v3152 = vstv %s3151
        %v3153 = vmul.f32 %v3152, %v2989
        %v3154 = vmul.f32 %v3152, %v2990
        %3157 = vrot.lane.b32.xlu0 %v3153, 126
        %v3158 = vpop.permute.xlu0 %3157
        %3159 = vrot.lane.b32.xlu0 %v3154, 126
        %v3160 = vpop.permute.xlu0 %3159
        %v3163 = vadd.f32 %v3051, %v3158
        %v3164 = vadd.f32 %v3052, %v3160
        %s3165 = sld [smem:[#allocation2 + $0x44]]
        %v3166 = vstv %s3165
        %v3167 = vmul.f32 %v3166, %v2989
        %v3168 = vmul.f32 %v3166, %v2990
        %3171 = vrot.lane.b32.xlu0 %v3167, 126
        %v3172 = vpop.permute.xlu0 %3171
        %3173 = vrot.lane.b32.xlu0 %v3168, 126
        %v3174 = vpop.permute.xlu0 %3173
        %v3177 = vadd.f32 %v3065, %v3172
        %v3178 = vadd.f32 %v3066, %v3174
        %s3179 = sld [smem:[#allocation2 + $0x68]]
        %v3180 = vstv %s3179
        %v3181 = vmul.f32 %v3180, %v2989
        %v3182 = vmul.f32 %v3180, %v2990
        %3185 = vrot.lane.b32.xlu0 %v3181, 126
        %v3186 = vpop.permute.xlu0 %3185
        %3187 = vrot.lane.b32.xlu0 %v3182, 126
        %v3188 = vpop.permute.xlu0 %3187
        %v3191 = vadd.f32 %v3079, %v3186
        %v3192 = vadd.f32 %v3080, %v3188
        %s3193 = sld [smem:[#allocation2 + $0x8c]]
        %v3194 = vstv %s3193
        %v3195 = vmul.f32 %v3194, %v2989
        %v3196 = vmul.f32 %v3194, %v2990
        %3199 = vrot.lane.b32.xlu0 %v3195, 126
        %v3200 = vpop.permute.xlu0 %3199
        %3201 = vrot.lane.b32.xlu0 %v3196, 126
        %v3202 = vpop.permute.xlu0 %3201
        %v3205 = vadd.f32 %v3093, %v3200
        %v3206 = vadd.f32 %v3094, %v3202
        %s3207 = sld [smem:[#allocation2 + $0xb0]]
        %v3208 = vstv %s3207
        %v3209 = vmul.f32 %v3208, %v2989
        %v3210 = vmul.f32 %v3208, %v2990
        %3213 = vrot.lane.b32.xlu0 %v3209, 126
        %v3214 = vpop.permute.xlu0 %3213
        %3215 = vrot.lane.b32.xlu0 %v3210, 126
        %v3216 = vpop.permute.xlu0 %3215
        %v3219 = vadd.f32 %v3107, %v3214
        %v3220 = vadd.f32 %v3108, %v3216
        %s3221 = sld [smem:[#allocation2 + $0xd4]]
        %v3222 = vstv %s3221
        %v3223 = vmul.f32 %v3222, %v2989
        %v3224 = vmul.f32 %v3222, %v2990
        %3227 = vrot.lane.b32.xlu0 %v3223, 126
        %v3228 = vpop.permute.xlu0 %3227
        %3229 = vrot.lane.b32.xlu0 %v3224, 126
        %v3230 = vpop.permute.xlu0 %3229
        %v3233 = vadd.f32 %v3121, %v3228
        %v3234 = vadd.f32 %v3122, %v3230
        %s3235 = sld [smem:[#allocation2 + $0xf8]]
        %v3236 = vstv %s3235
        %v3237 = vmul.f32 %v3236, %v2989
        %v3238 = vmul.f32 %v3236, %v2990
        %3241 = vrot.lane.b32.xlu0 %v3237, 126
        %v3242 = vpop.permute.xlu0 %3241
        %3243 = vrot.lane.b32.xlu0 %v3238, 126
        %v3244 = vpop.permute.xlu0 %3243
        %v3247 = vadd.f32 %v3135, %v3242
        %v3248 = vadd.f32 %v3136, %v3244
        %s3249 = sld [smem:[#allocation2 + $0x11c]]
        %v3250 = vstv %s3249
        %v3251 = vmul.f32 %v3250, %v2989
        %v3252 = vmul.f32 %v3250, %v2990
        %3255 = vrot.lane.b32.xlu0 %v3251, 126
        %v3256 = vpop.permute.xlu0 %3255
        %3257 = vrot.lane.b32.xlu0 %v3252, 126
        %v3258 = vpop.permute.xlu0 %3257
        %v3261 = vadd.f32 %v3149, %v3256
        %v3262 = vadd.f32 %v3150, %v3258
        %s3263 = sadd.s32 %s779, 72
        %s3264 = scalar_lea.vmem %s209, %s3263
        %v3265 = vld [vmem:[%s3264] sm:$0xff]
        %v3266 = vld [vmem:[%s3264 + $0x8] sm:$0xff]
        %s3267 = sld [smem:[#allocation2 + $0x21]]
        %v3268 = vstv %s3267
        %v3269 = vmul.f32 %v3268, %v3265
        %v3270 = vmul.f32 %v3268, %v3266
        %v3271 = vadd.f32 %v3163, %v3269
        %v3272 = vadd.f32 %v3164, %v3270
        %s3273 = sld [smem:[#allocation2 + $0x45]]
        %v3274 = vstv %s3273
        %v3275 = vmul.f32 %v3274, %v3265
        %v3276 = vmul.f32 %v3274, %v3266
        %v3277 = vadd.f32 %v3177, %v3275
        %v3278 = vadd.f32 %v3178, %v3276
        %s3279 = sld [smem:[#allocation2 + $0x69]]
        %v3280 = vstv %s3279
        %v3281 = vmul.f32 %v3280, %v3265
        %v3282 = vmul.f32 %v3280, %v3266
        %v3283 = vadd.f32 %v3191, %v3281
        %v3284 = vadd.f32 %v3192, %v3282
        %s3285 = sld [smem:[#allocation2 + $0x8d]]
        %v3286 = vstv %s3285
        %v3287 = vmul.f32 %v3286, %v3265
        %v3288 = vmul.f32 %v3286, %v3266
        %v3289 = vadd.f32 %v3205, %v3287
        %v3290 = vadd.f32 %v3206, %v3288
        %s3291 = sld [smem:[#allocation2 + $0xb1]]
        %v3292 = vstv %s3291
        %v3293 = vmul.f32 %v3292, %v3265
        %v3294 = vmul.f32 %v3292, %v3266
        %v3295 = vadd.f32 %v3219, %v3293
        %v3296 = vadd.f32 %v3220, %v3294
        %s3297 = sld [smem:[#allocation2 + $0xd5]]
        %v3298 = vstv %s3297
        %v3299 = vmul.f32 %v3298, %v3265
        %v3300 = vmul.f32 %v3298, %v3266
        %v3301 = vadd.f32 %v3233, %v3299
        %v3302 = vadd.f32 %v3234, %v3300
        %s3303 = sld [smem:[#allocation2 + $0xf9]]
        %v3304 = vstv %s3303
        %v3305 = vmul.f32 %v3304, %v3265
        %v3306 = vmul.f32 %v3304, %v3266
        %v3307 = vadd.f32 %v3247, %v3305
        %v3308 = vadd.f32 %v3248, %v3306
        %s3309 = sld [smem:[#allocation2 + $0x11d]]
        %v3310 = vstv %s3309
        %v3311 = vmul.f32 %v3310, %v3265
        %v3312 = vmul.f32 %v3310, %v3266
        %v3313 = vadd.f32 %v3261, %v3311
        %v3314 = vadd.f32 %v3262, %v3312
        %s3315 = sld [smem:[#allocation2 + $0x22]]
        %v3316 = vstv %s3315
        %v3317 = vmul.f32 %v3316, %v3265
        %v3318 = vmul.f32 %v3316, %v3266
        %3321 = vrot.lane.b32.xlu0 %v3317, 127
        %v3322 = vpop.permute.xlu0 %3321
        %3323 = vrot.lane.b32.xlu0 %v3318, 127
        %v3324 = vpop.permute.xlu0 %3323
        %v3327 = vadd.f32 %v3271, %v3322
        %v3328 = vadd.f32 %v3272, %v3324
        %s3329 = sld [smem:[#allocation2 + $0x46]]
        %v3330 = vstv %s3329
        %v3331 = vmul.f32 %v3330, %v3265
        %v3332 = vmul.f32 %v3330, %v3266
        %3335 = vrot.lane.b32.xlu0 %v3331, 127
        %v3336 = vpop.permute.xlu0 %3335
        %3337 = vrot.lane.b32.xlu0 %v3332, 127
        %v3338 = vpop.permute.xlu0 %3337
        %v3341 = vadd.f32 %v3277, %v3336
        %v3342 = vadd.f32 %v3278, %v3338
        %s3343 = sld [smem:[#allocation2 + $0x6a]]
        %v3344 = vstv %s3343
        %v3345 = vmul.f32 %v3344, %v3265
        %v3346 = vmul.f32 %v3344, %v3266
        %3349 = vrot.lane.b32.xlu0 %v3345, 127
        %v3350 = vpop.permute.xlu0 %3349
        %3351 = vrot.lane.b32.xlu0 %v3346, 127
        %v3352 = vpop.permute.xlu0 %3351
        %v3355 = vadd.f32 %v3283, %v3350
        %v3356 = vadd.f32 %v3284, %v3352
        %s3357 = sld [smem:[#allocation2 + $0x8e]]
        %v3358 = vstv %s3357
        %v3359 = vmul.f32 %v3358, %v3265
        %v3360 = vmul.f32 %v3358, %v3266
        %3363 = vrot.lane.b32.xlu0 %v3359, 127
        %v3364 = vpop.permute.xlu0 %3363
        %3365 = vrot.lane.b32.xlu0 %v3360, 127
        %v3366 = vpop.permute.xlu0 %3365
        %v3369 = vadd.f32 %v3289, %v3364
        %v3370 = vadd.f32 %v3290, %v3366
        %s3371 = sld [smem:[#allocation2 + $0xb2]]
        %v3372 = vstv %s3371
        %v3373 = vmul.f32 %v3372, %v3265
        %v3374 = vmul.f32 %v3372, %v3266
        %3377 = vrot.lane.b32.xlu0 %v3373, 127
        %v3378 = vpop.permute.xlu0 %3377
        %3379 = vrot.lane.b32.xlu0 %v3374, 127
        %v3380 = vpop.permute.xlu0 %3379
        %v3383 = vadd.f32 %v3295, %v3378
        %v3384 = vadd.f32 %v3296, %v3380
        %s3385 = sld [smem:[#allocation2 + $0xd6]]
        %v3386 = vstv %s3385
        %v3387 = vmul.f32 %v3386, %v3265
        %v3388 = vmul.f32 %v3386, %v3266
        %3391 = vrot.lane.b32.xlu0 %v3387, 127
        %v3392 = vpop.permute.xlu0 %3391
        %3393 = vrot.lane.b32.xlu0 %v3388, 127
        %v3394 = vpop.permute.xlu0 %3393
        %v3397 = vadd.f32 %v3301, %v3392
        %v3398 = vadd.f32 %v3302, %v3394
        %s3399 = sld [smem:[#allocation2 + $0xfa]]
        %v3400 = vstv %s3399
        %v3401 = vmul.f32 %v3400, %v3265
        %v3402 = vmul.f32 %v3400, %v3266
        %3405 = vrot.lane.b32.xlu0 %v3401, 127
        %v3406 = vpop.permute.xlu0 %3405
        %3407 = vrot.lane.b32.xlu0 %v3402, 127
        %v3408 = vpop.permute.xlu0 %3407
        %v3411 = vadd.f32 %v3307, %v3406
        %v3412 = vadd.f32 %v3308, %v3408
        %s3413 = sld [smem:[#allocation2 + $0x11e]]
        %v3414 = vstv %s3413
        %v3415 = vmul.f32 %v3414, %v3265
        %v3416 = vmul.f32 %v3414, %v3266
        %3419 = vrot.lane.b32.xlu0 %v3415, 127
        %v3420 = vpop.permute.xlu0 %3419
        %3421 = vrot.lane.b32.xlu0 %v3416, 127
        %v3422 = vpop.permute.xlu0 %3421
        %v3425 = vadd.f32 %v3313, %v3420
        %v3426 = vadd.f32 %v3314, %v3422
        %s3427 = sld [smem:[#allocation2 + $0x23]]
        %v3428 = vstv %s3427
        %v3429 = vmul.f32 %v3428, %v3265
        %v3430 = vmul.f32 %v3428, %v3266
        %3433 = vrot.lane.b32.xlu0 %v3429, 126
        %v3434 = vpop.permute.xlu0 %3433
        %3435 = vrot.lane.b32.xlu0 %v3430, 126
        %v3436 = vpop.permute.xlu0 %3435
        %v3439 = vadd.f32 %v3327, %v3434
        %v3440 = vadd.f32 %v3328, %v3436
        %s3441 = sld [smem:[#allocation2 + $0x47]]
        %v3442 = vstv %s3441
        %v3443 = vmul.f32 %v3442, %v3265
        %v3444 = vmul.f32 %v3442, %v3266
        %3447 = vrot.lane.b32.xlu0 %v3443, 126
        %v3448 = vpop.permute.xlu0 %3447
        %3449 = vrot.lane.b32.xlu0 %v3444, 126
        %v3450 = vpop.permute.xlu0 %3449
        %v3453 = vadd.f32 %v3341, %v3448
        %v3454 = vadd.f32 %v3342, %v3450
        %s3455 = sld [smem:[#allocation2 + $0x6b]]
        %v3456 = vstv %s3455
        %v3457 = vmul.f32 %v3456, %v3265
        %v3458 = vmul.f32 %v3456, %v3266
        %3461 = vrot.lane.b32.xlu0 %v3457, 126
        %v3462 = vpop.permute.xlu0 %3461
        %3463 = vrot.lane.b32.xlu0 %v3458, 126
        %v3464 = vpop.permute.xlu0 %3463
        %v3467 = vadd.f32 %v3355, %v3462
        %v3468 = vadd.f32 %v3356, %v3464
        %s3469 = sld [smem:[#allocation2 + $0x8f]]
        %v3470 = vstv %s3469
        %v3471 = vmul.f32 %v3470, %v3265
        %v3472 = vmul.f32 %v3470, %v3266
        %3475 = vrot.lane.b32.xlu0 %v3471, 126
        %v3476 = vpop.permute.xlu0 %3475
        %3477 = vrot.lane.b32.xlu0 %v3472, 126
        %v3478 = vpop.permute.xlu0 %3477
        %v3481 = vadd.f32 %v3369, %v3476
        %v3482 = vadd.f32 %v3370, %v3478
        %s3483 = sld [smem:[#allocation2 + $0xb3]]
        %v3484 = vstv %s3483
        %v3485 = vmul.f32 %v3484, %v3265
        %v3486 = vmul.f32 %v3484, %v3266
        %3489 = vrot.lane.b32.xlu0 %v3485, 126
        %v3490 = vpop.permute.xlu0 %3489
        %3491 = vrot.lane.b32.xlu0 %v3486, 126
        %v3492 = vpop.permute.xlu0 %3491
        %v3495 = vadd.f32 %v3383, %v3490
        %v3496 = vadd.f32 %v3384, %v3492
        %s3497 = sld [smem:[#allocation2 + $0xd7]]
        %v3498 = vstv %s3497
        %v3499 = vmul.f32 %v3498, %v3265
        %v3500 = vmul.f32 %v3498, %v3266
        %3503 = vrot.lane.b32.xlu0 %v3499, 126
        %v3504 = vpop.permute.xlu0 %3503
        %3505 = vrot.lane.b32.xlu0 %v3500, 126
        %v3506 = vpop.permute.xlu0 %3505
        %v3509 = vadd.f32 %v3397, %v3504
        %v3510 = vadd.f32 %v3398, %v3506
        %s3511 = sld [smem:[#allocation2 + $0xfb]]
        %v3512 = vstv %s3511
        %v3513 = vmul.f32 %v3512, %v3265
        %v3514 = vmul.f32 %v3512, %v3266
        %3517 = vrot.lane.b32.xlu0 %v3513, 126
        %v3518 = vpop.permute.xlu0 %3517
        %3519 = vrot.lane.b32.xlu0 %v3514, 126
        %v3520 = vpop.permute.xlu0 %3519
        %v3523 = vadd.f32 %v3411, %v3518
        %v3524 = vadd.f32 %v3412, %v3520
        %s3525 = sld [smem:[#allocation2 + $0x11f]]
        %v3526 = vstv %s3525
        %v3527 = vmul.f32 %v3526, %v3265
        %v3528 = vmul.f32 %v3526, %v3266
        %3531 = vrot.lane.b32.xlu0 %v3527, 126
        %v3532 = vpop.permute.xlu0 %3531
        %3533 = vrot.lane.b32.xlu0 %v3528, 126
        %v3534 = vpop.permute.xlu0 %3533
        %v3537 = vadd.f32 %v3425, %v3532
        %v3538 = vadd.f32 %v3426, %v3534
        %vm3539 = vcmask 130048
        %3540 = vst.msk [vmem:[%s204] sm:$0xff] %vm3539, %v3439
        %3541 = vst.msk [vmem:[%s204 + $0x8] sm:$0xff] %vm3539, %v3440
        %s3542 = scalar_lea.vmem %s204, 16 [#allocation7]
        %3543 = vst.msk [vmem:[%s3542] sm:$0xff] %vm3539, %v3453
        %3544 = vst.msk [vmem:[%s3542 + $0x8] sm:$0xff] %vm3539, %v3454
        %s3545 = scalar_lea.vmem %s204, 32 [#allocation7]
        %3546 = vst.msk [vmem:[%s3545] sm:$0xff] %vm3539, %v3467
        %3547 = vst.msk [vmem:[%s3545 + $0x8] sm:$0xff] %vm3539, %v3468
        %s3548 = scalar_lea.vmem %s204, 48 [#allocation7]
        %3549 = vst.msk [vmem:[%s3548] sm:$0xff] %vm3539, %v3481
        %3550 = vst.msk [vmem:[%s3548 + $0x8] sm:$0xff] %vm3539, %v3482
        %s3551 = scalar_lea.vmem %s204, 64 [#allocation7]
        %3552 = vst.msk [vmem:[%s3551] sm:$0xff] %vm3539, %v3495
        %3553 = vst.msk [vmem:[%s3551 + $0x8] sm:$0xff] %vm3539, %v3496
        %s3554 = scalar_lea.vmem %s204, 80 [#allocation7]
        %3555 = vst.msk [vmem:[%s3554] sm:$0xff] %vm3539, %v3509
        %3556 = vst.msk [vmem:[%s3554 + $0x8] sm:$0xff] %vm3539, %v3510
        %s3557 = scalar_lea.vmem %s204, 96 [#allocation7]
        %3558 = vst.msk [vmem:[%s3557] sm:$0xff] %vm3539, %v3523
        %3559 = vst.msk [vmem:[%s3557 + $0x8] sm:$0xff] %vm3539, %v3524
        %s3560 = scalar_lea.vmem %s204, 112 [#allocation7]
        %3561 = vst.msk [vmem:[%s3560] sm:$0xff] %vm3539, %v3537
        %3562 = vst.msk [vmem:[%s3560 + $0x8] sm:$0xff] %vm3539, %v3538
        %s3563 = sand.u32 %s109, 1
        %s3564 = scalar_lea.sflag [#allocation3], %s3563
        %s3565 = sand.u32 %s109, 1
        %s3566 = smul.addr %s3565, 128
        %s3567 = scalar_lea.vmem [#allocation7], %s3566
        // Predicated region
        $region41: #{tpu_custom_call.1} parent=31 // pred_check
          %p3568 = pneg %p119
        $region42: #{tpu_custom_call.1} parent=31 // pred_check_branch
          %3570 = sbr.rel (%p3568) target = $region44
        $region43: #{tpu_custom_call.1} parent=31 // pred_region
          %s3571 = smul.u32 2, %s24
          %3573 = vsyncadd %s3564, 0
          %s3574 = smul.addr %s23, 16
          %s3575 = sadd.s32 %s3571, %s3574
          %s3576 = smul.addr %s3575, 8
          %s3577 = scalar_lea.hbm %s3, %s3576
          %s3578 = sshll.u32 %s3567, 4
          %s3579 = int_to_ptr.vmem [resolvable:$true] %s3578
          %s3580 = sshll.u32 %s3577, 4
          %s3581 = int_to_ptr.hbm [resolvable:$true] %s3580
          %3586 = dma.vmem_to_hbm [thread:$0]  %s3579, 2048, %s3581, %s3564, 128, 128, 8
        $region44: #{tpu_custom_call.1} parent=31 // pred_fallthru
          _
      $region32: #{tpu_custom_call.1} parent=5 // pred_fallthru
        _
      %p3587 = scmp.le.s32.totalorder 2, %s14
      // Predicated region
      $region45: #{tpu_custom_call.1} parent=5 // pred_check
        %p3588 = pneg %p3587
      $region46: #{tpu_custom_call.1} parent=5 // pred_check_branch
        %3590 = sbr.rel (%p3588) target = $region48
      $region47: #{tpu_custom_call.1} parent=5 // pred_region
        %s3591 = ssub.s32 %s14, 2
        // Predicated region
        $region49: #{tpu_custom_call.1} parent=47 // pred_check
          %p3592 = pneg %p125
        $region50: #{tpu_custom_call.1} parent=47 // pred_check_branch
          %3594 = sbr.rel (%p3592) target = $region52
        $region51: #{tpu_custom_call.1} parent=47 // pred_region
          %s3595 = sand.u32 %s110, 1
          %s3596 = scalar_lea.sflag [#allocation3], %s3595
          %s3597 = sand.u32 %s110, 1
          %s3598 = smul.addr %s3597, 128
          %s3599 = scalar_lea.vmem [#allocation7], %s3598
          %3601 = dma.done %s3596, 2048
        $region52: #{tpu_custom_call.1} parent=47 // pred_fallthru
          _
      $region48: #{tpu_custom_call.1} parent=5 // pred_fallthru
        _
    $region6: #{tpu_custom_call.1} parent=1 // loop_footer
      %s18 = sadd.s32 1, %s14
    $region7: #{tpu_custom_call.1} parent=1 // loop_footer_branch
      %13 = sbr.rel target = $region3
    $region8: #{tpu_custom_call.1} parent=1 // loop_exit
      _
    %3602 = vsyncpa [#allocation3], 1
    %s3603 = scalar_lea.sflag [#allocation3], 1
    %3604 = vsyncpa %s3603, 1
    %3605 = vsyncpa [#allocation4], 1
    %s3606 = scalar_lea.sflag [#allocation4], 1
    %3607 = vsyncpa %s3606, 1
    %3608 = vsyncpa [#allocation6], 1

</llo_original>
